<compile_context>
chip_gen: v7x
topology: tpu7x:2x2x1
jax: 0.10.0
libtpu: 0.0.40
codegen_flags: <defaults>
</compile_context>

<pallas_src>
import functools

import jax
import jax.numpy as jnp
from jax import lax
from jax.experimental import pallas as pl
from jax.experimental.pallas import tpu as pltpu

LANE = 128


def _silu_kernel(x):
    # SiLU with the divide on the EUP approximate-reciprocal path (frees VALU slots).
    return x * pl.reciprocal(1.0 + jnp.exp(-x), approx=True)


def _silu_ref(x):
    return x * jax.nn.sigmoid(x)


def _round_up(x, m):
    return (x + m - 1) // m * m


# --------------------------------------------------------------------------- #
# Pallas kernel: one (batch image, row tile) per grid step
# --------------------------------------------------------------------------- #
def csp_kernel(x_hbm, w1_ref, wb1_ref, wb2_ref, w3_ref, w2_ref, w4_ref,
               b1_ref, bb1_ref, bb2_ref, bbn1_ref, bbn2_ref, b4_ref,
               o_ref,
               x_buf, col_ref, cat_ref, dma_sem,
               *, n_reps, shortcut, th, halo, img_h):
    """NHWC, channels zero-padded to multiples of 128, rows zero-padded by `halo`.

    x_hbm   : (N, H+2*halo, W, C1p)   bf16, HBM (manual halo DMA)
    w1_ref  : (C1p, Cp)               cv1 weight (BN folded)                bf16
    wb1_ref : (n, Cp, Cp)             bottleneck 1x1 weights (BN folded)    bf16
    wb2_ref : (n, 3, 3*Cp, Cp)        bottleneck 3x3 weights, row-offset-major, bf16
    w3_ref  : (Cp, Cp)                cv3 (cat-BN top scale folded)         bf16
    w2_ref  : (C1p, Cp)               cv2 (cat-BN bottom scale folded)      bf16
    w4_ref  : (2*Cp, C2p)             cv4 stacked [y1-half ; y2-half]       bf16
    b*_ref  : f32 folded-BN biases
    o_ref   : (th, W, C2p)            output row tile (bf16)
    x_buf   : (th+2*halo, W, C1p)     bf16 haloed input rows
    col_ref : (th+2*halo+2, W, 3*Cp)  bf16 3-column-shift im2col scratch
    cat_ref : (th*W, 2*Cp)            bf16 cat(a1, a2) for the fused cv4 matmul
    """
    rows = th + 2 * halo
    _, W, C1p = x_buf.shape
    Cp = w1_ref.shape[1]
    C2p = o_ref.shape[2]
    hw = rows * W
    hw_out = th * W
    bf16 = jnp.bfloat16

    n = pl.program_id(0)
    i = pl.program_id(1)
    row0 = pl.multiple_of(i * th, th)           # first (row-padded) input row of tile

    # ---- kick off the haloed-row DMA ---------------------------------------
    cp = pltpu.make_async_copy(x_hbm.at[n, pl.ds(row0, rows)], x_buf, dma_sem.at[0])
    cp.start()

    # ---- zero the never-overwritten im2col regions (per grid step) ---------
    # rows 0 / rows+1          : vertical pad of the haloed buffer
    # col 0 of dj=0 slot       : left  image pad
    # col W-1 of dj=2 slot     : right image pad
    col_ref[0:1, :, :] = jnp.zeros((1, W, 3 * Cp), col_ref.dtype)
    col_ref[rows + 1:rows + 2, :, :] = jnp.zeros((1, W, 3 * Cp), col_ref.dtype)
    col_ref[:, 0:1, 0:Cp] = jnp.zeros((rows + 2, 1, Cp), col_ref.dtype)
    col_ref[:, W - 1:W, 2 * Cp:3 * Cp] = jnp.zeros((rows + 2, 1, Cp), col_ref.dtype)

    # which haloed-buffer rows are real image rows (host-padded zero rows must act
    # as zeros for the 3x3 pad, but cv1 of zero-x is SiLU(b1) != 0 -> mask them)
    g = lax.broadcasted_iota(jnp.int32, (rows, 1, 1), 0) + row0
    row_valid = (g >= halo) & (g < halo + img_h)

    cp.wait()

    # ---- cv1: 1x1 conv (matmul) + folded-BN bias + SiLU ---------------------
    h = jnp.dot(x_buf[...].reshape(hw, C1p), w1_ref[...],
                preferred_element_type=jnp.float32)
    h = _silu_kernel(h + b1_ref[...])                        # (hw, Cp) f32

    # ---- m: n x Bottleneck(c_, c_, shortcut, e=1.0) --------------------------
    def bottleneck(j, h):
        # bottleneck cv1 (1x1) + SiLU
        t = jnp.dot(h.astype(bf16), wb1_ref[j], preferred_element_type=jnp.float32)
        t = _silu_kernel(t + bb1_ref[j])                     # (hw, Cp) f32

        # mask out-of-image halo rows, cast to bf16 once for the im2col stores
        t3 = jnp.where(row_valid, t.reshape(rows, W, Cp), 0.0).astype(bf16)

        # 3-column-shift im2col (dj shifts only)
        col_ref[1:rows + 1, 1:W, 0:Cp] = t3[:, 0:W - 1, :]          # kw = -1
        col_ref[1:rows + 1, :, Cp:2 * Cp] = t3                      # kw =  0
        col_ref[1:rows + 1, 0:W - 1, 2 * Cp:3 * Cp] = t3[:, 1:W, :]  # kw = +1

        # 3x3 conv = 3 accumulated K = 3*Cp matmuls (one per row offset di)
        wb2 = wb2_ref[j]                                     # (3, 3*Cp, Cp)
        u = jnp.dot(col_ref[0:rows].reshape(hw, 3 * Cp), wb2[0],
                    preferred_element_type=jnp.float32)
        u = u + jnp.dot(col_ref[1:rows + 1].reshape(hw, 3 * Cp), wb2[1],
                        preferred_element_type=jnp.float32)
        u = u + jnp.dot(col_ref[2:rows + 2].reshape(hw, 3 * Cp), wb2[2],
                        preferred_element_type=jnp.float32)
        u = _silu_kernel(u + bb2_ref[j])
        return h + u if shortcut else u

    if n_reps <= 2:                       # short fixed trip count: static unroll
        for j in range(n_reps):
            h = bottleneck(j, h)
    else:                                 # deep stacks: bound live ranges
        h = lax.fori_loop(0, n_reps, bottleneck, h)

    # ---- y1 = cv3(h), y2 = cv2(x) on the valid center rows; BN(cat) folded ---
    hc = h.reshape(rows, W, Cp)[halo:halo + th].reshape(hw_out, Cp)
    a1 = jnp.dot(hc.astype(bf16), w3_ref[...], preferred_element_type=jnp.float32)
    a1 = _silu_kernel(a1 + bbn1_ref[...])

    xc = x_buf[halo:halo + th].reshape(hw_out, C1p)          # re-read x (short live range)
    a2 = jnp.dot(xc, w2_ref[...], preferred_element_type=jnp.float32)
    a2 = _silu_kernel(a2 + bbn2_ref[...])

    # ---- cv4 on cat(a1, a2): single K = 2*Cp matmul via lane-concat scratch --
    cat_ref[:, 0:Cp] = a1.astype(bf16)
    cat_ref[:, Cp:2 * Cp] = a2.astype(bf16)
    out = jnp.dot(cat_ref[...], w4_ref[...], preferred_element_type=jnp.float32)
    out = _silu_kernel(out + b4_ref[...])
    o_ref[...] = out.reshape(th, W, C2p).astype(o_ref.dtype)


# --------------------------------------------------------------------------- #
# pallas_call wrapper
# --------------------------------------------------------------------------- #
def bottleneck_csp_forward(x_padded, params, *, n_reps, shortcut, img_h, row_tile,
                           out_dtype=jnp.bfloat16,
                           vmem_limit_bytes=48 * 1024 * 1024):
    N, Hp, W, C1p = x_padded.shape
    Cp = params["w1"].shape[1]
    C2p = params["w4"].shape[1]
    halo = n_reps
    th = row_tile
    assert img_h % th == 0          # TODO(synk): ragged last row tile
    assert Hp == img_h + 2 * halo
    n_row_tiles = img_h // th
    rows = th + 2 * halo

    kernel = functools.partial(csp_kernel, n_reps=n_reps, shortcut=shortcut,
                               th=th, halo=halo, img_h=img_h)

    def _const_spec(shape):
        return pl.BlockSpec(shape, lambda n, i, _s=shape: (0,) * len(_s))

    grid_spec = pltpu.PrefetchScalarGridSpec(
        num_scalar_prefetch=0,
        grid=(N, n_row_tiles),
        in_specs=[
            pl.BlockSpec(memory_space=pl.ANY),              # x: manual halo DMA
            _const_spec((C1p, Cp)),                         # w1
            _const_spec((n_reps, Cp, Cp)),                  # wb1
            _const_spec((n_reps, 3, 3 * Cp, Cp)),           # wb2
            _const_spec((Cp, Cp)),                          # w3
            _const_spec((C1p, Cp)),                         # w2
            _const_spec((2 * Cp, C2p)),                     # w4 (stacked)
            _const_spec((1, Cp)),                           # b1
            _const_spec((n_reps, 1, Cp)),                   # bb1
            _const_spec((n_reps, 1, Cp)),                   # bb2
            _const_spec((1, Cp)),                           # bbn1
            _const_spec((1, Cp)),                           # bbn2
            _const_spec((1, C2p)),                          # b4
        ],
        out_specs=pl.BlockSpec((None, th, W, C2p), lambda n, i: (n, i, 0, 0)),
        scratch_shapes=[
            pltpu.VMEM((rows, W, C1p), jnp.bfloat16),            # haloed x rows
            pltpu.VMEM((rows + 2, W, 3 * Cp), jnp.bfloat16),     # 3-shift im2col
            pltpu.VMEM((th * W, 2 * Cp), jnp.bfloat16),          # cat(a1,a2) for cv4
            pltpu.SemaphoreType.DMA((1,)),
        ],
    )

    # advisory cost hint so XLA schedules surrounding HLO around the call
    hw = img_h * W
    flops = 2 * N * hw * (C1p * Cp + n_reps * (Cp * Cp + 9 * Cp * Cp)
                          + Cp * Cp + C1p * Cp + 2 * Cp * C2p)
    transc = N * hw * (Cp * (2 + 2 * n_reps) + C2p)
    bytes_acc = int(x_padded.size * x_padded.dtype.itemsize
                    + sum(int(p.size) * p.dtype.itemsize for p in params.values())
                    + N * hw * C2p * jnp.dtype(out_dtype).itemsize)

    return pl.pallas_call(
        kernel,
        out_shape=jax.ShapeDtypeStruct((N, img_h, W, C2p), out_dtype),
        grid_spec=grid_spec,
        compiler_params=pltpu.CompilerParams(
            dimension_semantics=("parallel", "parallel"),   # batch x row-tile megacore
            vmem_limit_bytes=vmem_limit_bytes,              # raise on v5e/v6e (128 MiB)
        ),
        cost_estimate=pl.CostEstimate(flops=flops, transcendentals=transc,
                                      bytes_accessed=bytes_acc),
    )(x_padded,
      params["w1"], params["wb1"], params["wb2"], params["w3"], params["w2"],
      params["w4"],
      params["b1"], params["bb1"], params["bb2"],
      params["bbn1"], params["bbn2"], params["b4"])


# --------------------------------------------------------------------------- #
# Host-side parameter folding / padding (free precompute)
# --------------------------------------------------------------------------- #
def prepare_params(raw, c1, c2, c_, n_reps, eps=1e-5):
    C1p = _round_up(c1, LANE)
    Cp = _round_up(c_, LANE)
    C2p = _round_up(c2, LANE)

    def fold(bn):
        g, b, m, v = bn
        s = g / jnp.sqrt(v + eps)
        return s, b - m * s

    def mat1x1(w_oihw, scale=None):
        m = jnp.transpose(w_oihw[:, :, 0, 0], (1, 0)).astype(jnp.float32)  # (I, O)
        if scale is not None:
            m = m * scale[None, :]
        return m

    def pad_mat(m, rows, cols):
        return jnp.zeros((rows, cols), jnp.float32).at[:m.shape[0], :m.shape[1]].set(m)

    def pad_bias(b, cols):
        return jnp.zeros((1, cols), jnp.float32).at[0, :b.shape[0]].set(b)

    # cv1 (Conv+BN+SiLU)
    s1, b1 = fold(raw["cv1_bn"])
    w1 = pad_mat(mat1x1(raw["cv1_w"], s1), C1p, Cp)

    # bottlenecks
    wb1_l, bb1_l, wb2_l, bb2_l = [], [], [], []
    for j in range(n_reps):
        blk = raw["m"][j]
        sb1, bib1 = fold(blk["cv1_bn"])
        wb1_l.append(pad_mat(mat1x1(blk["cv1_w"], sb1), Cp, Cp))
        bb1_l.append(pad_bias(bib1, Cp))

        sb2, bib2 = fold(blk["cv2_bn"])
        w_hwio = jnp.transpose(blk["cv2_w"], (2, 3, 1, 0)).astype(jnp.float32)  # (3,3,I,O)
        ci, co = w_hwio.shape[2], w_hwio.shape[3]
        # (3, 3*Cp, Cp): leading axis = row offset di, K axis packs the 3 column taps
        w2_col = jnp.zeros((3, 3 * Cp, Cp), jnp.float32)
        for di in range(3):
            for dj in range(3):
                tap = w_hwio[di, dj] * sb2[None, :]
                w2_col = w2_col.at[di, dj * Cp:dj * Cp + ci, :co].set(tap)
        wb2_l.append(w2_col)
        bb2_l.append(pad_bias(bib2, Cp))

    # BN over cat(y1, y2): split, fold scales into cv3 (top) and cv2 (bottom)
    s_bn, b_bn = fold(raw["bn"])
    w3 = pad_mat(mat1x1(raw["cv3_w"], s_bn[:c_]), Cp, Cp)
    w2 = pad_mat(mat1x1(raw["cv2_w"], s_bn[c_:]), C1p, Cp)
    bbn1 = pad_bias(b_bn[:c_], Cp)
    bbn2 = pad_bias(b_bn[c_:], Cp)

    # cv4 (Conv+BN+SiLU), stacked for one K = 2*Cp matmul against cat(a1, a2)
    s4, b4 = fold(raw["cv4_bn"])
    w4m = mat1x1(raw["cv4_w"], s4)                     # (2*c_, c2)
    w4 = jnp.zeros((2 * Cp, C2p), jnp.float32)
    w4 = w4.at[:c_, :c2].set(w4m[:c_])                 # y1 half -> lanes [0, Cp)
    w4 = w4.at[Cp:Cp + c_, :c2].set(w4m[c_:])          # y2 half -> lanes [Cp, 2*Cp)

    bf16 = jnp.bfloat16
    params = dict(
        w1=w1.astype(bf16),
        wb1=jnp.stack(wb1_l).astype(bf16),
        wb2=jnp.stack(wb2_l).astype(bf16),
        w3=w3.astype(bf16),
        w2=w2.astype(bf16),
        w4=w4.astype(bf16),
        b1=pad_bias(b1, Cp),
        bb1=jnp.stack(bb1_l),
        bb2=jnp.stack(bb2_l),
        bbn1=bbn1,
        bbn2=bbn2,
        b4=pad_bias(b4, C2p),
    )
    return params, (C1p, Cp, C2p)


def bottleneck_csp(x_nchw, raw, *, c2, n_reps=1, shortcut=True, e=0.5,
                   row_tile=None, out_dtype=jnp.bfloat16,
                   vmem_limit_bytes=48 * 1024 * 1024):
    N, c1, H, W = x_nchw.shape
    # W multiple of 8 keeps every (rows, W, C) <-> (rows*W, C) reshape layout-free.
    assert W % 8 == 0  # TODO(synk): support W % 8 != 0 by keeping matmuls on 3-D views
    c_ = int(c2 * e)
    halo = n_reps                              # recompute-overlap halo: 1 row per 3x3 rep
    if row_tile is None:                       # generation knob: larger on v5e/v6e VMEM
        row_tile = H
        for cand in (32, 16, 8):
            if H % cand == 0 and cand < H:
                row_tile = cand
                break
    assert H % row_tile == 0

    params, (C1p, _, _) = prepare_params(raw, c1, c2, c_, n_reps)
    x_nhwc = jnp.transpose(x_nchw, (0, 2, 3, 1))
    # zero-pad: `halo` rows top/bottom + channels to a lane multiple; bf16 MXU operand.
    x_pad = jnp.zeros((N, H + 2 * halo, W, C1p), jnp.bfloat16)
    x_pad = x_pad.at[:, halo:halo + H, :, :c1].set(x_nhwc.astype(jnp.bfloat16))

    out = bottleneck_csp_forward(x_pad, params, n_reps=n_reps, shortcut=shortcut,
                                 img_h=H, row_tile=row_tile, out_dtype=out_dtype,
                                 vmem_limit_bytes=vmem_limit_bytes)
    out = out[..., :c2]                                   # drop channel padding
    return jnp.transpose(out, (0, 3, 1, 2))               # back to NCHW


# --------------------------------------------------------------------------- #
# Pure-JAX f32 reference (eval-mode BatchNorm)
# --------------------------------------------------------------------------- #
def _conv_ref(x, w_oihw, pad):
    w = jnp.transpose(w_oihw, (2, 3, 1, 0))
    return lax.conv_general_dilated(x, w, (1, 1), [(pad, pad), (pad, pad)],
                                    dimension_numbers=("NHWC", "HWIO", "NHWC"))


def _bn_ref(x, bn, eps=1e-5):
    g, b, m, v = bn
    s = g / jnp.sqrt(v + eps)
    return x * s + (b - m * s)


def reference_csp(x_nchw, raw, *, c2, n_reps=1, shortcut=True, e=0.5):
    x = jnp.transpose(x_nchw, (0, 2, 3, 1)).astype(jnp.float32)
    h = _silu_ref(_bn_ref(_conv_ref(x, raw["cv1_w"], 0), raw["cv1_bn"]))
    for j in range(n_reps):
        blk = raw["m"][j]
        t = _silu_ref(_bn_ref(_conv_ref(h, blk["cv1_w"], 0), blk["cv1_bn"]))
        u = _silu_ref(_bn_ref(_conv_ref(t, blk["cv2_w"], 1), blk["cv2_bn"]))
        h = h + u if shortcut else u
    y1 = _conv_ref(h, raw["cv3_w"], 0)
    y2 = _conv_ref(x, raw["cv2_w"], 0)
    z = _silu_ref(_bn_ref(jnp.concatenate([y1, y2], axis=-1), raw["bn"]))
    out = _silu_ref(_bn_ref(_conv_ref(z, raw["cv4_w"], 0), raw["cv4_bn"]))
    return jnp.transpose(out, (0, 3, 1, 2))


# --------------------------------------------------------------------------- #
if __name__ == "__main__":
    N, c1, c2, H, W = 2, 4, 4, 16, 16
    n_reps, e, shortcut = 1, 0.5, True
    c_ = int(c2 * e)                                      # hidden channels = 2

    keys = iter(jax.random.split(jax.random.PRNGKey(0), 64))
    nk = lambda: next(keys)

    def make_bn(c):
        return (1.0 + 0.1 * jax.random.normal(nk(), (c,), jnp.float32),
                0.1 * jax.random.normal(nk(), (c,), jnp.float32),
                0.1 * jax.random.normal(nk(), (c,), jnp.float32),
                jnp.abs(jax.random.normal(nk(), (c,), jnp.float32)) + 0.5)

    x_nchw = jax.random.normal(nk(), (N, c1, H, W), jnp.float32)

    raw = dict(
        cv1_w=0.1 * jax.random.normal(nk(), (c_, c1, 1, 1), jnp.float32),
        cv1_bn=make_bn(c_),
        m=[dict(
            cv1_w=0.1 * jax.random.normal(nk(), (c_, c_, 1, 1), jnp.float32),
            cv1_bn=make_bn(c_),
            cv2_w=0.1 * jax.random.normal(nk(), (c_, c_, 3, 3), jnp.float32),
            cv2_bn=make_bn(c_),
        ) for _ in range(n_reps)],
        cv3_w=0.1 * jax.random.normal(nk(), (c_, c_, 1, 1), jnp.float32),
        cv2_w=0.1 * jax.random.normal(nk(), (c_, c1, 1, 1), jnp.float32),
        bn=make_bn(2 * c_),
        cv4_w=0.1 * jax.random.normal(nk(), (c2, 2 * c_, 1, 1), jnp.float32),
        cv4_bn=make_bn(c2),
    )

    # row_tile=8 -> 2 row tiles per image, exercising the haloed spatial tiling
    out = bottleneck_csp(x_nchw, raw, c2=c2, n_reps=n_reps, shortcut=shortcut, e=e,
                         row_tile=8)
    out = jax.block_until_ready(out)

    ref = reference_csp(x_nchw, raw, c2=c2, n_reps=n_reps, shortcut=shortcut, e=e)
    ref = jax.block_until_ready(ref)

    assert out.shape == (N, c2, H, W) and out.dtype == jnp.bfloat16
    err = float(jnp.max(jnp.abs(out.astype(jnp.float32) - ref)))
    # bf16 MXU operands + bf16 output + EUP approx reciprocal vs f32 reference
    assert err < 3e-2, f"max abs err = {err}"

    print("KERNEL_OK")
</pallas_src>

<mosaic_0001>
module attributes {stable_mosaic.version = 11 : i64} {
  func.func @csp_kernel(%arg0: i32, %arg1: i32, %arg2: memref<2x18x16x128xbf16, #tpu.memory_space<any>>, %arg3: memref<128x128xbf16, #tpu.memory_space<vmem>>, %arg4: memref<1x128x128xbf16, #tpu.memory_space<vmem>>, %arg5: memref<1x3x384x128xbf16, #tpu.memory_space<vmem>>, %arg6: memref<128x128xbf16, #tpu.memory_space<vmem>>, %arg7: memref<128x128xbf16, #tpu.memory_space<vmem>>, %arg8: memref<256x128xbf16, #tpu.memory_space<vmem>>, %arg9: memref<1x128xf32, #tpu.memory_space<vmem>>, %arg10: memref<1x1x128xf32, #tpu.memory_space<vmem>>, %arg11: memref<1x1x128xf32, #tpu.memory_space<vmem>>, %arg12: memref<1x128xf32, #tpu.memory_space<vmem>>, %arg13: memref<1x128xf32, #tpu.memory_space<vmem>>, %arg14: memref<1x128xf32, #tpu.memory_space<vmem>>, %arg15: memref<1x8x16x128xbf16, #tpu.memory_space<vmem>>, %arg16: memref<10x16x128xbf16, #tpu.memory_space<vmem>>, %arg17: memref<12x16x384xbf16, #tpu.memory_space<vmem>>, %arg18: memref<128x256xbf16, #tpu.memory_space<vmem>>, %arg19: memref<1x!tpu.dma_semaphore, #tpu.memory_space<semaphore_mem>>) attributes {dimension_semantics = [#tpu.dimension_semantics<parallel>, #tpu.dimension_semantics<parallel>], iteration_bounds = array<i64: 2, 2>, scalar_prefetch = 0 : i64, scratch_operands = 4 : i64, tpu.core_type = #tpu.core_type<tc>, window_params = [{}, {pipeline_mode = #tpu.pipeline_mode<synchronous>, transform_indices = @transform_1, window_bounds = array<i64: 128, 128>}, {pipeline_mode = #tpu.pipeline_mode<synchronous>, transform_indices = @transform_2, window_bounds = array<i64: 1, 128, 128>}, {pipeline_mode = #tpu.pipeline_mode<synchronous>, transform_indices = @transform_3, window_bounds = array<i64: 1, 3, 384, 128>}, {pipeline_mode = #tpu.pipeline_mode<synchronous>, transform_indices = @transform_4, window_bounds = array<i64: 128, 128>}, {pipeline_mode = #tpu.pipeline_mode<synchronous>, transform_indices = @transform_5, window_bounds = array<i64: 128, 128>}, {pipeline_mode = #tpu.pipeline_mode<synchronous>, transform_indices = @transform_6, window_bounds = array<i64: 256, 128>}, {pipeline_mode = #tpu.pipeline_mode<synchronous>, transform_indices = @transform_7, window_bounds = array<i64: 1, 128>}, {pipeline_mode = #tpu.pipeline_mode<synchronous>, transform_indices = @transform_8, window_bounds = array<i64: 1, 1, 128>}, {pipeline_mode = #tpu.pipeline_mode<synchronous>, transform_indices = @transform_9, window_bounds = array<i64: 1, 1, 128>}, {pipeline_mode = #tpu.pipeline_mode<synchronous>, transform_indices = @transform_10, window_bounds = array<i64: 1, 128>}, {pipeline_mode = #tpu.pipeline_mode<synchronous>, transform_indices = @transform_11, window_bounds = array<i64: 1, 128>}, {pipeline_mode = #tpu.pipeline_mode<synchronous>, transform_indices = @transform_12, window_bounds = array<i64: 1, 128>}, {transform_indices = @transform_13, window_bounds = array<i64: 1, 8, 16, 128>}]} {
    %c8_i32 = arith.constant 8 : i32
    %0 = arith.muli %arg1, %c8_i32 : i32
    %1 = tpu.assume_multiple %0, 8 : i32
    %c0_i32 = arith.constant 0 : i32
    %c0_i32_0 = arith.constant 0 : i32
    %c0_i32_1 = arith.constant 0 : i32
    %2 = tpu.memref_slice %arg2[%arg0, %1, %c0_i32_0, %c0_i32_1] : memref<2x18x16x128xbf16, #tpu.memory_space<any>> -> memref<1x10x16x128xbf16, #tpu.memory_space<any>>
    %3 = tpu.memref_squeeze %2 : memref<1x10x16x128xbf16, #tpu.memory_space<any>> -> memref<10x16x128xbf16, #tpu.memory_space<any>>
    %4 = tpu.memref_slice %arg19[%c0_i32] : memref<1x!tpu.dma_semaphore, #tpu.memory_space<semaphore_mem>> -> memref<1x!tpu.dma_semaphore, #tpu.memory_space<semaphore_mem>>
    %5 = tpu.memref_squeeze %4 : memref<1x!tpu.dma_semaphore, #tpu.memory_space<semaphore_mem>> -> memref<!tpu.dma_semaphore, #tpu.memory_space<semaphore_mem>>
    tpu.enqueue_dma source(%3 : memref<10x16x128xbf16, #tpu.memory_space<any>>) target(%arg16 : memref<10x16x128xbf16, #tpu.memory_space<vmem>>) target_semaphore(%5 : memref<!tpu.dma_semaphore, #tpu.memory_space<semaphore_mem>>)
    %cst = arith.constant 0.000000e+00 : bf16
    %6 = vector.broadcast %cst : bf16 to vector<1x16x384xbf16>
    %c0 = arith.constant 0 : index
    %c0_2 = arith.constant 0 : index
    %c0_3 = arith.constant 0 : index
    %7 = vector.load %arg17[%c0, %c0_2, %c0_3] : memref<12x16x384xbf16, #tpu.memory_space<vmem>>, vector<1x16x384xbf16>
    tpu.vector_store %arg17[%c0, %c0_2, %c0_3], %6 {strides = array<i32>} : memref<12x16x384xbf16, #tpu.memory_space<vmem>>, vector<1x16x384xbf16>,
    %cst_4 = arith.constant 0.000000e+00 : bf16
    %8 = vector.broadcast %cst_4 : bf16 to vector<1x16x384xbf16>
    %c11 = arith.constant 11 : index
    %c0_5 = arith.constant 0 : index
    %c0_6 = arith.constant 0 : index
    %9 = vector.load %arg17[%c11, %c0_5, %c0_6] : memref<12x16x384xbf16, #tpu.memory_space<vmem>>, vector<1x16x384xbf16>
    tpu.vector_store %arg17[%c11, %c0_5, %c0_6], %8 {strides = array<i32>} : memref<12x16x384xbf16, #tpu.memory_space<vmem>>, vector<1x16x384xbf16>,
    %cst_7 = arith.constant 0.000000e+00 : bf16
    %10 = vector.broadcast %cst_7 : bf16 to vector<12x1x128xbf16>
    %c0_8 = arith.constant 0 : index
    %c0_9 = arith.constant 0 : index
    %c0_10 = arith.constant 0 : index
    %11 = vector.load %arg17[%c0_8, %c0_9, %c0_10] : memref<12x16x384xbf16, #tpu.memory_space<vmem>>, vector<12x1x128xbf16>
    tpu.vector_store %arg17[%c0_8, %c0_9, %c0_10], %10 {strides = array<i32>} : memref<12x16x384xbf16, #tpu.memory_space<vmem>>, vector<12x1x128xbf16>,
    %cst_11 = arith.constant 0.000000e+00 : bf16
    %12 = vector.broadcast %cst_11 : bf16 to vector<12x1x128xbf16>
    %c0_12 = arith.constant 0 : index
    %c15 = arith.constant 15 : index
    %c256 = arith.constant 256 : index
    %13 = vector.load %arg17[%c0_12, %c15, %c256] : memref<12x16x384xbf16, #tpu.memory_space<vmem>>, vector<12x1x128xbf16>
    tpu.vector_store %arg17[%c0_12, %c15, %c256], %12 {strides = array<i32>} : memref<12x16x384xbf16, #tpu.memory_space<vmem>>, vector<12x1x128xbf16>,
    %14 = tpu.iota {dimensions = array<i32: 0>} : vector<10x1x1xi32>
    %15 = vector.broadcast %1 : i32 to vector<10x1x1xi32>
    %16 = arith.addi %14, %15 : vector<10x1x1xi32>
    %c1_i32 = arith.constant 1 : i32
    %17 = vector.broadcast %c1_i32 : i32 to vector<10x1x1xi32>
    %18 = arith.cmpi sge, %16, %17 : vector<10x1x1xi32>
    %c17_i32 = arith.constant 17 : i32
    %19 = vector.broadcast %c17_i32 : i32 to vector<10x1x1xi32>
    %20 = arith.cmpi slt, %16, %19 : vector<10x1x1xi32>
    %21 = arith.andi %18, %20 : vector<10x1x1xi1>
    %c0_i32_13 = arith.constant 0 : i32
    %c0_i32_14 = arith.constant 0 : i32
    %c0_i32_15 = arith.constant 0 : i32
    %22 = tpu.memref_slice %arg2[%arg0, %1, %c0_i32_14, %c0_i32_15] : memref<2x18x16x128xbf16, #tpu.memory_space<any>> -> memref<1x10x16x128xbf16, #tpu.memory_space<any>>
    %23 = tpu.memref_squeeze %22 : memref<1x10x16x128xbf16, #tpu.memory_space<any>> -> memref<10x16x128xbf16, #tpu.memory_space<any>>
    %24 = tpu.memref_slice %arg19[%c0_i32_13] : memref<1x!tpu.dma_semaphore, #tpu.memory_space<semaphore_mem>> -> memref<1x!tpu.dma_semaphore, #tpu.memory_space<semaphore_mem>>
    %25 = tpu.memref_squeeze %24 : memref<1x!tpu.dma_semaphore, #tpu.memory_space<semaphore_mem>> -> memref<!tpu.dma_semaphore, #tpu.memory_space<semaphore_mem>>
    tpu.wait_dma2 semaphore(%25 : memref<!tpu.dma_semaphore, #tpu.memory_space<semaphore_mem>>) src(%23 : memref<10x16x128xbf16, #tpu.memory_space<any>>) dst(%arg16 : memref<10x16x128xbf16, #tpu.memory_space<vmem>>)
    %c0_16 = arith.constant 0 : index
    %c0_17 = arith.constant 0 : index
    %c0_18 = arith.constant 0 : index
    %26 = vector.load %arg16[%c0_16, %c0_17, %c0_18] : memref<10x16x128xbf16, #tpu.memory_space<vmem>>, vector<10x16x128xbf16>
    %27 = vector.shape_cast %26 : vector<10x16x128xbf16> to vector<160x128xbf16>
    %c0_19 = arith.constant 0 : index
    %c0_20 = arith.constant 0 : index
    %28 = vector.load %arg3[%c0_19, %c0_20] : memref<128x128xbf16, #tpu.memory_space<vmem>>, vector<128x128xbf16>
    %cst_21 = arith.constant dense<0.000000e+00> : vector<160x128xf32>
    %29 = tpu.matmul %27, %28, %cst_21 {dimension_numbers = #tpu.dot_dimension_numbers<[1], [0], [0], [1], [0, 0, 1, 1], [], []>} : vector<160x128xbf16>, vector<128x128xbf16>, vector<160x128xf32> -> vector<160x128xf32>
    %c0_22 = arith.constant 0 : index
    %c0_23 = arith.constant 0 : index
    %30 = vector.load %arg9[%c0_22, %c0_23] : memref<1x128xf32, #tpu.memory_space<vmem>>, vector<1x128xf32>
    %31 = vector.broadcast %30 : vector<1x128xf32> to vector<160x128xf32>
    %32 = arith.addf %29, %31 : vector<160x128xf32>
    %cst_24 = arith.constant 0.000000e+00 : f32
    %33 = vector.broadcast %cst_24 : f32 to vector<160x128xf32>
    %34 = arith.subf %33, %32 : vector<160x128xf32>
    %35 = math.exp %34 : vector<160x128xf32>
    %cst_25 = arith.constant 1.000000e+00 : f32
    %36 = vector.broadcast %cst_25 : f32 to vector<160x128xf32>
    %37 = arith.addf %36, %35 : vector<160x128xf32>
    %38 = tpu.reciprocal %37 {approx = true} : vector<160x128xf32> -> vector<160x128xf32>
    %39 = arith.mulf %32, %38 : vector<160x128xf32>
    %40 = arith.truncf %39 : vector<160x128xf32> to vector<160x128xbf16>
    %c0_26 = arith.constant 0 : index
    %c0_27 = arith.constant 0 : index
    %c0_28 = arith.constant 0 : index
    %41 = vector.load %arg4[%c0_26, %c0_27, %c0_28] : memref<1x128x128xbf16, #tpu.memory_space<vmem>>, vector<1x128x128xbf16>
    %42 = vector.shape_cast %41 : vector<1x128x128xbf16> to vector<128x128xbf16>
    %cst_29 = arith.constant dense<0.000000e+00> : vector<160x128xf32>
    %43 = tpu.matmul %40, %42, %cst_29 {dimension_numbers = #tpu.dot_dimension_numbers<[1], [0], [0], [1], [0, 0, 1, 1], [], []>} : vector<160x128xbf16>, vector<128x128xbf16>, vector<160x128xf32> -> vector<160x128xf32>
    %c0_30 = arith.constant 0 : index
    %c0_31 = arith.constant 0 : index
    %c0_32 = arith.constant 0 : index
    %44 = vector.load %arg10[%c0_30, %c0_31, %c0_32] : memref<1x1x128xf32, #tpu.memory_space<vmem>>, vector<1x1x128xf32>
    %45 = vector.shape_cast %44 : vector<1x1x128xf32> to vector<1x128xf32>
    %46 = vector.broadcast %45 : vector<1x128xf32> to vector<160x128xf32>
    %47 = arith.addf %43, %46 : vector<160x128xf32>
    %cst_33 = arith.constant 0.000000e+00 : f32
    %48 = vector.broadcast %cst_33 : f32 to vector<160x128xf32>
    %49 = arith.subf %48, %47 : vector<160x128xf32>
    %50 = math.exp %49 : vector<160x128xf32>
    %cst_34 = arith.constant 1.000000e+00 : f32
    %51 = vector.broadcast %cst_34 : f32 to vector<160x128xf32>
    %52 = arith.addf %51, %50 : vector<160x128xf32>
    %53 = tpu.reciprocal %52 {approx = true} : vector<160x128xf32> -> vector<160x128xf32>
    %54 = arith.mulf %47, %53 : vector<160x128xf32>
    %55 = vector.shape_cast %54 : vector<160x128xf32> to vector<10x16x128xf32>
    %cst_35 = arith.constant 0.000000e+00 : f32
    %56 = vector.shape_cast %21 : vector<10x1x1xi1> to vector<10x1x1xi1>
    %57 = vector.broadcast %56 : vector<10x1x1xi1> to vector<10x16x128xi1>
    %58 = vector.broadcast %cst_35 : f32 to vector<10x16x128xf32>
    %59 = arith.select %57, %55, %58 : vector<10x16x128xi1>, vector<10x16x128xf32>
    %60 = arith.truncf %59 : vector<10x16x128xf32> to vector<10x16x128xbf16>
    %61 = vector.extract_strided_slice %60 {offsets = [0, 0, 0], sizes = [10, 15, 128], strides = [1, 1, 1]} : vector<10x16x128xbf16> to vector<10x15x128xbf16>
    %c1 = arith.constant 1 : index
    %c1_36 = arith.constant 1 : index
    %c0_37 = arith.constant 0 : index
    %62 = vector.load %arg17[%c1, %c1_36, %c0_37] : memref<12x16x384xbf16, #tpu.memory_space<vmem>>, vector<10x15x128xbf16>
    tpu.vector_store %arg17[%c1, %c1_36, %c0_37], %61 {strides = array<i32>} : memref<12x16x384xbf16, #tpu.memory_space<vmem>>, vector<10x15x128xbf16>,
    %c1_38 = arith.constant 1 : index
    %c0_39 = arith.constant 0 : index
    %c128 = arith.constant 128 : index
    %63 = vector.load %arg17[%c1_38, %c0_39, %c128] : memref<12x16x384xbf16, #tpu.memory_space<vmem>>, vector<10x16x128xbf16>
    tpu.vector_store %arg17[%c1_38, %c0_39, %c128], %60 {strides = array<i32>} : memref<12x16x384xbf16, #tpu.memory_space<vmem>>, vector<10x16x128xbf16>,
    %64 = vector.extract_strided_slice %60 {offsets = [0, 1, 0], sizes = [10, 15, 128], strides = [1, 1, 1]} : vector<10x16x128xbf16> to vector<10x15x128xbf16>
    %c1_40 = arith.constant 1 : index
    %c0_41 = arith.constant 0 : index
    %c256_42 = arith.constant 256 : index
    %65 = vector.load %arg17[%c1_40, %c0_41, %c256_42] : memref<12x16x384xbf16, #tpu.memory_space<vmem>>, vector<10x15x128xbf16>
    tpu.vector_store %arg17[%c1_40, %c0_41, %c256_42], %64 {strides = array<i32>} : memref<12x16x384xbf16, #tpu.memory_space<vmem>>, vector<10x15x128xbf16>,
    %c0_43 = arith.constant 0 : index
    %c0_44 = arith.constant 0 : index
    %c0_45 = arith.constant 0 : index
    %c0_46 = arith.constant 0 : index
    %66 = vector.load %arg5[%c0_43, %c0_44, %c0_45, %c0_46] : memref<1x3x384x128xbf16, #tpu.memory_space<vmem>>, vector<1x3x384x128xbf16>
    %67 = vector.shape_cast %66 : vector<1x3x384x128xbf16> to vector<3x384x128xbf16>
    %c0_47 = arith.constant 0 : index
    %c0_48 = arith.constant 0 : index
    %c0_49 = arith.constant 0 : index
    %68 = vector.load %arg17[%c0_47, %c0_48, %c0_49] : memref<12x16x384xbf16, #tpu.memory_space<vmem>>, vector<10x16x384xbf16>
    %69 = vector.shape_cast %68 : vector<10x16x384xbf16> to vector<160x384xbf16>
    %70 = vector.extract_strided_slice %67 {offsets = [0, 0, 0], sizes = [1, 384, 128], strides = [1, 1, 1]} : vector<3x384x128xbf16> to vector<1x384x128xbf16>
    %71 = vector.shape_cast %70 : vector<1x384x128xbf16> to vector<384x128xbf16>
    %cst_50 = arith.constant dense<0.000000e+00> : vector<160x128xf32>
    %72 = tpu.matmul %69, %71, %cst_50 {dimension_numbers = #tpu.dot_dimension_numbers<[1], [0], [0], [1], [0, 0, 1, 1], [], []>} : vector<160x384xbf16>, vector<384x128xbf16>, vector<160x128xf32> -> vector<160x128xf32>
    %c1_51 = arith.constant 1 : index
    %c0_52 = arith.constant 0 : index
    %c0_53 = arith.constant 0 : index
    %73 = vector.load %arg17[%c1_51, %c0_52, %c0_53] : memref<12x16x384xbf16, #tpu.memory_space<vmem>>, vector<10x16x384xbf16>
    %74 = vector.shape_cast %73 : vector<10x16x384xbf16> to vector<160x384xbf16>
    %75 = vector.extract_strided_slice %67 {offsets = [1, 0, 0], sizes = [1, 384, 128], strides = [1, 1, 1]} : vector<3x384x128xbf16> to vector<1x384x128xbf16>
    %76 = vector.shape_cast %75 : vector<1x384x128xbf16> to vector<384x128xbf16>
    %cst_54 = arith.constant dense<0.000000e+00> : vector<160x128xf32>
    %77 = tpu.matmul %74, %76, %cst_54 {dimension_numbers = #tpu.dot_dimension_numbers<[1], [0], [0], [1], [0, 0, 1, 1], [], []>} : vector<160x384xbf16>, vector<384x128xbf16>, vector<160x128xf32> -> vector<160x128xf32>
    %78 = arith.addf %72, %77 : vector<160x128xf32>
    %c2 = arith.constant 2 : index
    %c0_55 = arith.constant 0 : index
    %c0_56 = arith.constant 0 : index
    %79 = vector.load %arg17[%c2, %c0_55, %c0_56] : memref<12x16x384xbf16, #tpu.memory_space<vmem>>, vector<10x16x384xbf16>
    %80 = vector.shape_cast %79 : vector<10x16x384xbf16> to vector<160x384xbf16>
    %81 = vector.extract_strided_slice %67 {offsets = [2, 0, 0], sizes = [1, 384, 128], strides = [1, 1, 1]} : vector<3x384x128xbf16> to vector<1x384x128xbf16>
    %82 = vector.shape_cast %81 : vector<1x384x128xbf16> to vector<384x128xbf16>
    %cst_57 = arith.constant dense<0.000000e+00> : vector<160x128xf32>
    %83 = tpu.matmul %80, %82, %cst_57 {dimension_numbers = #tpu.dot_dimension_numbers<[1], [0], [0], [1], [0, 0, 1, 1], [], []>} : vector<160x384xbf16>, vector<384x128xbf16>, vector<160x128xf32> -> vector<160x128xf32>
    %84 = arith.addf %78, %83 : vector<160x128xf32>
    %c0_58 = arith.constant 0 : index
    %c0_59 = arith.constant 0 : index
    %c0_60 = arith.constant 0 : index
    %85 = vector.load %arg11[%c0_58, %c0_59, %c0_60] : memref<1x1x128xf32, #tpu.memory_space<vmem>>, vector<1x1x128xf32>
    %86 = vector.shape_cast %85 : vector<1x1x128xf32> to vector<1x128xf32>
    %87 = vector.broadcast %86 : vector<1x128xf32> to vector<160x128xf32>
    %88 = arith.addf %84, %87 : vector<160x128xf32>
    %cst_61 = arith.constant 0.000000e+00 : f32
    %89 = vector.broadcast %cst_61 : f32 to vector<160x128xf32>
    %90 = arith.subf %89, %88 : vector<160x128xf32>
    %91 = math.exp %90 : vector<160x128xf32>
    %cst_62 = arith.constant 1.000000e+00 : f32
    %92 = vector.broadcast %cst_62 : f32 to vector<160x128xf32>
    %93 = arith.addf %92, %91 : vector<160x128xf32>
    %94 = tpu.reciprocal %93 {approx = true} : vector<160x128xf32> -> vector<160x128xf32>
    %95 = arith.mulf %88, %94 : vector<160x128xf32>
    %96 = arith.addf %39, %95 : vector<160x128xf32>
    %97 = vector.shape_cast %96 : vector<160x128xf32> to vector<10x16x128xf32>
    %98 = vector.extract_strided_slice %97 {offsets = [1, 0, 0], sizes = [8, 16, 128], strides = [1, 1, 1]} : vector<10x16x128xf32> to vector<8x16x128xf32>
    %99 = vector.shape_cast %98 : vector<8x16x128xf32> to vector<128x128xf32>
    %100 = arith.truncf %99 : vector<128x128xf32> to vector<128x128xbf16>
    %c0_63 = arith.constant 0 : index
    %c0_64 = arith.constant 0 : index
    %101 = vector.load %arg6[%c0_63, %c0_64] : memref<128x128xbf16, #tpu.memory_space<vmem>>, vector<128x128xbf16>
    %cst_65 = arith.constant dense<0.000000e+00> : vector<128x128xf32>
    %102 = tpu.matmul %100, %101, %cst_65 {dimension_numbers = #tpu.dot_dimension_numbers<[1], [0], [0], [1], [0, 0, 1, 1], [], []>} : vector<128x128xbf16>, vector<128x128xbf16>, vector<128x128xf32> -> vector<128x128xf32>
    %c0_66 = arith.constant 0 : index
    %c0_67 = arith.constant 0 : index
    %103 = vector.load %arg12[%c0_66, %c0_67] : memref<1x128xf32, #tpu.memory_space<vmem>>, vector<1x128xf32>
    %104 = vector.broadcast %103 : vector<1x128xf32> to vector<128x128xf32>
    %105 = arith.addf %102, %104 : vector<128x128xf32>
    %cst_68 = arith.constant 0.000000e+00 : f32
    %106 = vector.broadcast %cst_68 : f32 to vector<128x128xf32>
    %107 = arith.subf %106, %105 : vector<128x128xf32>
    %108 = math.exp %107 : vector<128x128xf32>
    %cst_69 = arith.constant 1.000000e+00 : f32
    %109 = vector.broadcast %cst_69 : f32 to vector<128x128xf32>
    %110 = arith.addf %109, %108 : vector<128x128xf32>
    %111 = tpu.reciprocal %110 {approx = true} : vector<128x128xf32> -> vector<128x128xf32>
    %112 = arith.mulf %105, %111 : vector<128x128xf32>
    %c1_70 = arith.constant 1 : index
    %c0_71 = arith.constant 0 : index
    %c0_72 = arith.constant 0 : index
    %113 = vector.load %arg16[%c1_70, %c0_71, %c0_72] : memref<10x16x128xbf16, #tpu.memory_space<vmem>>, vector<8x16x128xbf16>
    %114 = vector.shape_cast %113 : vector<8x16x128xbf16> to vector<128x128xbf16>
    %c0_73 = arith.constant 0 : index
    %c0_74 = arith.constant 0 : index
    %115 = vector.load %arg7[%c0_73, %c0_74] : memref<128x128xbf16, #tpu.memory_space<vmem>>, vector<128x128xbf16>
    %cst_75 = arith.constant dense<0.000000e+00> : vector<128x128xf32>
    %116 = tpu.matmul %114, %115, %cst_75 {dimension_numbers = #tpu.dot_dimension_numbers<[1], [0], [0], [1], [0, 0, 1, 1], [], []>} : vector<128x128xbf16>, vector<128x128xbf16>, vector<128x128xf32> -> vector<128x128xf32>
    %c0_76 = arith.constant 0 : index
    %c0_77 = arith.constant 0 : index
    %117 = vector.load %arg13[%c0_76, %c0_77] : memref<1x128xf32, #tpu.memory_space<vmem>>, vector<1x128xf32>
    %118 = vector.broadcast %117 : vector<1x128xf32> to vector<128x128xf32>
    %119 = arith.addf %116, %118 : vector<128x128xf32>
    %cst_78 = arith.constant 0.000000e+00 : f32
    %120 = vector.broadcast %cst_78 : f32 to vector<128x128xf32>
    %121 = arith.subf %120, %119 : vector<128x128xf32>
    %122 = math.exp %121 : vector<128x128xf32>
    %cst_79 = arith.constant 1.000000e+00 : f32
    %123 = vector.broadcast %cst_79 : f32 to vector<128x128xf32>
    %124 = arith.addf %123, %122 : vector<128x128xf32>
    %125 = tpu.reciprocal %124 {approx = true} : vector<128x128xf32> -> vector<128x128xf32>
    %126 = arith.mulf %119, %125 : vector<128x128xf32>
    %127 = arith.truncf %112 : vector<128x128xf32> to vector<128x128xbf16>
    %c0_80 = arith.constant 0 : index
    %c0_81 = arith.constant 0 : index
    %128 = vector.load %arg18[%c0_80, %c0_81] : memref<128x256xbf16, #tpu.memory_space<vmem>>, vector<128x128xbf16>
    tpu.vector_store %arg18[%c0_80, %c0_81], %127 {strides = array<i32>} : memref<128x256xbf16, #tpu.memory_space<vmem>>, vector<128x128xbf16>,
    %129 = arith.truncf %126 : vector<128x128xf32> to vector<128x128xbf16>
    %c0_82 = arith.constant 0 : index
    %c128_83 = arith.constant 128 : index
    %130 = vector.load %arg18[%c0_82, %c128_83] : memref<128x256xbf16, #tpu.memory_space<vmem>>, vector<128x128xbf16>
    tpu.vector_store %arg18[%c0_82, %c128_83], %129 {strides = array<i32>} : memref<128x256xbf16, #tpu.memory_space<vmem>>, vector<128x128xbf16>,
    %c0_84 = arith.constant 0 : index
    %c0_85 = arith.constant 0 : index
    %131 = vector.load %arg18[%c0_84, %c0_85] : memref<128x256xbf16, #tpu.memory_space<vmem>>, vector<128x256xbf16>
    %c0_86 = arith.constant 0 : index
    %c0_87 = arith.constant 0 : index
    %132 = vector.load %arg8[%c0_86, %c0_87] : memref<256x128xbf16, #tpu.memory_space<vmem>>, vector<256x128xbf16>
    %cst_88 = arith.constant dense<0.000000e+00> : vector<128x128xf32>
    %133 = tpu.matmul %131, %132, %cst_88 {dimension_numbers = #tpu.dot_dimension_numbers<[1], [0], [0], [1], [0, 0, 1, 1], [], []>} : vector<128x256xbf16>, vector<256x128xbf16>, vector<128x128xf32> -> vector<128x128xf32>
    %c0_89 = arith.constant 0 : index
    %c0_90 = arith.constant 0 : index
    %134 = vector.load %arg14[%c0_89, %c0_90] : memref<1x128xf32, #tpu.memory_space<vmem>>, vector<1x128xf32>
    %135 = vector.broadcast %134 : vector<1x128xf32> to vector<128x128xf32>
    %136 = arith.addf %133, %135 : vector<128x128xf32>
    %cst_91 = arith.constant 0.000000e+00 : f32
    %137 = vector.broadcast %cst_91 : f32 to vector<128x128xf32>
    %138 = arith.subf %137, %136 : vector<128x128xf32>
    %139 = math.exp %138 : vector<128x128xf32>
    %cst_92 = arith.constant 1.000000e+00 : f32
    %140 = vector.broadcast %cst_92 : f32 to vector<128x128xf32>
    %141 = arith.addf %140, %139 : vector<128x128xf32>
    %142 = tpu.reciprocal %141 {approx = true} : vector<128x128xf32> -> vector<128x128xf32>
    %143 = arith.mulf %136, %142 : vector<128x128xf32>
    %144 = vector.shape_cast %143 : vector<128x128xf32> to vector<8x16x128xf32>
    %145 = arith.truncf %144 : vector<8x16x128xf32> to vector<8x16x128xbf16>
    %c0_93 = arith.constant 0 : index
    %c0_94 = arith.constant 0 : index
    %c0_95 = arith.constant 0 : index
    %c0_96 = arith.constant 0 : index
    %146 = vector.load %arg15[%c0_93, %c0_94, %c0_95, %c0_96] : memref<1x8x16x128xbf16, #tpu.memory_space<vmem>>, vector<1x8x16x128xbf16>
    %147 = vector.shape_cast %146 : vector<1x8x16x128xbf16> to vector<8x16x128xbf16>
    %148 = vector.shape_cast %145 : vector<8x16x128xbf16> to vector<1x8x16x128xbf16>
    tpu.vector_store %arg15[%c0_93, %c0_94, %c0_95, %c0_96], %148 {strides = array<i32>} : memref<1x8x16x128xbf16, #tpu.memory_space<vmem>>, vector<1x8x16x128xbf16>,
    return
  }
  func.func @transform_1(%arg0: i32, %arg1: i32) -> (i32, i32) {
    %c0_i32 = arith.constant 0 : i32
    %c0_i32_0 = arith.constant 0 : i32
    %c0_i32_1 = arith.constant 0 : i32
    return %c0_i32, %c0_i32_0 : i32, i32
  }
  func.func @transform_2(%arg0: i32, %arg1: i32) -> (i32, i32, i32) {
    %c0_i32 = arith.constant 0 : i32
    %c0_i32_0 = arith.constant 0 : i32
    %c0_i32_1 = arith.constant 0 : i32
    %c0_i32_2 = arith.constant 0 : i32
    return %c0_i32, %c0_i32_0, %c0_i32_1 : i32, i32, i32
  }
  func.func @transform_3(%arg0: i32, %arg1: i32) -> (i32, i32, i32, i32) {
    %c0_i32 = arith.constant 0 : i32
    %c0_i32_0 = arith.constant 0 : i32
    %c0_i32_1 = arith.constant 0 : i32
    %c0_i32_2 = arith.constant 0 : i32
    %c0_i32_3 = arith.constant 0 : i32
    return %c0_i32, %c0_i32_0, %c0_i32_1, %c0_i32_2 : i32, i32, i32, i32
  }
  func.func @transform_4(%arg0: i32, %arg1: i32) -> (i32, i32) {
    %c0_i32 = arith.constant 0 : i32
    %c0_i32_0 = arith.constant 0 : i32
    %c0_i32_1 = arith.constant 0 : i32
    return %c0_i32, %c0_i32_0 : i32, i32
  }
  func.func @transform_5(%arg0: i32, %arg1: i32) -> (i32, i32) {
    %c0_i32 = arith.constant 0 : i32
    %c0_i32_0 = arith.constant 0 : i32
    %c0_i32_1 = arith.constant 0 : i32
    return %c0_i32, %c0_i32_0 : i32, i32
  }
  func.func @transform_6(%arg0: i32, %arg1: i32) -> (i32, i32) {
    %c0_i32 = arith.constant 0 : i32
    %c0_i32_0 = arith.constant 0 : i32
    %c0_i32_1 = arith.constant 0 : i32
    return %c0_i32, %c0_i32_0 : i32, i32
  }
  func.func @transform_7(%arg0: i32, %arg1: i32) -> (i32, i32) {
    %c0_i32 = arith.constant 0 : i32
    %c0_i32_0 = arith.constant 0 : i32
    %c0_i32_1 = arith.constant 0 : i32
    return %c0_i32, %c0_i32_0 : i32, i32
  }
  func.func @transform_8(%arg0: i32, %arg1: i32) -> (i32, i32, i32) {
    %c0_i32 = arith.constant 0 : i32
    %c0_i32_0 = arith.constant 0 : i32
    %c0_i32_1 = arith.constant 0 : i32
    %c0_i32_2 = arith.constant 0 : i32
    return %c0_i32, %c0_i32_0, %c0_i32_1 : i32, i32, i32
  }
  func.func @transform_9(%arg0: i32, %arg1: i32) -> (i32, i32, i32) {
    %c0_i32 = arith.constant 0 : i32
    %c0_i32_0 = arith.constant 0 : i32
    %c0_i32_1 = arith.constant 0 : i32
    %c0_i32_2 = arith.constant 0 : i32
    return %c0_i32, %c0_i32_0, %c0_i32_1 : i32, i32, i32
  }
  func.func @transform_10(%arg0: i32, %arg1: i32) -> (i32, i32) {
    %c0_i32 = arith.constant 0 : i32
    %c0_i32_0 = arith.constant 0 : i32
    %c0_i32_1 = arith.constant 0 : i32
    return %c0_i32, %c0_i32_0 : i32, i32
  }
  func.func @transform_11(%arg0: i32, %arg1: i32) -> (i32, i32) {
    %c0_i32 = arith.constant 0 : i32
    %c0_i32_0 = arith.constant 0 : i32
    %c0_i32_1 = arith.constant 0 : i32
    return %c0_i32, %c0_i32_0 : i32, i32
  }
  func.func @transform_12(%arg0: i32, %arg1: i32) -> (i32, i32) {
    %c0_i32 = arith.constant 0 : i32
    %c0_i32_0 = arith.constant 0 : i32
    %c0_i32_1 = arith.constant 0 : i32
    return %c0_i32, %c0_i32_0 : i32, i32
  }
  func.func @transform_13(%arg0: i32, %arg1: i32) -> (i32, i32, i32, i32) {
    %c0_i32 = arith.constant 0 : i32
    %c0_i32_0 = arith.constant 0 : i32
    %c0_i32_1 = arith.constant 0 : i32
    return %arg0, %arg1, %c0_i32, %c0_i32_0 : i32, i32, i32, i32
  }
}

</mosaic_0001>

<llo_original>
// kernel: tpu_custom_call.1
$region0: #{tpu_custom_call.1}
  #allocation0 [shape = 'u32[]', space=smem, size = 0x4, offset = 0x4, fixed_abs, tag = 'smem constant byte address 0x4 - core index']
  #allocation1 [shape = 'u32[144,128]{1,0:T(1,128)}', space=vmem, size = 0x12000, scoped, tag = 'internal scratch']
  #allocation2 [shape = 'bf16[10,16,128]{2,1,0:T(16,128)(2,1)}', space=vmem, size = 0xa000, scoped, tag = 'scratch operand']
  #allocation3 [shape = 'bf16[12,16,384]{2,1,0:T(16,128)(2,1)}', space=vmem, size = 0x24000, scoped, tag = 'scratch operand']
  #allocation4 [shape = 'bf16[128,256]{1,0:T(16,128)(2,1)}', space=vmem, size = 0x10000, scoped, tag = 'scratch operand']
  #allocation5 [shape = 's32[1]{0}', space=sflag, size = 0x4, scoped, tag = 'scratch operand']
  #allocation18 [shape = 's32[]', space=sflag, size = 0x4, offset = 0, fixed_abs, tag = 'sflag constant byte address 0x0 - dummy sync flag']
  #allocation19 [shape = 's32[]', space=sflag, size = 0x4, offset = 0, fixed_abs, tag = 'sflag constant byte address 0x0 - dummy sync flag']
  #allocation20 [shape = 'u32[]', space=smem, size = 0x4, offset = 0x44, fixed_abs, tag = 'smem constant byte address 0x44 - assertion arg 0']
  #allocation21 [shape = 'u32[]', space=smem, size = 0x4, offset = 0x48, fixed_abs, tag = 'smem constant byte address 0x48 - assertion arg 1']
  %s0 = inlined_call_operand.hbm [shape: bf16[2,18,16,128], index: 0, kind: input, shape index: {}]
  %s1 = inlined_call_operand.hbm [shape: bf16[128,128], index: 1, kind: input, shape index: {}]
  %s2 = inlined_call_operand.hbm [shape: bf16[1,128,128], index: 2, kind: input, shape index: {}]
  %s3 = inlined_call_operand.hbm [shape: bf16[1,3,384,128], index: 3, kind: input, shape index: {}]
  %s4 = inlined_call_operand.hbm [shape: bf16[128,128], index: 4, kind: input, shape index: {}]
  %s5 = inlined_call_operand.hbm [shape: bf16[128,128], index: 5, kind: input, shape index: {}]
  %s6 = inlined_call_operand.hbm [shape: bf16[256,128], index: 6, kind: input, shape index: {}]
  %s7 = inlined_call_operand.vmem [shape: f32[1,128], index: 7, kind: input, shape index: {}]
  %s8 = inlined_call_operand.vmem [shape: f32[1,1,128], index: 8, kind: input, shape index: {}]
  %s9 = inlined_call_operand.vmem [shape: f32[1,1,128], index: 9, kind: input, shape index: {}]
  %s10 = inlined_call_operand.vmem [shape: f32[1,128], index: 10, kind: input, shape index: {}]
  %s11 = inlined_call_operand.vmem [shape: f32[1,128], index: 11, kind: input, shape index: {}]
  %s12 = inlined_call_operand.vmem [shape: f32[1,128], index: 12, kind: input, shape index: {}]
  %s13 = inlined_call_operand.hbm [shape: bf16[2,16,16,128], index: 13, kind: output, shape index: {}]
  %s14 = sld [smem:[#allocation0]]
  $region109: #{tpu_custom_call.1} parent=0
    _
  %s16 = ssub.s32 1, %s14
  %s17 = scalar_select 0, %s16, %s14
  $region1: #{tpu_custom_call.1} parent=0
    #allocation6 [shape = 'u8[32768]{0}', space=vmem, size = 0x8000, scoped, tag = 'input window, operand 1, single buffered']
    #allocation7 [shape = 's32[2]{0}', space=sflag, size = 0x8, scoped, tag = 'scoped memory for tpu_custom_call.1']
    #allocation8 [shape = 's32[2]{0}', space=sflag, size = 0x8, scoped, tag = 'scoped memory for tpu_custom_call.1']
    #allocation9 [shape = 'u8[32768]{0}', space=vmem, size = 0x8000, scoped, tag = 'input window, operand 2, single buffered']
    #allocation10 [shape = 's32[1]{0}', space=sflag, size = 0x4, scoped, tag = 'scoped memory for tpu_custom_call.1']
    #allocation11 [shape = 'u8[294912]{0}', space=vmem, size = 0x48000, scoped, tag = 'input window, operand 3, single buffered']
    #allocation12 [shape = 'u8[32768]{0}', space=vmem, size = 0x8000, scoped, tag = 'input window, operand 4, single buffered']
    #allocation13 [shape = 's32[1]{0}', space=sflag, size = 0x4, scoped, tag = 'scoped memory for tpu_custom_call.1']
    #allocation14 [shape = 'u8[32768]{0}', space=vmem, size = 0x8000, scoped, tag = 'input window, operand 5, single buffered']
    #allocation15 [shape = 'u8[65536]{0}', space=vmem, size = 0x10000, scoped, tag = 'input window, operand 6, single buffered']
    #allocation16 [shape = 's32[1]{0}', space=sflag, size = 0x4, scoped, tag = 'scoped memory for tpu_custom_call.1']
    #allocation17 [shape = 'u8[65536]{0}', space=vmem, size = 0x10000, scoped, tag = 'output window, operand 0']
    %18 = vsyncpa [#allocation7], 0
    %19 = vsyncpa [#allocation10], 0
    %20 = vsyncpa [#allocation13], 0
    %21 = vsyncpa [#allocation16], 0
    %22 = vsyncpa [#allocation8], 0
    %s23 = scalar_lea.sflag [#allocation8], 1
    %24 = vsyncpa %s23, 0
    loop: start=0, step=1, limit=6
    $region2: #{tpu_custom_call.1} parent=1 // loop_pre_header
      _
    $region3: #{tpu_custom_call.1} parent=1 // loop_header
      %s26 = sphi 0, %s30
      %p27 = scmp.ge.s32.totalorder %s26, 6
      %s33 = sphi 0, %s45
      %s34 = sphi 0, %s41
      %s35 = sphi 0, %s33
      %s36 = sphi 0, %s34
      %s37 = sphi 0, %s35
      %s38 = sphi 0, %s36
      %s46 = sphi 0, %s46
      %s48 = sphi 0, %s46
      %s49 = sphi 0, %s48
      %s63 = sphi 0, %s49
      %s67 = sphi 0, %s67
      %s69 = sphi 0, %s67
      %s70 = sphi 0, %s69
      %s84 = sphi 0, %s70
      %s88 = sphi 0, %s88
      %s90 = sphi 0, %s88
      %s91 = sphi 0, %s90
      %s105 = sphi 0, %s91
      %s109 = sphi 0, %s109
      %s111 = sphi 0, %s109
      %s112 = sphi 0, %s111
      %s126 = sphi 0, %s112
      %s130 = sphi 0, %s130
      %s132 = sphi 0, %s130
      %s133 = sphi 0, %s132
      %s147 = sphi 0, %s133
      %s151 = sphi 0, %s151
      %s153 = sphi 0, %s151
      %s154 = sphi 0, %s153
      %s168 = sphi 0, %s154
      %s172 = sphi 0, %s172
      %s174 = sphi 0, %s172
      %s175 = sphi 0, %s174
      %s189 = sphi 0, %s175
      %s193 = sphi 0, %s193
      %s195 = sphi 0, %s193
      %s196 = sphi 0, %s195
      %s210 = sphi 0, %s196
      %s214 = sphi 0, %s214
      %s216 = sphi 0, %s214
      %s217 = sphi 0, %s216
      %s231 = sphi 0, %s217
      %s235 = sphi 0, %s235
      %s237 = sphi 0, %s235
      %s238 = sphi 0, %s237
      %s252 = sphi 0, %s238
      %s256 = sphi 0, %s256
      %s258 = sphi 0, %s256
      %s259 = sphi 0, %s258
      %s273 = sphi 0, %s259
      %s277 = sphi 0, %s277
      %s279 = sphi 0, %s277
      %s280 = sphi 0, %s279
      %s294 = sphi 0, %s280
      %s302 = sphi 0, %s304
      %s305 = sphi 0, %s302
      %s306 = sphi 0, %s305
      %s322 = sphi 0, %s306
    $region4: #{tpu_custom_call.1} parent=1 // loop_header_branch
      %29 = sbr.rel (%p27) target = $region8
    $region5: #{tpu_custom_call.1} parent=1 // loop_body
      %s31 = ssub.s32 %s26, 1
      %s32 = ssub.s32 %s26, 2
      %s39 = sadd.s32 1, %s34
      %p40 = scmp.ge.s32.totalorder %s39, 2
      %s41 = scalar_select %p40, 0, %s39
      %s42 = sadd.s32 1, %s33
      %s43 = scalar_select %p40, %s42, %s33
      %p44 = scmp.ge.s32.totalorder %s43, 2
      %s45 = scalar_select %p44, 0, %s43
      %s47 = sadd.s32 %s46, 1
      %p50 = scmp.eq.s32.totalorder %s26, 3
      %p51 = scmp.ne.s32.totalorder %s46, %s48
      %p52 = scmp.eq.s32.totalorder %s26, 0
      %p53 = por %p51, %p52
      %p54 = scmp.ne.s32.totalorder %s46, %s48
      %p55 = scmp.eq.s32.totalorder %s31, 3
      %p56 = por %p54, %p55
      %p57 = scmp.ne.s32.totalorder %s48, %s49
      %p58 = scmp.eq.s32.totalorder %s31, 0
      %p59 = por %p57, %p58
      %p60 = scmp.ne.s32.totalorder %s48, %s49
      %p61 = scmp.eq.s32.totalorder %s32, 3
      %p62 = por %p60, %p61
      %p64 = scmp.ne.s32.totalorder %s49, %s63
      %p65 = scmp.eq.s32.totalorder %s32, 0
      %p66 = por %p64, %p65
      %s68 = sadd.s32 %s67, 1
      %p71 = scmp.eq.s32.totalorder %s26, 3
      %p72 = scmp.ne.s32.totalorder %s67, %s69
      %p73 = scmp.eq.s32.totalorder %s26, 0
      %p74 = por %p72, %p73
      %p75 = scmp.ne.s32.totalorder %s67, %s69
      %p76 = scmp.eq.s32.totalorder %s31, 3
      %p77 = por %p75, %p76
      %p78 = scmp.ne.s32.totalorder %s69, %s70
      %p79 = scmp.eq.s32.totalorder %s31, 0
      %p80 = por %p78, %p79
      %p81 = scmp.ne.s32.totalorder %s69, %s70
      %p82 = scmp.eq.s32.totalorder %s32, 3
      %p83 = por %p81, %p82
      %p85 = scmp.ne.s32.totalorder %s70, %s84
      %p86 = scmp.eq.s32.totalorder %s32, 0
      %p87 = por %p85, %p86
      %s89 = sadd.s32 %s88, 1
      %p92 = scmp.eq.s32.totalorder %s26, 3
      %p93 = scmp.ne.s32.totalorder %s88, %s90
      %p94 = scmp.eq.s32.totalorder %s26, 0
      %p95 = por %p93, %p94
      %p96 = scmp.ne.s32.totalorder %s88, %s90
      %p97 = scmp.eq.s32.totalorder %s31, 3
      %p98 = por %p96, %p97
      %p99 = scmp.ne.s32.totalorder %s90, %s91
      %p100 = scmp.eq.s32.totalorder %s31, 0
      %p101 = por %p99, %p100
      %p102 = scmp.ne.s32.totalorder %s90, %s91
      %p103 = scmp.eq.s32.totalorder %s32, 3
      %p104 = por %p102, %p103
      %p106 = scmp.ne.s32.totalorder %s91, %s105
      %p107 = scmp.eq.s32.totalorder %s32, 0
      %p108 = por %p106, %p107
      %s110 = sadd.s32 %s109, 1
      %p113 = scmp.eq.s32.totalorder %s26, 3
      %p114 = scmp.ne.s32.totalorder %s109, %s111
      %p115 = scmp.eq.s32.totalorder %s26, 0
      %p116 = por %p114, %p115
      %p117 = scmp.ne.s32.totalorder %s109, %s111
      %p118 = scmp.eq.s32.totalorder %s31, 3
      %p119 = por %p117, %p118
      %p120 = scmp.ne.s32.totalorder %s111, %s112
      %p121 = scmp.eq.s32.totalorder %s31, 0
      %p122 = por %p120, %p121
      %p123 = scmp.ne.s32.totalorder %s111, %s112
      %p124 = scmp.eq.s32.totalorder %s32, 3
      %p125 = por %p123, %p124
      %p127 = scmp.ne.s32.totalorder %s112, %s126
      %p128 = scmp.eq.s32.totalorder %s32, 0
      %p129 = por %p127, %p128
      %s131 = sadd.s32 %s130, 1
      %p134 = scmp.eq.s32.totalorder %s26, 3
      %p135 = scmp.ne.s32.totalorder %s130, %s132
      %p136 = scmp.eq.s32.totalorder %s26, 0
      %p137 = por %p135, %p136
      %p138 = scmp.ne.s32.totalorder %s130, %s132
      %p139 = scmp.eq.s32.totalorder %s31, 3
      %p140 = por %p138, %p139
      %p141 = scmp.ne.s32.totalorder %s132, %s133
      %p142 = scmp.eq.s32.totalorder %s31, 0
      %p143 = por %p141, %p142
      %p144 = scmp.ne.s32.totalorder %s132, %s133
      %p145 = scmp.eq.s32.totalorder %s32, 3
      %p146 = por %p144, %p145
      %p148 = scmp.ne.s32.totalorder %s133, %s147
      %p149 = scmp.eq.s32.totalorder %s32, 0
      %p150 = por %p148, %p149
      %s152 = sadd.s32 %s151, 1
      %p155 = scmp.eq.s32.totalorder %s26, 3
      %p156 = scmp.ne.s32.totalorder %s151, %s153
      %p157 = scmp.eq.s32.totalorder %s26, 0
      %p158 = por %p156, %p157
      %p159 = scmp.ne.s32.totalorder %s151, %s153
      %p160 = scmp.eq.s32.totalorder %s31, 3
      %p161 = por %p159, %p160
      %p162 = scmp.ne.s32.totalorder %s153, %s154
      %p163 = scmp.eq.s32.totalorder %s31, 0
      %p164 = por %p162, %p163
      %p165 = scmp.ne.s32.totalorder %s153, %s154
      %p166 = scmp.eq.s32.totalorder %s32, 3
      %p167 = por %p165, %p166
      %p169 = scmp.ne.s32.totalorder %s154, %s168
      %p170 = scmp.eq.s32.totalorder %s32, 0
      %p171 = por %p169, %p170
      %s173 = sadd.s32 %s172, 1
      %p176 = scmp.eq.s32.totalorder %s26, 3
      %p177 = scmp.ne.s32.totalorder %s172, %s174
      %p178 = scmp.eq.s32.totalorder %s26, 0
      %p179 = por %p177, %p178
      %p180 = scmp.ne.s32.totalorder %s172, %s174
      %p181 = scmp.eq.s32.totalorder %s31, 3
      %p182 = por %p180, %p181
      %p183 = scmp.ne.s32.totalorder %s174, %s175
      %p184 = scmp.eq.s32.totalorder %s31, 0
      %p185 = por %p183, %p184
      %p186 = scmp.ne.s32.totalorder %s174, %s175
      %p187 = scmp.eq.s32.totalorder %s32, 3
      %p188 = por %p186, %p187
      %p190 = scmp.ne.s32.totalorder %s175, %s189
      %p191 = scmp.eq.s32.totalorder %s32, 0
      %p192 = por %p190, %p191
      %s194 = sadd.s32 %s193, 1
      %p197 = scmp.eq.s32.totalorder %s26, 3
      %p198 = scmp.ne.s32.totalorder %s193, %s195
      %p199 = scmp.eq.s32.totalorder %s26, 0
      %p200 = por %p198, %p199
      %p201 = scmp.ne.s32.totalorder %s193, %s195
      %p202 = scmp.eq.s32.totalorder %s31, 3
      %p203 = por %p201, %p202
      %p204 = scmp.ne.s32.totalorder %s195, %s196
      %p205 = scmp.eq.s32.totalorder %s31, 0
      %p206 = por %p204, %p205
      %p207 = scmp.ne.s32.totalorder %s195, %s196
      %p208 = scmp.eq.s32.totalorder %s32, 3
      %p209 = por %p207, %p208
      %p211 = scmp.ne.s32.totalorder %s196, %s210
      %p212 = scmp.eq.s32.totalorder %s32, 0
      %p213 = por %p211, %p212
      %s215 = sadd.s32 %s214, 1
      %p218 = scmp.eq.s32.totalorder %s26, 3
      %p219 = scmp.ne.s32.totalorder %s214, %s216
      %p220 = scmp.eq.s32.totalorder %s26, 0
      %p221 = por %p219, %p220
      %p222 = scmp.ne.s32.totalorder %s214, %s216
      %p223 = scmp.eq.s32.totalorder %s31, 3
      %p224 = por %p222, %p223
      %p225 = scmp.ne.s32.totalorder %s216, %s217
      %p226 = scmp.eq.s32.totalorder %s31, 0
      %p227 = por %p225, %p226
      %p228 = scmp.ne.s32.totalorder %s216, %s217
      %p229 = scmp.eq.s32.totalorder %s32, 3
      %p230 = por %p228, %p229
      %p232 = scmp.ne.s32.totalorder %s217, %s231
      %p233 = scmp.eq.s32.totalorder %s32, 0
      %p234 = por %p232, %p233
      %s236 = sadd.s32 %s235, 1
      %p239 = scmp.eq.s32.totalorder %s26, 3
      %p240 = scmp.ne.s32.totalorder %s235, %s237
      %p241 = scmp.eq.s32.totalorder %s26, 0
      %p242 = por %p240, %p241
      %p243 = scmp.ne.s32.totalorder %s235, %s237
      %p244 = scmp.eq.s32.totalorder %s31, 3
      %p245 = por %p243, %p244
      %p246 = scmp.ne.s32.totalorder %s237, %s238
      %p247 = scmp.eq.s32.totalorder %s31, 0
      %p248 = por %p246, %p247
      %p249 = scmp.ne.s32.totalorder %s237, %s238
      %p250 = scmp.eq.s32.totalorder %s32, 3
      %p251 = por %p249, %p250
      %p253 = scmp.ne.s32.totalorder %s238, %s252
      %p254 = scmp.eq.s32.totalorder %s32, 0
      %p255 = por %p253, %p254
      %s257 = sadd.s32 %s256, 1
      %p260 = scmp.eq.s32.totalorder %s26, 3
      %p261 = scmp.ne.s32.totalorder %s256, %s258
      %p262 = scmp.eq.s32.totalorder %s26, 0
      %p263 = por %p261, %p262
      %p264 = scmp.ne.s32.totalorder %s256, %s258
      %p265 = scmp.eq.s32.totalorder %s31, 3
      %p266 = por %p264, %p265
      %p267 = scmp.ne.s32.totalorder %s258, %s259
      %p268 = scmp.eq.s32.totalorder %s31, 0
      %p269 = por %p267, %p268
      %p270 = scmp.ne.s32.totalorder %s258, %s259
      %p271 = scmp.eq.s32.totalorder %s32, 3
      %p272 = por %p270, %p271
      %p274 = scmp.ne.s32.totalorder %s259, %s273
      %p275 = scmp.eq.s32.totalorder %s32, 0
      %p276 = por %p274, %p275
      %s278 = sadd.s32 %s277, 1
      %p281 = scmp.eq.s32.totalorder %s26, 3
      %p282 = scmp.ne.s32.totalorder %s277, %s279
      %p283 = scmp.eq.s32.totalorder %s26, 0
      %p284 = por %p282, %p283
      %p285 = scmp.ne.s32.totalorder %s277, %s279
      %p286 = scmp.eq.s32.totalorder %s31, 3
      %p287 = por %p285, %p286
      %p288 = scmp.ne.s32.totalorder %s279, %s280
      %p289 = scmp.eq.s32.totalorder %s31, 0
      %p290 = por %p288, %p289
      %p291 = scmp.ne.s32.totalorder %s279, %s280
      %p292 = scmp.eq.s32.totalorder %s32, 3
      %p293 = por %p291, %p292
      %p295 = scmp.ne.s32.totalorder %s280, %s294
      %p296 = scmp.eq.s32.totalorder %s32, 0
      %p297 = por %p295, %p296
      %s298 = ssub.s32 %s33, %s45
      %s299 = ssub.s32 %s34, %s41
      %s300 = sor.u32 %s298, %s299
      %p301 = scmp.eq.s32.totalorder %s300, 0
      %s303 = sadd.s32 %s302, 1
      %s304 = scalar_select %p301, %s302, %s303
      %p307 = pneg %p301
      %p308 = scmp.eq.s32.totalorder %s26, 3
      %p309 = por %p307, %p308
      %p310 = scmp.ne.s32.totalorder %s302, %s305
      %p311 = scmp.eq.s32.totalorder %s26, 0
      %p312 = por %p310, %p311
      %p313 = scmp.ne.s32.totalorder %s302, %s305
      %p314 = scmp.eq.s32.totalorder %s31, 3
      %p315 = por %p313, %p314
      %p316 = scmp.ne.s32.totalorder %s305, %s306
      %p317 = scmp.eq.s32.totalorder %s31, 0
      %p318 = por %p316, %p317
      %p319 = scmp.ne.s32.totalorder %s305, %s306
      %p320 = scmp.eq.s32.totalorder %s32, 3
      %p321 = por %p319, %p320
      %p323 = scmp.ne.s32.totalorder %s306, %s322
      %p324 = scmp.eq.s32.totalorder %s32, 0
      %p325 = por %p323, %p324
      %p326 = scmp.le.s32.totalorder 1, %s26
      %p327 = scmp.lt.s32.totalorder %s26, 5
      %p328 = pnand %p326, %p327
      %p329 = pneg %p328
      // Predicated region
      $region9: #{tpu_custom_call.1} parent=5 // pred_check
        _
      $region10: #{tpu_custom_call.1} parent=5 // pred_check_branch
        %331 = sbr.rel (%p328) target = $region12
      $region11: #{tpu_custom_call.1} parent=5 // pred_region
        %s332 = ssub.s32 %s26, 1
        // Predicated region
        $region13: #{tpu_custom_call.1} parent=11 // pred_check
          %p333 = pneg %p59
        $region14: #{tpu_custom_call.1} parent=11 // pred_check_branch
          %335 = sbr.rel (%p333) target = $region16
        $region15: #{tpu_custom_call.1} parent=11 // pred_region
          %s337 = ssub.s32 1024, 1024
          %338 = vsyncadd [#allocation7], %s337
          %s339 = sshll.u32 [#allocation6], 4
          %s340 = int_to_ptr.vmem [resolvable:$true] %s339
          %345 = dma.hbm_to_vmem [thread:$0]  %s1, 1024, %s340, [#allocation7], 64, 64, 4
        $region16: #{tpu_custom_call.1} parent=11 // pred_fallthru
          _
        // Predicated region
        $region17: #{tpu_custom_call.1} parent=11 // pred_check
          %p346 = pneg %p80
        $region18: #{tpu_custom_call.1} parent=11 // pred_check_branch
          %348 = sbr.rel (%p346) target = $region20
        $region19: #{tpu_custom_call.1} parent=11 // pred_region
          %s350 = ssub.s32 1024, 1024
          %351 = vsyncadd [#allocation10], %s350
          %s352 = sshll.u32 [#allocation9], 4
          %s353 = int_to_ptr.vmem [resolvable:$true] %s352
          %358 = dma.hbm_to_vmem [thread:$0]  %s2, 1024, %s353, [#allocation10], 64, 64, 4
        $region20: #{tpu_custom_call.1} parent=11 // pred_fallthru
          _
        // Predicated region
        $region21: #{tpu_custom_call.1} parent=11 // pred_check
          %p359 = pneg %p101
        $region22: #{tpu_custom_call.1} parent=11 // pred_check_branch
          %361 = sbr.rel (%p359) target = $region24
        $region23: #{tpu_custom_call.1} parent=11 // pred_region
          %s363 = ssub.s32 9216, 9216
          %364 = vsyncadd [#allocation10], %s363
          %s365 = sshll.u32 [#allocation11], 4
          %s366 = int_to_ptr.vmem [resolvable:$true] %s365
          %371 = dma.hbm_to_vmem [thread:$0]  %s3, 9216, %s366, [#allocation10], 64, 64, 4
        $region24: #{tpu_custom_call.1} parent=11 // pred_fallthru
          _
        // Predicated region
        $region25: #{tpu_custom_call.1} parent=11 // pred_check
          %p372 = pneg %p122
        $region26: #{tpu_custom_call.1} parent=11 // pred_check_branch
          %374 = sbr.rel (%p372) target = $region28
        $region27: #{tpu_custom_call.1} parent=11 // pred_region
          %s376 = ssub.s32 1024, 1024
          %377 = vsyncadd [#allocation13], %s376
          %s378 = sshll.u32 [#allocation12], 4
          %s379 = int_to_ptr.vmem [resolvable:$true] %s378
          %384 = dma.hbm_to_vmem [thread:$0]  %s4, 1024, %s379, [#allocation13], 64, 64, 4
        $region28: #{tpu_custom_call.1} parent=11 // pred_fallthru
          _
        // Predicated region
        $region29: #{tpu_custom_call.1} parent=11 // pred_check
          %p385 = pneg %p143
        $region30: #{tpu_custom_call.1} parent=11 // pred_check_branch
          %387 = sbr.rel (%p385) target = $region32
        $region31: #{tpu_custom_call.1} parent=11 // pred_region
          %s389 = ssub.s32 1024, 1024
          %390 = vsyncadd [#allocation13], %s389
          %s391 = sshll.u32 [#allocation14], 4
          %s392 = int_to_ptr.vmem [resolvable:$true] %s391
          %397 = dma.hbm_to_vmem [thread:$0]  %s5, 1024, %s392, [#allocation13], 64, 64, 4
        $region32: #{tpu_custom_call.1} parent=11 // pred_fallthru
          _
        // Predicated region
        $region33: #{tpu_custom_call.1} parent=11 // pred_check
          %p398 = pneg %p164
        $region34: #{tpu_custom_call.1} parent=11 // pred_check_branch
          %400 = sbr.rel (%p398) target = $region36
        $region35: #{tpu_custom_call.1} parent=11 // pred_region
          %s402 = ssub.s32 2048, 2048
          %403 = vsyncadd [#allocation16], %s402
          %s404 = sshll.u32 [#allocation15], 4
          %s405 = int_to_ptr.vmem [resolvable:$true] %s404
          %410 = dma.hbm_to_vmem [thread:$0]  %s6, 2048, %s405, [#allocation16], 64, 64, 4
        $region36: #{tpu_custom_call.1} parent=11 // pred_fallthru
          _
        // Predicated region
        $region37: #{tpu_custom_call.1} parent=11 // pred_check
          %p411 = pneg %p185
        $region38: #{tpu_custom_call.1} parent=11 // pred_check_branch
          %413 = sbr.rel (%p411) target = $region40
        $region39: #{tpu_custom_call.1} parent=11 // pred_region
          _
        $region40: #{tpu_custom_call.1} parent=11 // pred_fallthru
          _
        // Predicated region
        $region41: #{tpu_custom_call.1} parent=11 // pred_check
          %p414 = pneg %p206
        $region42: #{tpu_custom_call.1} parent=11 // pred_check_branch
          %416 = sbr.rel (%p414) target = $region44
        $region43: #{tpu_custom_call.1} parent=11 // pred_region
          _
        $region44: #{tpu_custom_call.1} parent=11 // pred_fallthru
          _
        // Predicated region
        $region45: #{tpu_custom_call.1} parent=11 // pred_check
          %p417 = pneg %p227
        $region46: #{tpu_custom_call.1} parent=11 // pred_check_branch
          %419 = sbr.rel (%p417) target = $region48
        $region47: #{tpu_custom_call.1} parent=11 // pred_region
          _
        $region48: #{tpu_custom_call.1} parent=11 // pred_fallthru
          _
        // Predicated region
        $region49: #{tpu_custom_call.1} parent=11 // pred_check
          %p420 = pneg %p248
        $region50: #{tpu_custom_call.1} parent=11 // pred_check_branch
          %422 = sbr.rel (%p420) target = $region52
        $region51: #{tpu_custom_call.1} parent=11 // pred_region
          _
        $region52: #{tpu_custom_call.1} parent=11 // pred_fallthru
          _
        // Predicated region
        $region53: #{tpu_custom_call.1} parent=11 // pred_check
          %p423 = pneg %p269
        $region54: #{tpu_custom_call.1} parent=11 // pred_check_branch
          %425 = sbr.rel (%p423) target = $region56
        $region55: #{tpu_custom_call.1} parent=11 // pred_region
          _
        $region56: #{tpu_custom_call.1} parent=11 // pred_fallthru
          _
        // Predicated region
        $region57: #{tpu_custom_call.1} parent=11 // pred_check
          %p426 = pneg %p290
        $region58: #{tpu_custom_call.1} parent=11 // pred_check_branch
          %428 = sbr.rel (%p426) target = $region60
        $region59: #{tpu_custom_call.1} parent=11 // pred_region
          _
        $region60: #{tpu_custom_call.1} parent=11 // pred_fallthru
          _
      $region12: #{tpu_custom_call.1} parent=5 // pred_fallthru
        _
      %p429 = scmp.lt.s32.totalorder %s26, 4
      // Predicated region
      $region61: #{tpu_custom_call.1} parent=5 // pred_check
        %p430 = pneg %p429
      $region62: #{tpu_custom_call.1} parent=5 // pred_check_branch
        %432 = sbr.rel (%p430) target = $region64
      $region63: #{tpu_custom_call.1} parent=5 // pred_region
        _
      $region64: #{tpu_custom_call.1} parent=5 // pred_fallthru
        _
      %p433 = scmp.le.s32.totalorder 1, %s26
      %p434 = scmp.lt.s32.totalorder %s26, 5
      %p435 = pnand %p433, %p434
      %p436 = pneg %p435
      // Predicated region
      $region65: #{tpu_custom_call.1} parent=5 // pred_check
        _
      $region66: #{tpu_custom_call.1} parent=5 // pred_check_branch
        %438 = sbr.rel (%p435) target = $region68
      $region67: #{tpu_custom_call.1} parent=5 // pred_region
        %s439 = ssub.s32 %s26, 1
        // Predicated region
        $region69: #{tpu_custom_call.1} parent=67 // pred_check
          %p440 = pneg %p59
        $region70: #{tpu_custom_call.1} parent=67 // pred_check_branch
          %442 = sbr.rel (%p440) target = $region72
        $region71: #{tpu_custom_call.1} parent=67 // pred_region
          %443 = dma.done [#allocation7], 1024
        $region72: #{tpu_custom_call.1} parent=67 // pred_fallthru
          _
        // Predicated region
        $region73: #{tpu_custom_call.1} parent=67 // pred_check
          %p444 = pneg %p80
        $region74: #{tpu_custom_call.1} parent=67 // pred_check_branch
          %446 = sbr.rel (%p444) target = $region76
        $region75: #{tpu_custom_call.1} parent=67 // pred_region
          %447 = dma.done [#allocation10], 1024
        $region76: #{tpu_custom_call.1} parent=67 // pred_fallthru
          _
        // Predicated region
        $region77: #{tpu_custom_call.1} parent=67 // pred_check
          %p448 = pneg %p101
        $region78: #{tpu_custom_call.1} parent=67 // pred_check_branch
          %450 = sbr.rel (%p448) target = $region80
        $region79: #{tpu_custom_call.1} parent=67 // pred_region
          %451 = dma.done [#allocation10], 9216
        $region80: #{tpu_custom_call.1} parent=67 // pred_fallthru
          _
        // Predicated region
        $region81: #{tpu_custom_call.1} parent=67 // pred_check
          %p452 = pneg %p122
        $region82: #{tpu_custom_call.1} parent=67 // pred_check_branch
          %454 = sbr.rel (%p452) target = $region84
        $region83: #{tpu_custom_call.1} parent=67 // pred_region
          %455 = dma.done [#allocation13], 1024
        $region84: #{tpu_custom_call.1} parent=67 // pred_fallthru
          _
        // Predicated region
        $region85: #{tpu_custom_call.1} parent=67 // pred_check
          %p456 = pneg %p143
        $region86: #{tpu_custom_call.1} parent=67 // pred_check_branch
          %458 = sbr.rel (%p456) target = $region88
        $region87: #{tpu_custom_call.1} parent=67 // pred_region
          %459 = dma.done [#allocation13], 1024
        $region88: #{tpu_custom_call.1} parent=67 // pred_fallthru
          _
        // Predicated region
        $region89: #{tpu_custom_call.1} parent=67 // pred_check
          %p460 = pneg %p164
        $region90: #{tpu_custom_call.1} parent=67 // pred_check_branch
          %462 = sbr.rel (%p460) target = $region92
        $region91: #{tpu_custom_call.1} parent=67 // pred_region
          %463 = dma.done [#allocation16], 2048
        $region92: #{tpu_custom_call.1} parent=67 // pred_fallthru
          _
        %p464 = pneg %p59
        %p465 = pneg %p56
        %p466 = pneg %p80
        %p467 = pneg %p77
        %p468 = pneg %p101
        %p469 = pneg %p98
        %p470 = pneg %p122
        %p471 = pneg %p119
        %p472 = pneg %p143
        %p473 = pneg %p140
        %p474 = pneg %p164
        %p475 = pneg %p161
        %p476 = pneg %p185
        %p477 = pneg %p182
        %p478 = pneg %p206
        %p479 = pneg %p203
        %p480 = pneg %p227
        %p481 = pneg %p224
        %p482 = pneg %p248
        %p483 = pneg %p245
        %p484 = pneg %p269
        %p485 = pneg %p266
        %p486 = pneg %p290
        %p487 = pneg %p287
        %p488 = pneg %p318
        %p489 = pneg %p315
        %s490 = sand.u32 %s305, 1
        %s491 = scalar_lea.sflag [#allocation8], %s490
        %s492 = sand.u32 %s305, 1
        %s493 = smul.addr %s492, 64
        %s494 = scalar_lea.vmem [#allocation17], %s493
        %s495 = smul.u32 8, %s36
        %s497 = smul.u32 %s36, 8
        %s498 = smul.u32 %s497, 2
        %s499 = smul.u32 %s35, 36
        %s500 = sadd.s32 %s498, %s499
        %s501 = smul.addr %s500, 64
        %s502 = scalar_lea.hbm %s0, %s501
        // Predicated region
        $region93: #{tpu_custom_call.1} parent=67 // pred_check
          _
        $region94: #{tpu_custom_call.1} parent=67 // pred_check_branch
          %504 = sbr.rel target = $region96
        $region95: #{tpu_custom_call.1} parent=67 // pred_region
          %505 = sst [smem:[#allocation20]] [#allocation19]
          %506 = sst [smem:[#allocation21]] [#allocation18]
        $region96: #{tpu_custom_call.1} parent=67 // pred_fallthru
          _
        %508 = shalt.err (0)
        %s510 = sshll.u32 [#allocation2], 4
        %s511 = int_to_ptr.vmem [resolvable:$true] %s510
        %513 = dma.hbm_to_vmem [thread:$0]  %s502, 1280, %s511, [#allocation5]
        %514 = vst [vmem:[#allocation3] sm:$0xff] 0
        %515 = vst [vmem:[#allocation3 + $0x8] sm:$0xff] 0
        %516 = vst [vmem:[#allocation3 + $0x10] sm:$0xff] 0
        %s517 = scalar_lea.vmem [#allocation3], 264
        %518 = vst [vmem:[%s517] sm:$0xff] 0
        %519 = vst [vmem:[%s517 + $0x8] sm:$0xff] 0
        %520 = vst [vmem:[%s517 + $0x10] sm:$0xff] 0
        %vm521 = vcmask 1040384
        %vm522 = vsmask.f32 256
        %vm523 = vmand %vm521, %vm522
        %v524 = vld [vmem:[#allocation3] sm:$0x1]
        %v525 = vsel %vm523, 0, %v524
        %526 = vst [vmem:[#allocation3] sm:$0x1] %v525
        %v527 = vld [vmem:[#allocation3 + $0x18] sm:$0x1]
        %v528 = vsel %vm523, 0, %v527
        %529 = vst [vmem:[#allocation3 + $0x18] sm:$0x1] %v528
        %v530 = vld [vmem:[#allocation3 + $0x30] sm:$0x1]
        %v531 = vsel %vm523, 0, %v530
        %532 = vst [vmem:[#allocation3 + $0x30] sm:$0x1] %v531
        %v533 = vld [vmem:[#allocation3 + $0x48] sm:$0x1]
        %v534 = vsel %vm523, 0, %v533
        %535 = vst [vmem:[#allocation3 + $0x48] sm:$0x1] %v534
        %v536 = vld [vmem:[#allocation3 + $0x60] sm:$0x1]
        %v537 = vsel %vm523, 0, %v536
        %538 = vst [vmem:[#allocation3 + $0x60] sm:$0x1] %v537
        %v539 = vld [vmem:[#allocation3 + $0x78] sm:$0x1]
        %v540 = vsel %vm523, 0, %v539
        %541 = vst [vmem:[#allocation3 + $0x78] sm:$0x1] %v540
        %v542 = vld [vmem:[#allocation3 + $0x90] sm:$0x1]
        %v543 = vsel %vm523, 0, %v542
        %544 = vst [vmem:[#allocation3 + $0x90] sm:$0x1] %v543
        %v545 = vld [vmem:[#allocation3 + $0xa8] sm:$0x1]
        %v546 = vsel %vm523, 0, %v545
        %547 = vst [vmem:[#allocation3 + $0xa8] sm:$0x1] %v546
        %v548 = vld [vmem:[#allocation3 + $0xc0] sm:$0x1]
        %v549 = vsel %vm523, 0, %v548
        %550 = vst [vmem:[#allocation3 + $0xc0] sm:$0x1] %v549
        %v551 = vld [vmem:[#allocation3 + $0xd8] sm:$0x1]
        %v552 = vsel %vm523, 0, %v551
        %553 = vst [vmem:[#allocation3 + $0xd8] sm:$0x1] %v552
        %v554 = vld [vmem:[#allocation3 + $0xf0] sm:$0x1]
        %v555 = vsel %vm523, 0, %v554
        %556 = vst [vmem:[#allocation3 + $0xf0] sm:$0x1] %v555
        %v557 = vld [vmem:[#allocation3 + $0x108] sm:$0x1]
        %v558 = vsel %vm523, 0, %v557
        %559 = vst [vmem:[#allocation3 + $0x108] sm:$0x1] %v558
        %vm560 = vcmask 1047559
        %vm561 = vsmask.f32 7966
        %vm562 = vmand %vm560, %vm561
        %v563 = vld [vmem:[#allocation3 + $0x10] sm:$0x80]
        %v564 = vsel %vm562, 0, %v563
        %565 = vst [vmem:[#allocation3 + $0x10] sm:$0x80] %v564
        %v566 = vld [vmem:[#allocation3 + $0x28] sm:$0x80]
        %v567 = vsel %vm562, 0, %v566
        %568 = vst [vmem:[#allocation3 + $0x28] sm:$0x80] %v567
        %v569 = vld [vmem:[#allocation3 + $0x40] sm:$0x80]
        %v570 = vsel %vm562, 0, %v569
        %571 = vst [vmem:[#allocation3 + $0x40] sm:$0x80] %v570
        %v572 = vld [vmem:[#allocation3 + $0x58] sm:$0x80]
        %v573 = vsel %vm562, 0, %v572
        %574 = vst [vmem:[#allocation3 + $0x58] sm:$0x80] %v573
        %v575 = vld [vmem:[#allocation3 + $0x70] sm:$0x80]
        %v576 = vsel %vm562, 0, %v575
        %577 = vst [vmem:[#allocation3 + $0x70] sm:$0x80] %v576
        %v578 = vld [vmem:[#allocation3 + $0x88] sm:$0x80]
        %v579 = vsel %vm562, 0, %v578
        %580 = vst [vmem:[#allocation3 + $0x88] sm:$0x80] %v579
        %v581 = vld [vmem:[#allocation3 + $0xa0] sm:$0x80]
        %v582 = vsel %vm562, 0, %v581
        %583 = vst [vmem:[#allocation3 + $0xa0] sm:$0x80] %v582
        %v584 = vld [vmem:[#allocation3 + $0xb8] sm:$0x80]
        %v585 = vsel %vm562, 0, %v584
        %586 = vst [vmem:[#allocation3 + $0xb8] sm:$0x80] %v585
        %v587 = vld [vmem:[#allocation3 + $0xd0] sm:$0x80]
        %v588 = vsel %vm562, 0, %v587
        %589 = vst [vmem:[#allocation3 + $0xd0] sm:$0x80] %v588
        %v590 = vld [vmem:[#allocation3 + $0xe8] sm:$0x80]
        %v591 = vsel %vm562, 0, %v590
        %592 = vst [vmem:[#allocation3 + $0xe8] sm:$0x80] %v591
        %v593 = vld [vmem:[#allocation3 + $0x100] sm:$0x80]
        %v594 = vsel %vm562, 0, %v593
        %595 = vst [vmem:[#allocation3 + $0x100] sm:$0x80] %v594
        %v596 = vld [vmem:[#allocation3 + $0x118] sm:$0x80]
        %v597 = vsel %vm562, 0, %v596
        %598 = vst [vmem:[#allocation3 + $0x118] sm:$0x80] %v597
        %v599 = vstv %s497
        %v600 = vadd.s32 %v599, 1
        %v601 = vadd.s32 %v599, 2
        %v602 = vadd.s32 %v599, 3
        %v603 = vadd.s32 %v599, 4
        %v604 = vadd.s32 %v599, 5
        %v605 = vadd.s32 %v599, 6
        %v606 = vadd.s32 %v599, 7
        %v607 = vadd.s32 %v599, 8
        %v608 = vadd.s32 %v599, 9
        %vm609 = vcmp.ge.s32.totalorder %v599, 1
        %vm610 = vcmp.ge.s32.totalorder %v600, 1
        %vm611 = vcmp.ge.s32.totalorder %v601, 1
        %vm612 = vcmp.ge.s32.totalorder %v602, 1
        %vm613 = vcmp.ge.s32.totalorder %v603, 1
        %vm614 = vcmp.ge.s32.totalorder %v604, 1
        %vm615 = vcmp.ge.s32.totalorder %v605, 1
        %vm616 = vcmp.ge.s32.totalorder %v606, 1
        %vm617 = vcmp.ge.s32.totalorder %v607, 1
        %vm618 = vcmp.ge.s32.totalorder %v608, 1
        %vm619 = vcmp.lt.s32.totalorder %v599, 17
        %vm620 = vcmp.lt.s32.totalorder %v600, 17
        %vm621 = vcmp.lt.s32.totalorder %v601, 17
        %vm622 = vcmp.lt.s32.totalorder %v602, 17
        %vm623 = vcmp.lt.s32.totalorder %v603, 17
        %vm624 = vcmp.lt.s32.totalorder %v604, 17
        %vm625 = vcmp.lt.s32.totalorder %v605, 17
        %vm626 = vcmp.lt.s32.totalorder %v606, 17
        %vm627 = vcmp.lt.s32.totalorder %v607, 17
        %vm628 = vcmp.lt.s32.totalorder %v608, 17
        %vm629 = vmand %vm609, %vm619
        %vm630 = vmand %vm610, %vm620
        %vm631 = vmand %vm611, %vm621
        %vm632 = vmand %vm612, %vm622
        %vm633 = vmand %vm613, %vm623
        %vm634 = vmand %vm614, %vm624
        %vm635 = vmand %vm615, %vm625
        %vm636 = vmand %vm616, %vm626
        %vm637 = vmand %vm617, %vm627
        %vm638 = vmand %vm618, %vm628
        %s639 = smul.u32 4, 10
        %s640 = smul.u32 %s639, 2
        %s641 = smul.u32 %s640, 1
        %s642 = sshll.u32 %s641, 4
        %643 = dma.done [#allocation5], %s642
        %v644 = vld [vmem:[#allocation2] sm:$0xff]
        %v645 = vld [vmem:[#allocation2 + $0x8] sm:$0xff]
        %v646 = vld [vmem:[#allocation2 + $0x10] sm:$0xff]
        %v647 = vld [vmem:[#allocation2 + $0x18] sm:$0xff]
        %v648 = vld [vmem:[#allocation2 + $0x20] sm:$0xff]
        %v649 = vld [vmem:[#allocation2 + $0x28] sm:$0xff]
        %v650 = vld [vmem:[#allocation2 + $0x30] sm:$0xff]
        %v651 = vld [vmem:[#allocation2 + $0x38] sm:$0xff]
        %v652 = vld [vmem:[#allocation2 + $0x40] sm:$0xff]
        %v653 = vld [vmem:[#allocation2 + $0x48] sm:$0xff]
        %v654 = vld [vmem:[#allocation6] sm:$0xf]
        %v655 = vld [vmem:[#allocation6 + $0x4] sm:$0xf]
        %v656 = vld [vmem:[#allocation6 + $0x8] sm:$0xf]
        %v657 = vld [vmem:[#allocation6 + $0xc] sm:$0xf]
        %v658 = vld [vmem:[#allocation6 + $0x10] sm:$0xf]
        %v659 = vld [vmem:[#allocation6 + $0x14] sm:$0xf]
        %v660 = vld [vmem:[#allocation6 + $0x18] sm:$0xf]
        %v661 = vld [vmem:[#allocation6 + $0x1c] sm:$0xf]
        %v662 = vld [vmem:[#allocation6 + $0x20] sm:$0xf]
        %v663 = vld [vmem:[#allocation6 + $0x24] sm:$0xf]
        %v664 = vld [vmem:[#allocation6 + $0x28] sm:$0xf]
        %v665 = vld [vmem:[#allocation6 + $0x2c] sm:$0xf]
        %v666 = vld [vmem:[#allocation6 + $0x30] sm:$0xf]
        %v667 = vld [vmem:[#allocation6 + $0x34] sm:$0xf]
        %v668 = vld [vmem:[#allocation6 + $0x38] sm:$0xf]
        %v669 = vld [vmem:[#allocation6 + $0x3c] sm:$0xf]
        %v670 = vld [vmem:[%s7] sm:$0x1]
        %v672 = vlaneseq
        %v673 = vshrl.u32 %v672, 7
        %v674 = vsub.s32 0, %v673
        %v675 = vrot.slane %v670, %v674
        %v693 = vunpack.c.l.b16 %v654
        %v694 = vunpack.c.l.b16 %v655
        %v695 = vunpack.c.l.b16 %v656
        %v696 = vunpack.c.l.b16 %v657
        %v697 = vunpack.c.l.b16 %v658
        %v698 = vunpack.c.l.b16 %v659
        %v699 = vunpack.c.l.b16 %v660
        %v700 = vunpack.c.l.b16 %v661
        %v701 = vunpack.c.l.b16 %v662
        %v702 = vunpack.c.l.b16 %v663
        %v703 = vunpack.c.l.b16 %v664
        %v704 = vunpack.c.l.b16 %v665
        %v705 = vunpack.c.l.b16 %v666
        %v706 = vunpack.c.l.b16 %v667
        %v707 = vunpack.c.l.b16 %v668
        %v708 = vunpack.c.l.b16 %v669
        %v709 = vpack.c.b16 %v694, %v693
        %v710 = vpack.c.b16 %v696, %v695
        %v711 = vpack.c.b16 %v698, %v697
        %v712 = vpack.c.b16 %v700, %v699
        %v713 = vpack.c.b16 %v702, %v701
        %v714 = vpack.c.b16 %v704, %v703
        %v715 = vpack.c.b16 %v706, %v705
        %v716 = vpack.c.b16 %v708, %v707
        %725 = vmatprep.subr.bf16.mxu0 0
        %726 = vmatpush1.bf16.msra.mxu0 %v709
        %727 = vmatprep.subr.bf16.mxu0 0
        %728 = vmatpush1.bf16.msra.mxu0 %v710
        %729 = vmatprep.subr.bf16.mxu0 0
        %730 = vmatpush1.bf16.msra.mxu0 %v711
        %731 = vmatprep.subr.bf16.mxu0 0
        %732 = vmatpush1.bf16.msra.mxu0 %v712
        %733 = vmatprep.subr.bf16.mxu0 0
        %734 = vmatpush1.bf16.msra.mxu0 %v713
        %735 = vmatprep.subr.bf16.mxu0 0
        %736 = vmatpush1.bf16.msra.mxu0 %v714
        %737 = vmatprep.subr.bf16.mxu0 0
        %738 = vmatpush1.bf16.msra.mxu0 %v715
        %739 = vmatprep.subr.bf16.mxu0 0
        %740 = vmatpush1.bf16.msra.mxu0 %v716
        %741 = vmatprep.subr.bf16.mxu0 0
        %742 = vmatpush1.bf16.msra.mxu0 0
        %743 = vmatprep.subr.bf16.mxu0 0
        %744 = vmatpush1.bf16.msra.mxu0 0
        %745 = vmatprep.subr.bf16.mxu0 0
        %746 = vmatpush1.bf16.msra.mxu0 0
        %747 = vmatprep.subr.bf16.mxu0 0
        %748 = vmatpush1.bf16.msra.mxu0 0
        %749 = vmatprep.subr.bf16.mxu0 0
        %750 = vmatpush1.bf16.msra.mxu0 0
        %751 = vmatprep.subr.bf16.mxu0 0
        %752 = vmatpush1.bf16.msra.mxu0 0
        %753 = vmatprep.subr.bf16.mxu0 0
        %754 = vmatpush1.bf16.msra.mxu0 0
        %755 = vmatprep.subr.bf16.mxu0 0
        %756 = vmatpush1.bf16.msra.mxu0 0
        %757 = vmatprep.mubr.bf16.mxu0 0
        %758 = vmatmul.mubr.bf16.gmra.mrb[0].mxu0 %v644
        %v759 = vpop.f32.mrb[0].mxu0
        %v760 = vadd.f32 %v675, %v759
        %v761 = vpop.f32.mrb[0].mxu0
        %v762 = vpop.f32.mrb[0].mxu0
        %v763 = vadd.f32 %v675, %v762
        %v764 = vpop.f32.mrb[0].mxu0
        %765 = vmatprep.mubr.bf16.mxu0 0
        %766 = vmatmul.mubr.bf16.gmra.mrb[0].mxu0 %v645
        %v767 = vpop.f32.mrb[0].mxu0
        %v768 = vadd.f32 %v675, %v767
        %v769 = vpop.f32.mrb[0].mxu0
        %v770 = vpop.f32.mrb[0].mxu0
        %v771 = vadd.f32 %v675, %v770
        %v772 = vpop.f32.mrb[0].mxu0
        %773 = vmatprep.mubr.bf16.mxu0 0
        %774 = vmatmul.mubr.bf16.gmra.mrb[0].mxu0 %v646
        %v775 = vpop.f32.mrb[0].mxu0
        %v776 = vadd.f32 %v675, %v775
        %v777 = vpop.f32.mrb[0].mxu0
        %v778 = vpop.f32.mrb[0].mxu0
        %v779 = vadd.f32 %v675, %v778
        %v780 = vpop.f32.mrb[0].mxu0
        %781 = vmatprep.mubr.bf16.mxu0 0
        %782 = vmatmul.mubr.bf16.gmra.mrb[0].mxu0 %v647
        %v783 = vpop.f32.mrb[0].mxu0
        %v784 = vadd.f32 %v675, %v783
        %v785 = vpop.f32.mrb[0].mxu0
        %v786 = vpop.f32.mrb[0].mxu0
        %v787 = vadd.f32 %v675, %v786
        %v788 = vpop.f32.mrb[0].mxu0
        %789 = vmatprep.mubr.bf16.mxu0 0
        %790 = vmatmul.mubr.bf16.gmra.mrb[0].mxu0 %v648
        %v791 = vpop.f32.mrb[0].mxu0
        %v792 = vadd.f32 %v675, %v791
        %v793 = vpop.f32.mrb[0].mxu0
        %v794 = vpop.f32.mrb[0].mxu0
        %v795 = vadd.f32 %v675, %v794
        %v796 = vpop.f32.mrb[0].mxu0
        %797 = vmatprep.mubr.bf16.mxu0 0
        %798 = vmatmul.mubr.bf16.gmra.mrb[0].mxu0 %v649
        %v799 = vpop.f32.mrb[0].mxu0
        %v800 = vadd.f32 %v675, %v799
        %v801 = vpop.f32.mrb[0].mxu0
        %v802 = vpop.f32.mrb[0].mxu0
        %v803 = vadd.f32 %v675, %v802
        %v804 = vpop.f32.mrb[0].mxu0
        %805 = vmatprep.mubr.bf16.mxu0 0
        %806 = vmatmul.mubr.bf16.gmra.mrb[0].mxu0 %v650
        %v807 = vpop.f32.mrb[0].mxu0
        %v808 = vadd.f32 %v675, %v807
        %v809 = vpop.f32.mrb[0].mxu0
        %v810 = vpop.f32.mrb[0].mxu0
        %v811 = vadd.f32 %v675, %v810
        %v812 = vpop.f32.mrb[0].mxu0
        %813 = vmatprep.mubr.bf16.mxu0 0
        %814 = vmatmul.mubr.bf16.gmra.mrb[0].mxu0 %v651
        %v815 = vpop.f32.mrb[0].mxu0
        %v816 = vadd.f32 %v675, %v815
        %v817 = vpop.f32.mrb[0].mxu0
        %v818 = vpop.f32.mrb[0].mxu0
        %v819 = vadd.f32 %v675, %v818
        %v820 = vpop.f32.mrb[0].mxu0
        %821 = vmatprep.mubr.bf16.mxu0 0
        %822 = vmatmul.mubr.bf16.gmra.mrb[0].mxu0 %v652
        %v823 = vpop.f32.mrb[0].mxu0
        %v824 = vadd.f32 %v675, %v823
        %v825 = vpop.f32.mrb[0].mxu0
        %v826 = vpop.f32.mrb[0].mxu0
        %v827 = vadd.f32 %v675, %v826
        %v828 = vpop.f32.mrb[0].mxu0
        %829 = vmatprep.mubr.bf16.mxu0 0
        %830 = vmatmul.mubr.bf16.gmra.mrb[0].mxu0 %v653
        %v831 = vpop.f32.mrb[0].mxu0
        %v832 = vadd.f32 %v675, %v831
        %v833 = vpop.f32.mrb[0].mxu0
        %v834 = vpop.f32.mrb[0].mxu0
        %v835 = vadd.f32 %v675, %v834
        %v836 = vpop.f32.mrb[0].mxu0
        %837 = vdwg.mxu0
        %v838 = vsub.f32 0.0, %v760
        %v839 = vsub.f32 0.0, %v763
        %v840 = vsub.f32 0.0, %v768
        %v841 = vsub.f32 0.0, %v771
        %v842 = vsub.f32 0.0, %v776
        %v843 = vsub.f32 0.0, %v779
        %v844 = vsub.f32 0.0, %v784
        %v845 = vsub.f32 0.0, %v787
        %v846 = vsub.f32 0.0, %v792
        %v847 = vsub.f32 0.0, %v795
        %v848 = vsub.f32 0.0, %v800
        %v849 = vsub.f32 0.0, %v803
        %v850 = vsub.f32 0.0, %v808
        %v851 = vsub.f32 0.0, %v811
        %v852 = vsub.f32 0.0, %v816
        %v853 = vsub.f32 0.0, %v819
        %v854 = vsub.f32 0.0, %v824
        %v855 = vsub.f32 0.0, %v827
        %v856 = vsub.f32 0.0, %v832
        %v857 = vsub.f32 0.0, %v835
        %v858 = vmul.f32 %v838, 1.442695
        %v859 = vpow.pop %v858
        %v860 = vmul.f32 %v839, 1.442695
        %v861 = vpow.pop %v860
        %v862 = vmul.f32 %v840, 1.442695
        %v863 = vpow.pop %v862
        %v864 = vmul.f32 %v841, 1.442695
        %v865 = vpow.pop %v864
        %v866 = vmul.f32 %v842, 1.442695
        %v867 = vpow.pop %v866
        %v868 = vmul.f32 %v843, 1.442695
        %v869 = vpow.pop %v868
        %v870 = vmul.f32 %v844, 1.442695
        %v871 = vpow.pop %v870
        %v872 = vmul.f32 %v845, 1.442695
        %v873 = vpow.pop %v872
        %v874 = vmul.f32 %v846, 1.442695
        %v875 = vpow.pop %v874
        %v876 = vmul.f32 %v847, 1.442695
        %v877 = vpow.pop %v876
        %v878 = vmul.f32 %v848, 1.442695
        %v879 = vpow.pop %v878
        %v880 = vmul.f32 %v849, 1.442695
        %v881 = vpow.pop %v880
        %v882 = vmul.f32 %v850, 1.442695
        %v883 = vpow.pop %v882
        %v884 = vmul.f32 %v851, 1.442695
        %v885 = vpow.pop %v884
        %v886 = vmul.f32 %v852, 1.442695
        %v887 = vpow.pop %v886
        %v888 = vmul.f32 %v853, 1.442695
        %v889 = vpow.pop %v888
        %v890 = vmul.f32 %v854, 1.442695
        %v891 = vpow.pop %v890
        %v892 = vmul.f32 %v855, 1.442695
        %v893 = vpow.pop %v892
        %v894 = vmul.f32 %v856, 1.442695
        %v895 = vpow.pop %v894
        %v896 = vmul.f32 %v857, 1.442695
        %v897 = vpow.pop %v896
        %v898 = vadd.f32 %v859, 1.0
        %v899 = vadd.f32 %v861, 1.0
        %v900 = vadd.f32 %v863, 1.0
        %v901 = vadd.f32 %v865, 1.0
        %v902 = vadd.f32 %v867, 1.0
        %v903 = vadd.f32 %v869, 1.0
        %v904 = vadd.f32 %v871, 1.0
        %v905 = vadd.f32 %v873, 1.0
        %v906 = vadd.f32 %v875, 1.0
        %v907 = vadd.f32 %v877, 1.0
        %v908 = vadd.f32 %v879, 1.0
        %v909 = vadd.f32 %v881, 1.0
        %v910 = vadd.f32 %v883, 1.0
        %v911 = vadd.f32 %v885, 1.0
        %v912 = vadd.f32 %v887, 1.0
        %v913 = vadd.f32 %v889, 1.0
        %v914 = vadd.f32 %v891, 1.0
        %v915 = vadd.f32 %v893, 1.0
        %v916 = vadd.f32 %v895, 1.0
        %v917 = vadd.f32 %v897, 1.0
        %v918 = vrcp.pop %v898
        %v919 = vrcp.pop %v899
        %v920 = vrcp.pop %v900
        %v921 = vrcp.pop %v901
        %v922 = vrcp.pop %v902
        %v923 = vrcp.pop %v903
        %v924 = vrcp.pop %v904
        %v925 = vrcp.pop %v905
        %v926 = vrcp.pop %v906
        %v927 = vrcp.pop %v907
        %v928 = vrcp.pop %v908
        %v929 = vrcp.pop %v909
        %v930 = vrcp.pop %v910
        %v931 = vrcp.pop %v911
        %v932 = vrcp.pop %v912
        %v933 = vrcp.pop %v913
        %v934 = vrcp.pop %v914
        %v935 = vrcp.pop %v915
        %v936 = vrcp.pop %v916
        %v937 = vrcp.pop %v917
        %v938 = vmul.f32 %v760, %v918
        %v939 = vmul.f32 %v763, %v919
        %v940 = vmul.f32 %v768, %v920
        %v941 = vmul.f32 %v771, %v921
        %v942 = vmul.f32 %v776, %v922
        %v943 = vmul.f32 %v779, %v923
        %v944 = vmul.f32 %v784, %v924
        %v945 = vmul.f32 %v787, %v925
        %v946 = vmul.f32 %v792, %v926
        %v947 = vmul.f32 %v795, %v927
        %v948 = vmul.f32 %v800, %v928
        %v949 = vmul.f32 %v803, %v929
        %v950 = vmul.f32 %v808, %v930
        %v951 = vmul.f32 %v811, %v931
        %v952 = vmul.f32 %v816, %v932
        %v953 = vmul.f32 %v819, %v933
        %v954 = vmul.f32 %v824, %v934
        %v955 = vmul.f32 %v827, %v935
        %v956 = vmul.f32 %v832, %v936
        %v957 = vmul.f32 %v835, %v937
        %v958 = vpack.c.bf16 %v939, %v938
        %v959 = vpack.c.bf16 %v941, %v940
        %v960 = vpack.c.bf16 %v943, %v942
        %v961 = vpack.c.bf16 %v945, %v944
        %v962 = vpack.c.bf16 %v947, %v946
        %v963 = vpack.c.bf16 %v949, %v948
        %v964 = vpack.c.bf16 %v951, %v950
        %v965 = vpack.c.bf16 %v953, %v952
        %v966 = vpack.c.bf16 %v955, %v954
        %v967 = vpack.c.bf16 %v957, %v956
        %v968 = vld [vmem:[#allocation9] sm:$0xf]
        %v969 = vld [vmem:[#allocation9 + $0x4] sm:$0xf]
        %v970 = vld [vmem:[#allocation9 + $0x8] sm:$0xf]
        %v971 = vld [vmem:[#allocation9 + $0xc] sm:$0xf]
        %v972 = vld [vmem:[#allocation9 + $0x10] sm:$0xf]
        %v973 = vld [vmem:[#allocation9 + $0x14] sm:$0xf]
        %v974 = vld [vmem:[#allocation9 + $0x18] sm:$0xf]
        %v975 = vld [vmem:[#allocation9 + $0x1c] sm:$0xf]
        %v976 = vld [vmem:[#allocation9 + $0x20] sm:$0xf]
        %v977 = vld [vmem:[#allocation9 + $0x24] sm:$0xf]
        %v978 = vld [vmem:[#allocation9 + $0x28] sm:$0xf]
        %v979 = vld [vmem:[#allocation9 + $0x2c] sm:$0xf]
        %v980 = vld [vmem:[#allocation9 + $0x30] sm:$0xf]
        %v981 = vld [vmem:[#allocation9 + $0x34] sm:$0xf]
        %v982 = vld [vmem:[#allocation9 + $0x38] sm:$0xf]
        %v983 = vld [vmem:[#allocation9 + $0x3c] sm:$0xf]
        %v984 = vld [vmem:[%s8] sm:$0x1]
        %v986 = vlaneseq
        %v987 = vshrl.u32 %v986, 7
        %v988 = vsub.s32 0, %v987
        %v989 = vrot.slane %v984, %v988
        %v1007 = vunpack.c.l.b16 %v968
        %v1008 = vunpack.c.l.b16 %v969
        %v1009 = vunpack.c.l.b16 %v970
        %v1010 = vunpack.c.l.b16 %v971
        %v1011 = vunpack.c.l.b16 %v972
        %v1012 = vunpack.c.l.b16 %v973
        %v1013 = vunpack.c.l.b16 %v974
        %v1014 = vunpack.c.l.b16 %v975
        %v1015 = vunpack.c.l.b16 %v976
        %v1016 = vunpack.c.l.b16 %v977
        %v1017 = vunpack.c.l.b16 %v978
        %v1018 = vunpack.c.l.b16 %v979
        %v1019 = vunpack.c.l.b16 %v980
        %v1020 = vunpack.c.l.b16 %v981
        %v1021 = vunpack.c.l.b16 %v982
        %v1022 = vunpack.c.l.b16 %v983
        %v1023 = vpack.c.b16 %v1008, %v1007
        %v1024 = vpack.c.b16 %v1010, %v1009
        %v1025 = vpack.c.b16 %v1012, %v1011
        %v1026 = vpack.c.b16 %v1014, %v1013
        %v1027 = vpack.c.b16 %v1016, %v1015
        %v1028 = vpack.c.b16 %v1018, %v1017
        %v1029 = vpack.c.b16 %v1020, %v1019
        %v1030 = vpack.c.b16 %v1022, %v1021
        %1039 = vmatprep.subr.bf16.mxu0 0
        %1040 = vmatpush1.bf16.msra.mxu0 %v1023
        %1041 = vmatprep.subr.bf16.mxu0 0
        %1042 = vmatpush1.bf16.msra.mxu0 %v1024
        %1043 = vmatprep.subr.bf16.mxu0 0
        %1044 = vmatpush1.bf16.msra.mxu0 %v1025
        %1045 = vmatprep.subr.bf16.mxu0 0
        %1046 = vmatpush1.bf16.msra.mxu0 %v1026
        %1047 = vmatprep.subr.bf16.mxu0 0
        %1048 = vmatpush1.bf16.msra.mxu0 %v1027
        %1049 = vmatprep.subr.bf16.mxu0 0
        %1050 = vmatpush1.bf16.msra.mxu0 %v1028
        %1051 = vmatprep.subr.bf16.mxu0 0
        %1052 = vmatpush1.bf16.msra.mxu0 %v1029
        %1053 = vmatprep.subr.bf16.mxu0 0
        %1054 = vmatpush1.bf16.msra.mxu0 %v1030
        %1055 = vmatprep.subr.bf16.mxu0 0
        %1056 = vmatpush1.bf16.msra.mxu0 0
        %1057 = vmatprep.subr.bf16.mxu0 0
        %1058 = vmatpush1.bf16.msra.mxu0 0
        %1059 = vmatprep.subr.bf16.mxu0 0
        %1060 = vmatpush1.bf16.msra.mxu0 0
        %1061 = vmatprep.subr.bf16.mxu0 0
        %1062 = vmatpush1.bf16.msra.mxu0 0
        %1063 = vmatprep.subr.bf16.mxu0 0
        %1064 = vmatpush1.bf16.msra.mxu0 0
        %1065 = vmatprep.subr.bf16.mxu0 0
        %1066 = vmatpush1.bf16.msra.mxu0 0
        %1067 = vmatprep.subr.bf16.mxu0 0
        %1068 = vmatpush1.bf16.msra.mxu0 0
        %1069 = vmatprep.subr.bf16.mxu0 0
        %1070 = vmatpush1.bf16.msra.mxu0 0
        %1071 = vmatprep.mubr.bf16.mxu0 0
        %1072 = vmatmul.mubr.bf16.gmra.mrb[0].mxu0 %v958
        %v1073 = vpop.f32.mrb[0].mxu0
        %v1074 = vadd.f32 %v989, %v1073
        %v1075 = vpop.f32.mrb[0].mxu0
        %v1076 = vpop.f32.mrb[0].mxu0
        %v1077 = vadd.f32 %v989, %v1076
        %v1078 = vpop.f32.mrb[0].mxu0
        %1079 = vmatprep.mubr.bf16.mxu0 0
        %1080 = vmatmul.mubr.bf16.gmra.mrb[0].mxu0 %v959
        %v1081 = vpop.f32.mrb[0].mxu0
        %v1082 = vadd.f32 %v989, %v1081
        %v1083 = vpop.f32.mrb[0].mxu0
        %v1084 = vpop.f32.mrb[0].mxu0
        %v1085 = vadd.f32 %v989, %v1084
        %v1086 = vpop.f32.mrb[0].mxu0
        %1087 = vmatprep.mubr.bf16.mxu0 0
        %1088 = vmatmul.mubr.bf16.gmra.mrb[0].mxu0 %v960
        %v1089 = vpop.f32.mrb[0].mxu0
        %v1090 = vadd.f32 %v989, %v1089
        %v1091 = vpop.f32.mrb[0].mxu0
        %v1092 = vpop.f32.mrb[0].mxu0
        %v1093 = vadd.f32 %v989, %v1092
        %v1094 = vpop.f32.mrb[0].mxu0
        %1095 = vmatprep.mubr.bf16.mxu0 0
        %1096 = vmatmul.mubr.bf16.gmra.mrb[0].mxu0 %v961
        %v1097 = vpop.f32.mrb[0].mxu0
        %v1098 = vadd.f32 %v989, %v1097
        %v1099 = vpop.f32.mrb[0].mxu0
        %v1100 = vpop.f32.mrb[0].mxu0
        %v1101 = vadd.f32 %v989, %v1100
        %v1102 = vpop.f32.mrb[0].mxu0
        %1103 = vmatprep.mubr.bf16.mxu0 0
        %1104 = vmatmul.mubr.bf16.gmra.mrb[0].mxu0 %v962
        %v1105 = vpop.f32.mrb[0].mxu0
        %v1106 = vadd.f32 %v989, %v1105
        %v1107 = vpop.f32.mrb[0].mxu0
        %v1108 = vpop.f32.mrb[0].mxu0
        %v1109 = vadd.f32 %v989, %v1108
        %v1110 = vpop.f32.mrb[0].mxu0
        %1111 = vmatprep.mubr.bf16.mxu0 0
        %1112 = vmatmul.mubr.bf16.gmra.mrb[0].mxu0 %v963
        %v1113 = vpop.f32.mrb[0].mxu0
        %v1114 = vadd.f32 %v989, %v1113
        %v1115 = vpop.f32.mrb[0].mxu0
        %v1116 = vpop.f32.mrb[0].mxu0
        %v1117 = vadd.f32 %v989, %v1116
        %v1118 = vpop.f32.mrb[0].mxu0
        %1119 = vmatprep.mubr.bf16.mxu0 0
        %1120 = vmatmul.mubr.bf16.gmra.mrb[0].mxu0 %v964
        %v1121 = vpop.f32.mrb[0].mxu0
        %v1122 = vadd.f32 %v989, %v1121
        %v1123 = vpop.f32.mrb[0].mxu0
        %v1124 = vpop.f32.mrb[0].mxu0
        %v1125 = vadd.f32 %v989, %v1124
        %v1126 = vpop.f32.mrb[0].mxu0
        %1127 = vmatprep.mubr.bf16.mxu0 0
        %1128 = vmatmul.mubr.bf16.gmra.mrb[0].mxu0 %v965
        %v1129 = vpop.f32.mrb[0].mxu0
        %v1130 = vadd.f32 %v989, %v1129
        %v1131 = vpop.f32.mrb[0].mxu0
        %v1132 = vpop.f32.mrb[0].mxu0
        %v1133 = vadd.f32 %v989, %v1132
        %v1134 = vpop.f32.mrb[0].mxu0
        %1135 = vmatprep.mubr.bf16.mxu0 0
        %1136 = vmatmul.mubr.bf16.gmra.mrb[0].mxu0 %v966
        %v1137 = vpop.f32.mrb[0].mxu0
        %v1138 = vadd.f32 %v989, %v1137
        %v1139 = vpop.f32.mrb[0].mxu0
        %v1140 = vpop.f32.mrb[0].mxu0
        %v1141 = vadd.f32 %v989, %v1140
        %v1142 = vpop.f32.mrb[0].mxu0
        %1143 = vmatprep.mubr.bf16.mxu0 0
        %1144 = vmatmul.mubr.bf16.gmra.mrb[0].mxu0 %v967
        %v1145 = vpop.f32.mrb[0].mxu0
        %v1146 = vadd.f32 %v989, %v1145
        %v1147 = vpop.f32.mrb[0].mxu0
        %v1148 = vpop.f32.mrb[0].mxu0
        %v1149 = vadd.f32 %v989, %v1148
        %v1150 = vpop.f32.mrb[0].mxu0
        %1151 = vdwg.mxu0
        %v1152 = vsub.f32 0.0, %v1074
        %v1153 = vsub.f32 0.0, %v1077
        %v1154 = vsub.f32 0.0, %v1082
        %v1155 = vsub.f32 0.0, %v1085
        %v1156 = vsub.f32 0.0, %v1090
        %v1157 = vsub.f32 0.0, %v1093
        %v1158 = vsub.f32 0.0, %v1098
        %v1159 = vsub.f32 0.0, %v1101
        %v1160 = vsub.f32 0.0, %v1106
        %v1161 = vsub.f32 0.0, %v1109
        %v1162 = vsub.f32 0.0, %v1114
        %v1163 = vsub.f32 0.0, %v1117
        %v1164 = vsub.f32 0.0, %v1122
        %v1165 = vsub.f32 0.0, %v1125
        %v1166 = vsub.f32 0.0, %v1130
        %v1167 = vsub.f32 0.0, %v1133
        %v1168 = vsub.f32 0.0, %v1138
        %v1169 = vsub.f32 0.0, %v1141
        %v1170 = vsub.f32 0.0, %v1146
        %v1171 = vsub.f32 0.0, %v1149
        %v1172 = vmul.f32 %v1152, 1.442695
        %v1173 = vpow.pop %v1172
        %v1174 = vmul.f32 %v1153, 1.442695
        %v1175 = vpow.pop %v1174
        %v1176 = vmul.f32 %v1154, 1.442695
        %v1177 = vpow.pop %v1176
        %v1178 = vmul.f32 %v1155, 1.442695
        %v1179 = vpow.pop %v1178
        %v1180 = vmul.f32 %v1156, 1.442695
        %v1181 = vpow.pop %v1180
        %v1182 = vmul.f32 %v1157, 1.442695
        %v1183 = vpow.pop %v1182
        %v1184 = vmul.f32 %v1158, 1.442695
        %v1185 = vpow.pop %v1184
        %v1186 = vmul.f32 %v1159, 1.442695
        %v1187 = vpow.pop %v1186
        %v1188 = vmul.f32 %v1160, 1.442695
        %v1189 = vpow.pop %v1188
        %v1190 = vmul.f32 %v1161, 1.442695
        %v1191 = vpow.pop %v1190
        %v1192 = vmul.f32 %v1162, 1.442695
        %v1193 = vpow.pop %v1192
        %v1194 = vmul.f32 %v1163, 1.442695
        %v1195 = vpow.pop %v1194
        %v1196 = vmul.f32 %v1164, 1.442695
        %v1197 = vpow.pop %v1196
        %v1198 = vmul.f32 %v1165, 1.442695
        %v1199 = vpow.pop %v1198
        %v1200 = vmul.f32 %v1166, 1.442695
        %v1201 = vpow.pop %v1200
        %v1202 = vmul.f32 %v1167, 1.442695
        %v1203 = vpow.pop %v1202
        %v1204 = vmul.f32 %v1168, 1.442695
        %v1205 = vpow.pop %v1204
        %v1206 = vmul.f32 %v1169, 1.442695
        %v1207 = vpow.pop %v1206
        %v1208 = vmul.f32 %v1170, 1.442695
        %v1209 = vpow.pop %v1208
        %v1210 = vmul.f32 %v1171, 1.442695
        %v1211 = vpow.pop %v1210
        %v1212 = vadd.f32 %v1173, 1.0
        %v1213 = vadd.f32 %v1175, 1.0
        %v1214 = vadd.f32 %v1177, 1.0
        %v1215 = vadd.f32 %v1179, 1.0
        %v1216 = vadd.f32 %v1181, 1.0
        %v1217 = vadd.f32 %v1183, 1.0
        %v1218 = vadd.f32 %v1185, 1.0
        %v1219 = vadd.f32 %v1187, 1.0
        %v1220 = vadd.f32 %v1189, 1.0
        %v1221 = vadd.f32 %v1191, 1.0
        %v1222 = vadd.f32 %v1193, 1.0
        %v1223 = vadd.f32 %v1195, 1.0
        %v1224 = vadd.f32 %v1197, 1.0
        %v1225 = vadd.f32 %v1199, 1.0
        %v1226 = vadd.f32 %v1201, 1.0
        %v1227 = vadd.f32 %v1203, 1.0
        %v1228 = vadd.f32 %v1205, 1.0
        %v1229 = vadd.f32 %v1207, 1.0
        %v1230 = vadd.f32 %v1209, 1.0
        %v1231 = vadd.f32 %v1211, 1.0
        %v1232 = vrcp.pop %v1212
        %v1233 = vrcp.pop %v1213
        %v1234 = vrcp.pop %v1214
        %v1235 = vrcp.pop %v1215
        %v1236 = vrcp.pop %v1216
        %v1237 = vrcp.pop %v1217
        %v1238 = vrcp.pop %v1218
        %v1239 = vrcp.pop %v1219
        %v1240 = vrcp.pop %v1220
        %v1241 = vrcp.pop %v1221
        %v1242 = vrcp.pop %v1222
        %v1243 = vrcp.pop %v1223
        %v1244 = vrcp.pop %v1224
        %v1245 = vrcp.pop %v1225
        %v1246 = vrcp.pop %v1226
        %v1247 = vrcp.pop %v1227
        %v1248 = vrcp.pop %v1228
        %v1249 = vrcp.pop %v1229
        %v1250 = vrcp.pop %v1230
        %v1251 = vrcp.pop %v1231
        %v1252 = vmul.f32 %v1074, %v1232
        %v1253 = vmul.f32 %v1077, %v1233
        %v1254 = vmul.f32 %v1082, %v1234
        %v1255 = vmul.f32 %v1085, %v1235
        %v1256 = vmul.f32 %v1090, %v1236
        %v1257 = vmul.f32 %v1093, %v1237
        %v1258 = vmul.f32 %v1098, %v1238
        %v1259 = vmul.f32 %v1101, %v1239
        %v1260 = vmul.f32 %v1106, %v1240
        %v1261 = vmul.f32 %v1109, %v1241
        %v1262 = vmul.f32 %v1114, %v1242
        %v1263 = vmul.f32 %v1117, %v1243
        %v1264 = vmul.f32 %v1122, %v1244
        %v1265 = vmul.f32 %v1125, %v1245
        %v1266 = vmul.f32 %v1130, %v1246
        %v1267 = vmul.f32 %v1133, %v1247
        %v1268 = vmul.f32 %v1138, %v1248
        %v1269 = vmul.f32 %v1141, %v1249
        %v1270 = vmul.f32 %v1146, %v1250
        %v1271 = vmul.f32 %v1149, %v1251
        %v1272 = vsel %vm629, 1, 0
        %v1273 = vsel %vm630, 1, 0
        %v1274 = vsel %vm631, 1, 0
        %v1275 = vsel %vm632, 1, 0
        %v1276 = vsel %vm633, 1, 0
        %v1277 = vsel %vm634, 1, 0
        %v1278 = vsel %vm635, 1, 0
        %v1279 = vsel %vm636, 1, 0
        %v1280 = vsel %vm637, 1, 0
        %v1281 = vsel %vm638, 1, 0
        %vm1282 = vcmp.eq.s32.totalorder %v1272, 1
        %vm1283 = vcmp.eq.s32.totalorder %v1273, 1
        %vm1284 = vcmp.eq.s32.totalorder %v1274, 1
        %vm1285 = vcmp.eq.s32.totalorder %v1275, 1
        %vm1286 = vcmp.eq.s32.totalorder %v1276, 1
        %vm1287 = vcmp.eq.s32.totalorder %v1277, 1
        %vm1288 = vcmp.eq.s32.totalorder %v1278, 1
        %vm1289 = vcmp.eq.s32.totalorder %v1279, 1
        %vm1290 = vcmp.eq.s32.totalorder %v1280, 1
        %vm1291 = vcmp.eq.s32.totalorder %v1281, 1
        %v1292 = vsel %vm1282, %v1252, 0.0
        %v1293 = vsel %vm1282, %v1253, 0.0
        %v1294 = vsel %vm1283, %v1254, 0.0
        %v1295 = vsel %vm1283, %v1255, 0.0
        %v1296 = vsel %vm1284, %v1256, 0.0
        %v1297 = vsel %vm1284, %v1257, 0.0
        %v1298 = vsel %vm1285, %v1258, 0.0
        %v1299 = vsel %vm1285, %v1259, 0.0
        %v1300 = vsel %vm1286, %v1260, 0.0
        %v1301 = vsel %vm1286, %v1261, 0.0
        %v1302 = vsel %vm1287, %v1262, 0.0
        %v1303 = vsel %vm1287, %v1263, 0.0
        %v1304 = vsel %vm1288, %v1264, 0.0
        %v1305 = vsel %vm1288, %v1265, 0.0
        %v1306 = vsel %vm1289, %v1266, 0.0
        %v1307 = vsel %vm1289, %v1267, 0.0
        %v1308 = vsel %vm1290, %v1268, 0.0
        %v1309 = vsel %vm1290, %v1269, 0.0
        %v1310 = vsel %vm1291, %v1270, 0.0
        %v1311 = vsel %vm1291, %v1271, 0.0
        %v1312 = vpack.c.bf16 %v1293, %v1292
        %v1313 = vpack.c.bf16 %v1295, %v1294
        %v1314 = vpack.c.bf16 %v1297, %v1296
        %v1315 = vpack.c.bf16 %v1299, %v1298
        %v1316 = vpack.c.bf16 %v1301, %v1300
        %v1317 = vpack.c.bf16 %v1303, %v1302
        %v1318 = vpack.c.bf16 %v1305, %v1304
        %v1319 = vpack.c.bf16 %v1307, %v1306
        %v1320 = vpack.c.bf16 %v1309, %v1308
        %v1321 = vpack.c.bf16 %v1311, %v1310
        %v1323 = vshrl.u32 %v1312, 16
        %v1325 = vrot.slane %v1323, 7
        %v1326 = vshll.u32 %v1312, 16
        %v1328 = vor.u32 %v1325, %v1326
        %v1330 = vshrl.u32 %v1313, 16
        %v1332 = vrot.slane %v1330, 7
        %v1333 = vshll.u32 %v1313, 16
        %v1335 = vor.u32 %v1332, %v1333
        %v1337 = vshrl.u32 %v1314, 16
        %v1339 = vrot.slane %v1337, 7
        %v1340 = vshll.u32 %v1314, 16
        %v1342 = vor.u32 %v1339, %v1340
        %v1344 = vshrl.u32 %v1315, 16
        %v1346 = vrot.slane %v1344, 7
        %v1347 = vshll.u32 %v1315, 16
        %v1349 = vor.u32 %v1346, %v1347
        %v1351 = vshrl.u32 %v1316, 16
        %v1353 = vrot.slane %v1351, 7
        %v1354 = vshll.u32 %v1316, 16
        %v1356 = vor.u32 %v1353, %v1354
        %v1358 = vshrl.u32 %v1317, 16
        %v1360 = vrot.slane %v1358, 7
        %v1361 = vshll.u32 %v1317, 16
        %v1363 = vor.u32 %v1360, %v1361
        %v1365 = vshrl.u32 %v1318, 16
        %v1367 = vrot.slane %v1365, 7
        %v1368 = vshll.u32 %v1318, 16
        %v1370 = vor.u32 %v1367, %v1368
        %v1372 = vshrl.u32 %v1319, 16
        %v1374 = vrot.slane %v1372, 7
        %v1375 = vshll.u32 %v1319, 16
        %v1377 = vor.u32 %v1374, %v1375
        %v1379 = vshrl.u32 %v1320, 16
        %v1381 = vrot.slane %v1379, 7
        %v1382 = vshll.u32 %v1320, 16
        %v1384 = vor.u32 %v1381, %v1382
        %v1386 = vshrl.u32 %v1321, 16
        %v1388 = vrot.slane %v1386, 7
        %v1389 = vshll.u32 %v1321, 16
        %v1391 = vor.u32 %v1388, %v1389
        %s1402 = scalar_lea.vmem [#allocation3], 24
        %vm1403 = vcmask 1047552
        %vm1404 = vsmask.f32 7938
        %vm1405 = vmand %vm1403, %vm1404
        %v1406 = vld [vmem:[%s1402] sm:$0xff]
        %v1407 = vsel %vm1405, %v1328, %v1406
        %1408 = vst [vmem:[%s1402] sm:$0xff] %v1407
        %v1409 = vld [vmem:[%s1402 + $0x18] sm:$0xff]
        %v1410 = vsel %vm1405, %v1335, %v1409
        %1411 = vst [vmem:[%s1402 + $0x18] sm:$0xff] %v1410
        %v1412 = vld [vmem:[%s1402 + $0x30] sm:$0xff]
        %v1413 = vsel %vm1405, %v1342, %v1412
        %1414 = vst [vmem:[%s1402 + $0x30] sm:$0xff] %v1413
        %v1415 = vld [vmem:[%s1402 + $0x48] sm:$0xff]
        %v1416 = vsel %vm1405, %v1349, %v1415
        %1417 = vst [vmem:[%s1402 + $0x48] sm:$0xff] %v1416
        %v1418 = vld [vmem:[%s1402 + $0x60] sm:$0xff]
        %v1419 = vsel %vm1405, %v1356, %v1418
        %1420 = vst [vmem:[%s1402 + $0x60] sm:$0xff] %v1419
        %v1421 = vld [vmem:[%s1402 + $0x78] sm:$0xff]
        %v1422 = vsel %vm1405, %v1363, %v1421
        %1423 = vst [vmem:[%s1402 + $0x78] sm:$0xff] %v1422
        %v1424 = vld [vmem:[%s1402 + $0x90] sm:$0xff]
        %v1425 = vsel %vm1405, %v1370, %v1424
        %1426 = vst [vmem:[%s1402 + $0x90] sm:$0xff] %v1425
        %v1427 = vld [vmem:[%s1402 + $0xa8] sm:$0xff]
        %v1428 = vsel %vm1405, %v1377, %v1427
        %1429 = vst [vmem:[%s1402 + $0xa8] sm:$0xff] %v1428
        %v1430 = vld [vmem:[%s1402 + $0xc0] sm:$0xff]
        %v1431 = vsel %vm1405, %v1384, %v1430
        %1432 = vst [vmem:[%s1402 + $0xc0] sm:$0xff] %v1431
        %v1433 = vld [vmem:[%s1402 + $0xd8] sm:$0xff]
        %v1434 = vsel %vm1405, %v1391, %v1433
        %1435 = vst [vmem:[%s1402 + $0xd8] sm:$0xff] %v1434
        %1436 = vst [vmem:[%s1402 + $0x8] sm:$0xff] %v1312
        %1437 = vst [vmem:[%s1402 + $0x20] sm:$0xff] %v1313
        %1438 = vst [vmem:[%s1402 + $0x38] sm:$0xff] %v1314
        %1439 = vst [vmem:[%s1402 + $0x50] sm:$0xff] %v1315
        %1440 = vst [vmem:[%s1402 + $0x68] sm:$0xff] %v1316
        %1441 = vst [vmem:[%s1402 + $0x80] sm:$0xff] %v1317
        %1442 = vst [vmem:[%s1402 + $0x98] sm:$0xff] %v1318
        %1443 = vst [vmem:[%s1402 + $0xb0] sm:$0xff] %v1319
        %1444 = vst [vmem:[%s1402 + $0xc8] sm:$0xff] %v1320
        %1445 = vst [vmem:[%s1402 + $0xe0] sm:$0xff] %v1321
        %v1446 = vrot.slane %v1326, 1
        %v1447 = vor.u32 %v1323, %v1446
        %v1448 = vrot.slane %v1333, 1
        %v1449 = vor.u32 %v1330, %v1448
        %v1450 = vrot.slane %v1340, 1
        %v1451 = vor.u32 %v1337, %v1450
        %v1452 = vrot.slane %v1347, 1
        %v1453 = vor.u32 %v1344, %v1452
        %v1454 = vrot.slane %v1354, 1
        %v1455 = vor.u32 %v1351, %v1454
        %v1456 = vrot.slane %v1361, 1
        %v1457 = vor.u32 %v1358, %v1456
        %v1458 = vrot.slane %v1368, 1
        %v1459 = vor.u32 %v1365, %v1458
        %v1460 = vrot.slane %v1375, 1
        %v1461 = vor.u32 %v1372, %v1460
        %v1462 = vrot.slane %v1382, 1
        %v1463 = vor.u32 %v1379, %v1462
        %v1464 = vrot.slane %v1389, 1
        %v1465 = vor.u32 %v1386, %v1464
        %vm1476 = vsmask.f32 7424
        %vm1477 = vmand %vm1403, %vm1476
        %v1478 = vld [vmem:[%s1402 + $0x10] sm:$0xff]
        %v1479 = vsel %vm1477, %v1447, %v1478
        %1480 = vst [vmem:[%s1402 + $0x10] sm:$0xff] %v1479
        %v1481 = vld [vmem:[%s1402 + $0x28] sm:$0xff]
        %v1482 = vsel %vm1477, %v1449, %v1481
        %1483 = vst [vmem:[%s1402 + $0x28] sm:$0xff] %v1482
        %v1484 = vld [vmem:[%s1402 + $0x40] sm:$0xff]
        %v1485 = vsel %vm1477, %v1451, %v1484
        %1486 = vst [vmem:[%s1402 + $0x40] sm:$0xff] %v1485
        %v1487 = vld [vmem:[%s1402 + $0x58] sm:$0xff]
        %v1488 = vsel %vm1477, %v1453, %v1487
        %1489 = vst [vmem:[%s1402 + $0x58] sm:$0xff] %v1488
        %v1490 = vld [vmem:[%s1402 + $0x70] sm:$0xff]
        %v1491 = vsel %vm1477, %v1455, %v1490
        %1492 = vst [vmem:[%s1402 + $0x70] sm:$0xff] %v1491
        %v1493 = vld [vmem:[%s1402 + $0x88] sm:$0xff]
        %v1494 = vsel %vm1477, %v1457, %v1493
        %1495 = vst [vmem:[%s1402 + $0x88] sm:$0xff] %v1494
        %v1496 = vld [vmem:[%s1402 + $0xa0] sm:$0xff]
        %v1497 = vsel %vm1477, %v1459, %v1496
        %1498 = vst [vmem:[%s1402 + $0xa0] sm:$0xff] %v1497
        %v1499 = vld [vmem:[%s1402 + $0xb8] sm:$0xff]
        %v1500 = vsel %vm1477, %v1461, %v1499
        %1501 = vst [vmem:[%s1402 + $0xb8] sm:$0xff] %v1500
        %v1502 = vld [vmem:[%s1402 + $0xd0] sm:$0xff]
        %v1503 = vsel %vm1477, %v1463, %v1502
        %1504 = vst [vmem:[%s1402 + $0xd0] sm:$0xff] %v1503
        %v1505 = vld [vmem:[%s1402 + $0xe8] sm:$0xff]
        %v1506 = vsel %vm1477, %v1465, %v1505
        %1507 = vst [vmem:[%s1402 + $0xe8] sm:$0xff] %v1506
        %v1508 = vld [vmem:[#allocation11] sm:$0xf]
        %v1509 = vld [vmem:[#allocation11 + $0x4] sm:$0xf]
        %v1510 = vld [vmem:[#allocation11 + $0x8] sm:$0xf]
        %v1511 = vld [vmem:[#allocation11 + $0xc] sm:$0xf]
        %v1512 = vld [vmem:[#allocation11 + $0x10] sm:$0xf]
        %v1513 = vld [vmem:[#allocation11 + $0x14] sm:$0xf]
        %v1514 = vld [vmem:[#allocation11 + $0x18] sm:$0xf]
        %v1515 = vld [vmem:[#allocation11 + $0x1c] sm:$0xf]
        %v1516 = vld [vmem:[#allocation11 + $0x20] sm:$0xf]
        %v1517 = vld [vmem:[#allocation11 + $0x24] sm:$0xf]
        %v1518 = vld [vmem:[#allocation11 + $0x28] sm:$0xf]
        %v1519 = vld [vmem:[#allocation11 + $0x2c] sm:$0xf]
        %v1520 = vld [vmem:[#allocation11 + $0x30] sm:$0xf]
        %v1521 = vld [vmem:[#allocation11 + $0x34] sm:$0xf]
        %v1522 = vld [vmem:[#allocation11 + $0x38] sm:$0xf]
        %v1523 = vld [vmem:[#allocation11 + $0x3c] sm:$0xf]
        %v1524 = vld [vmem:[#allocation11 + $0x40] sm:$0xf]
        %v1525 = vld [vmem:[#allocation11 + $0x44] sm:$0xf]
        %v1526 = vld [vmem:[#allocation11 + $0x48] sm:$0xf]
        %v1527 = vld [vmem:[#allocation11 + $0x4c] sm:$0xf]
        %v1528 = vld [vmem:[#allocation11 + $0x50] sm:$0xf]
        %v1529 = vld [vmem:[#allocation11 + $0x54] sm:$0xf]
        %v1530 = vld [vmem:[#allocation11 + $0x58] sm:$0xf]
        %v1531 = vld [vmem:[#allocation11 + $0x5c] sm:$0xf]
        %v1532 = vld [vmem:[#allocation11 + $0x60] sm:$0xf]
        %v1533 = vld [vmem:[#allocation11 + $0x64] sm:$0xf]
        %v1534 = vld [vmem:[#allocation11 + $0x68] sm:$0xf]
        %v1535 = vld [vmem:[#allocation11 + $0x6c] sm:$0xf]
        %v1536 = vld [vmem:[#allocation11 + $0x70] sm:$0xf]
        %v1537 = vld [vmem:[#allocation11 + $0x74] sm:$0xf]
        %v1538 = vld [vmem:[#allocation11 + $0x78] sm:$0xf]
        %v1539 = vld [vmem:[#allocation11 + $0x7c] sm:$0xf]
        %v1540 = vld [vmem:[#allocation11 + $0x80] sm:$0xf]
        %v1541 = vld [vmem:[#allocation11 + $0x84] sm:$0xf]
        %v1542 = vld [vmem:[#allocation11 + $0x88] sm:$0xf]
        %v1543 = vld [vmem:[#allocation11 + $0x8c] sm:$0xf]
        %v1544 = vld [vmem:[#allocation11 + $0x90] sm:$0xf]
        %v1545 = vld [vmem:[#allocation11 + $0x94] sm:$0xf]
        %v1546 = vld [vmem:[#allocation11 + $0x98] sm:$0xf]
        %v1547 = vld [vmem:[#allocation11 + $0x9c] sm:$0xf]
        %v1548 = vld [vmem:[#allocation11 + $0xa0] sm:$0xf]
        %v1549 = vld [vmem:[#allocation11 + $0xa4] sm:$0xf]
        %v1550 = vld [vmem:[#allocation11 + $0xa8] sm:$0xf]
        %v1551 = vld [vmem:[#allocation11 + $0xac] sm:$0xf]
        %v1552 = vld [vmem:[#allocation11 + $0xb0] sm:$0xf]
        %v1553 = vld [vmem:[#allocation11 + $0xb4] sm:$0xf]
        %v1554 = vld [vmem:[#allocation11 + $0xb8] sm:$0xf]
        %v1555 = vld [vmem:[#allocation11 + $0xbc] sm:$0xf]
        %v1556 = vld [vmem:[#allocation11 + $0xc0] sm:$0xf]
        %v1557 = vld [vmem:[#allocation11 + $0xc4] sm:$0xf]
        %v1558 = vld [vmem:[#allocation11 + $0xc8] sm:$0xf]
        %v1559 = vld [vmem:[#allocation11 + $0xcc] sm:$0xf]
        %v1560 = vld [vmem:[#allocation11 + $0xd0] sm:$0xf]
        %v1561 = vld [vmem:[#allocation11 + $0xd4] sm:$0xf]
        %v1562 = vld [vmem:[#allocation11 + $0xd8] sm:$0xf]
        %v1563 = vld [vmem:[#allocation11 + $0xdc] sm:$0xf]
        %v1564 = vld [vmem:[#allocation11 + $0xe0] sm:$0xf]
        %v1565 = vld [vmem:[#allocation11 + $0xe4] sm:$0xf]
        %v1566 = vld [vmem:[#allocation11 + $0xe8] sm:$0xf]
        %v1567 = vld [vmem:[#allocation11 + $0xec] sm:$0xf]
        %v1568 = vld [vmem:[#allocation11 + $0xf0] sm:$0xf]
        %v1569 = vld [vmem:[#allocation11 + $0xf4] sm:$0xf]
        %v1570 = vld [vmem:[#allocation11 + $0xf8] sm:$0xf]
        %v1571 = vld [vmem:[#allocation11 + $0xfc] sm:$0xf]
        %v1572 = vld [vmem:[#allocation11 + $0x100] sm:$0xf]
        %v1573 = vld [vmem:[#allocation11 + $0x104] sm:$0xf]
        %v1574 = vld [vmem:[#allocation11 + $0x108] sm:$0xf]
        %v1575 = vld [vmem:[#allocation11 + $0x10c] sm:$0xf]
        %v1576 = vld [vmem:[#allocation11 + $0x110] sm:$0xf]
        %v1577 = vld [vmem:[#allocation11 + $0x114] sm:$0xf]
        %v1578 = vld [vmem:[#allocation11 + $0x118] sm:$0xf]
        %v1579 = vld [vmem:[#allocation11 + $0x11c] sm:$0xf]
        %v1580 = vld [vmem:[#allocation11 + $0x120] sm:$0xf]
        %v1581 = vld [vmem:[#allocation11 + $0x124] sm:$0xf]
        %v1582 = vld [vmem:[#allocation11 + $0x128] sm:$0xf]
        %v1583 = vld [vmem:[#allocation11 + $0x12c] sm:$0xf]
        %v1584 = vld [vmem:[#allocation11 + $0x130] sm:$0xf]
        %v1585 = vld [vmem:[#allocation11 + $0x134] sm:$0xf]
        %v1586 = vld [vmem:[#allocation11 + $0x138] sm:$0xf]
        %v1587 = vld [vmem:[#allocation11 + $0x13c] sm:$0xf]
        %v1588 = vld [vmem:[#allocation11 + $0x140] sm:$0xf]
        %v1589 = vld [vmem:[#allocation11 + $0x144] sm:$0xf]
        %v1590 = vld [vmem:[#allocation11 + $0x148] sm:$0xf]
        %v1591 = vld [vmem:[#allocation11 + $0x14c] sm:$0xf]
        %v1592 = vld [vmem:[#allocation11 + $0x150] sm:$0xf]
        %v1593 = vld [vmem:[#allocation11 + $0x154] sm:$0xf]
        %v1594 = vld [vmem:[#allocation11 + $0x158] sm:$0xf]
        %v1595 = vld [vmem:[#allocation11 + $0x15c] sm:$0xf]
        %v1596 = vld [vmem:[#allocation11 + $0x160] sm:$0xf]
        %v1597 = vld [vmem:[#allocation11 + $0x164] sm:$0xf]
        %v1598 = vld [vmem:[#allocation11 + $0x168] sm:$0xf]
        %v1599 = vld [vmem:[#allocation11 + $0x16c] sm:$0xf]
        %v1600 = vld [vmem:[#allocation11 + $0x170] sm:$0xf]
        %v1601 = vld [vmem:[#allocation11 + $0x174] sm:$0xf]
        %v1602 = vld [vmem:[#allocation11 + $0x178] sm:$0xf]
        %v1603 = vld [vmem:[#allocation11 + $0x17c] sm:$0xf]
        %v1604 = vld [vmem:[#allocation11 + $0x180] sm:$0xf]
        %v1605 = vld [vmem:[#allocation11 + $0x184] sm:$0xf]
        %v1606 = vld [vmem:[#allocation11 + $0x188] sm:$0xf]
        %v1607 = vld [vmem:[#allocation11 + $0x18c] sm:$0xf]
        %v1608 = vld [vmem:[#allocation11 + $0x190] sm:$0xf]
        %v1609 = vld [vmem:[#allocation11 + $0x194] sm:$0xf]
        %v1610 = vld [vmem:[#allocation11 + $0x198] sm:$0xf]
        %v1611 = vld [vmem:[#allocation11 + $0x19c] sm:$0xf]
        %v1612 = vld [vmem:[#allocation11 + $0x1a0] sm:$0xf]
        %v1613 = vld [vmem:[#allocation11 + $0x1a4] sm:$0xf]
        %v1614 = vld [vmem:[#allocation11 + $0x1a8] sm:$0xf]
        %v1615 = vld [vmem:[#allocation11 + $0x1ac] sm:$0xf]
        %v1616 = vld [vmem:[#allocation11 + $0x1b0] sm:$0xf]
        %v1617 = vld [vmem:[#allocation11 + $0x1b4] sm:$0xf]
        %v1618 = vld [vmem:[#allocation11 + $0x1b8] sm:$0xf]
        %v1619 = vld [vmem:[#allocation11 + $0x1bc] sm:$0xf]
        %v1620 = vld [vmem:[#allocation11 + $0x1c0] sm:$0xf]
        %v1621 = vld [vmem:[#allocation11 + $0x1c4] sm:$0xf]
        %v1622 = vld [vmem:[#allocation11 + $0x1c8] sm:$0xf]
        %v1623 = vld [vmem:[#allocation11 + $0x1cc] sm:$0xf]
        %v1624 = vld [vmem:[#allocation11 + $0x1d0] sm:$0xf]
        %v1625 = vld [vmem:[#allocation11 + $0x1d4] sm:$0xf]
        %v1626 = vld [vmem:[#allocation11 + $0x1d8] sm:$0xf]
        %v1627 = vld [vmem:[#allocation11 + $0x1dc] sm:$0xf]
        %v1628 = vld [vmem:[#allocation11 + $0x1e0] sm:$0xf]
        %v1629 = vld [vmem:[#allocation11 + $0x1e4] sm:$0xf]
        %v1630 = vld [vmem:[#allocation11 + $0x1e8] sm:$0xf]
        %v1631 = vld [vmem:[#allocation11 + $0x1ec] sm:$0xf]
        %v1632 = vld [vmem:[#allocation11 + $0x1f0] sm:$0xf]
        %v1633 = vld [vmem:[#allocation11 + $0x1f4] sm:$0xf]
        %v1634 = vld [vmem:[#allocation11 + $0x1f8] sm:$0xf]
        %v1635 = vld [vmem:[#allocation11 + $0x1fc] sm:$0xf]
        %v1636 = vld [vmem:[#allocation11 + $0x200] sm:$0xf]
        %v1637 = vld [vmem:[#allocation11 + $0x204] sm:$0xf]
        %v1638 = vld [vmem:[#allocation11 + $0x208] sm:$0xf]
        %v1639 = vld [vmem:[#allocation11 + $0x20c] sm:$0xf]
        %v1640 = vld [vmem:[#allocation11 + $0x210] sm:$0xf]
        %v1641 = vld [vmem:[#allocation11 + $0x214] sm:$0xf]
        %v1642 = vld [vmem:[#allocation11 + $0x218] sm:$0xf]
        %v1643 = vld [vmem:[#allocation11 + $0x21c] sm:$0xf]
        %v1644 = vld [vmem:[#allocation11 + $0x220] sm:$0xf]
        %v1645 = vld [vmem:[#allocation11 + $0x224] sm:$0xf]
        %v1646 = vld [vmem:[#allocation11 + $0x228] sm:$0xf]
        %v1647 = vld [vmem:[#allocation11 + $0x22c] sm:$0xf]
        %v1648 = vld [vmem:[#allocation11 + $0x230] sm:$0xf]
        %v1649 = vld [vmem:[#allocation11 + $0x234] sm:$0xf]
        %v1650 = vld [vmem:[#allocation11 + $0x238] sm:$0xf]
        %v1651 = vld [vmem:[#allocation11 + $0x23c] sm:$0xf]
        %v1652 = vld [vmem:[#allocation3] sm:$0xff]
        %v1653 = vld [vmem:[#allocation3 + $0x8] sm:$0xff]
        %v1654 = vld [vmem:[#allocation3 + $0x10] sm:$0xff]
        %v1655 = vld [vmem:[#allocation3 + $0x18] sm:$0xff]
        %v1656 = vld [vmem:[#allocation3 + $0x20] sm:$0xff]
        %v1657 = vld [vmem:[#allocation3 + $0x28] sm:$0xff]
        %v1658 = vld [vmem:[#allocation3 + $0x30] sm:$0xff]
        %v1659 = vld [vmem:[#allocation3 + $0x38] sm:$0xff]
        %v1660 = vld [vmem:[#allocation3 + $0x40] sm:$0xff]
        %v1661 = vld [vmem:[#allocation3 + $0x48] sm:$0xff]
        %v1662 = vld [vmem:[#allocation3 + $0x50] sm:$0xff]
        %v1663 = vld [vmem:[#allocation3 + $0x58] sm:$0xff]
        %v1664 = vld [vmem:[#allocation3 + $0x60] sm:$0xff]
        %v1665 = vld [vmem:[#allocation3 + $0x68] sm:$0xff]
        %v1666 = vld [vmem:[#allocation3 + $0x70] sm:$0xff]
        %v1667 = vld [vmem:[#allocation3 + $0x78] sm:$0xff]
        %v1668 = vld [vmem:[#allocation3 + $0x80] sm:$0xff]
        %v1669 = vld [vmem:[#allocation3 + $0x88] sm:$0xff]
        %v1670 = vld [vmem:[#allocation3 + $0x90] sm:$0xff]
        %v1671 = vld [vmem:[#allocation3 + $0x98] sm:$0xff]
        %v1672 = vld [vmem:[#allocation3 + $0xa0] sm:$0xff]
        %v1673 = vld [vmem:[#allocation3 + $0xa8] sm:$0xff]
        %v1674 = vld [vmem:[#allocation3 + $0xb0] sm:$0xff]
        %v1675 = vld [vmem:[#allocation3 + $0xb8] sm:$0xff]
        %v1676 = vld [vmem:[#allocation3 + $0xc0] sm:$0xff]
        %v1677 = vld [vmem:[#allocation3 + $0xc8] sm:$0xff]
        %v1678 = vld [vmem:[#allocation3 + $0xd0] sm:$0xff]
        %v1679 = vld [vmem:[#allocation3 + $0xd8] sm:$0xff]
        %v1680 = vld [vmem:[#allocation3 + $0xe0] sm:$0xff]
        %v1681 = vld [vmem:[#allocation3 + $0xe8] sm:$0xff]
        %v1682 = vld [vmem:[%s1402] sm:$0xff]
        %v1683 = vld [vmem:[%s1402 + $0x8] sm:$0xff]
        %v1684 = vld [vmem:[%s1402 + $0x10] sm:$0xff]
        %v1685 = vld [vmem:[%s1402 + $0x18] sm:$0xff]
        %v1686 = vld [vmem:[%s1402 + $0x20] sm:$0xff]
        %v1687 = vld [vmem:[%s1402 + $0x28] sm:$0xff]
        %v1688 = vld [vmem:[%s1402 + $0x30] sm:$0xff]
        %v1689 = vld [vmem:[%s1402 + $0x38] sm:$0xff]
        %v1690 = vld [vmem:[%s1402 + $0x40] sm:$0xff]
        %v1691 = vld [vmem:[%s1402 + $0x48] sm:$0xff]
        %v1692 = vld [vmem:[%s1402 + $0x50] sm:$0xff]
        %v1693 = vld [vmem:[%s1402 + $0x58] sm:$0xff]
        %v1694 = vld [vmem:[%s1402 + $0x60] sm:$0xff]
        %v1695 = vld [vmem:[%s1402 + $0x68] sm:$0xff]
        %v1696 = vld [vmem:[%s1402 + $0x70] sm:$0xff]
        %v1697 = vld [vmem:[%s1402 + $0x78] sm:$0xff]
        %v1698 = vld [vmem:[%s1402 + $0x80] sm:$0xff]
        %v1699 = vld [vmem:[%s1402 + $0x88] sm:$0xff]
        %v1700 = vld [vmem:[%s1402 + $0x90] sm:$0xff]
        %v1701 = vld [vmem:[%s1402 + $0x98] sm:$0xff]
        %v1702 = vld [vmem:[%s1402 + $0xa0] sm:$0xff]
        %v1703 = vld [vmem:[%s1402 + $0xa8] sm:$0xff]
        %v1704 = vld [vmem:[%s1402 + $0xb0] sm:$0xff]
        %v1705 = vld [vmem:[%s1402 + $0xb8] sm:$0xff]
        %v1706 = vld [vmem:[%s1402 + $0xc0] sm:$0xff]
        %v1707 = vld [vmem:[%s1402 + $0xc8] sm:$0xff]
        %v1708 = vld [vmem:[%s1402 + $0xd0] sm:$0xff]
        %v1709 = vld [vmem:[%s1402 + $0xd8] sm:$0xff]
        %v1710 = vld [vmem:[%s1402 + $0xe0] sm:$0xff]
        %v1711 = vld [vmem:[%s1402 + $0xe8] sm:$0xff]
        %v1760 = vunpack.c.l.b16 %v1556
        %v1761 = vunpack.c.l.b16 %v1557
        %v1762 = vunpack.c.l.b16 %v1558
        %v1763 = vunpack.c.l.b16 %v1559
        %v1764 = vunpack.c.l.b16 %v1560
        %v1765 = vunpack.c.l.b16 %v1561
        %v1766 = vunpack.c.l.b16 %v1562
        %v1767 = vunpack.c.l.b16 %v1563
        %v1768 = vunpack.c.l.b16 %v1564
        %v1769 = vunpack.c.l.b16 %v1565
        %v1770 = vunpack.c.l.b16 %v1566
        %v1771 = vunpack.c.l.b16 %v1567
        %v1772 = vunpack.c.l.b16 %v1568
        %v1773 = vunpack.c.l.b16 %v1569
        %v1774 = vunpack.c.l.b16 %v1570
        %v1775 = vunpack.c.l.b16 %v1571
        %v1776 = vunpack.c.l.b16 %v1572
        %v1777 = vunpack.c.l.b16 %v1573
        %v1778 = vunpack.c.l.b16 %v1574
        %v1779 = vunpack.c.l.b16 %v1575
        %v1780 = vunpack.c.l.b16 %v1576
        %v1781 = vunpack.c.l.b16 %v1577
        %v1782 = vunpack.c.l.b16 %v1578
        %v1783 = vunpack.c.l.b16 %v1579
        %v1784 = vunpack.c.l.b16 %v1580
        %v1785 = vunpack.c.l.b16 %v1581
        %v1786 = vunpack.c.l.b16 %v1582
        %v1787 = vunpack.c.l.b16 %v1583
        %v1788 = vunpack.c.l.b16 %v1584
        %v1789 = vunpack.c.l.b16 %v1585
        %v1790 = vunpack.c.l.b16 %v1586
        %v1791 = vunpack.c.l.b16 %v1587
        %v1792 = vunpack.c.l.b16 %v1588
        %v1793 = vunpack.c.l.b16 %v1589
        %v1794 = vunpack.c.l.b16 %v1590
        %v1795 = vunpack.c.l.b16 %v1591
        %v1796 = vunpack.c.l.b16 %v1592
        %v1797 = vunpack.c.l.b16 %v1593
        %v1798 = vunpack.c.l.b16 %v1594
        %v1799 = vunpack.c.l.b16 %v1595
        %v1800 = vunpack.c.l.b16 %v1596
        %v1801 = vunpack.c.l.b16 %v1597
        %v1802 = vunpack.c.l.b16 %v1598
        %v1803 = vunpack.c.l.b16 %v1599
        %v1804 = vunpack.c.l.b16 %v1600
        %v1805 = vunpack.c.l.b16 %v1601
        %v1806 = vunpack.c.l.b16 %v1602
        %v1807 = vunpack.c.l.b16 %v1603
        %v1808 = vpack.c.b16 %v1761, %v1760
        %v1809 = vpack.c.b16 %v1763, %v1762
        %v1810 = vpack.c.b16 %v1765, %v1764
        %v1811 = vpack.c.b16 %v1767, %v1766
        %v1812 = vpack.c.b16 %v1769, %v1768
        %v1813 = vpack.c.b16 %v1771, %v1770
        %v1814 = vpack.c.b16 %v1773, %v1772
        %v1815 = vpack.c.b16 %v1775, %v1774
        %v1816 = vpack.c.b16 %v1777, %v1776
        %v1817 = vpack.c.b16 %v1779, %v1778
        %v1818 = vpack.c.b16 %v1781, %v1780
        %v1819 = vpack.c.b16 %v1783, %v1782
        %v1820 = vpack.c.b16 %v1785, %v1784
        %v1821 = vpack.c.b16 %v1787, %v1786
        %v1822 = vpack.c.b16 %v1789, %v1788
        %v1823 = vpack.c.b16 %v1791, %v1790
        %v1824 = vpack.c.b16 %v1793, %v1792
        %v1825 = vpack.c.b16 %v1795, %v1794
        %v1826 = vpack.c.b16 %v1797, %v1796
        %v1827 = vpack.c.b16 %v1799, %v1798
        %v1828 = vpack.c.b16 %v1801, %v1800
        %v1829 = vpack.c.b16 %v1803, %v1802
        %v1830 = vpack.c.b16 %v1805, %v1804
        %v1831 = vpack.c.b16 %v1807, %v1806
        %1856 = vmatprep.subr.bf16.mxu0 0
        %1857 = vmatpush1.bf16.msra.mxu0 %v1808
        %1858 = vmatprep.subr.bf16.mxu0 0
        %1859 = vmatpush1.bf16.msra.mxu0 %v1809
        %1860 = vmatprep.subr.bf16.mxu0 0
        %1861 = vmatpush1.bf16.msra.mxu0 %v1810
        %1862 = vmatprep.subr.bf16.mxu0 0
        %1863 = vmatpush1.bf16.msra.mxu0 %v1811
        %1864 = vmatprep.subr.bf16.mxu0 0
        %1865 = vmatpush1.bf16.msra.mxu0 %v1812
        %1866 = vmatprep.subr.bf16.mxu0 0
        %1867 = vmatpush1.bf16.msra.mxu0 %v1813
        %1868 = vmatprep.subr.bf16.mxu0 0
        %1869 = vmatpush1.bf16.msra.mxu0 %v1814
        %1870 = vmatprep.subr.bf16.mxu0 0
        %1871 = vmatpush1.bf16.msra.mxu0 %v1815
        %1872 = vmatprep.subr.bf16.mxu0 0
        %1873 = vmatpush1.bf16.msra.mxu0 %v1816
        %1874 = vmatprep.subr.bf16.mxu0 0
        %1875 = vmatpush1.bf16.msra.mxu0 %v1817
        %1876 = vmatprep.subr.bf16.mxu0 0
        %1877 = vmatpush1.bf16.msra.mxu0 %v1818
        %1878 = vmatprep.subr.bf16.mxu0 0
        %1879 = vmatpush1.bf16.msra.mxu0 %v1819
        %1880 = vmatprep.subr.bf16.mxu0 0
        %1881 = vmatpush1.bf16.msra.mxu0 %v1820
        %1882 = vmatprep.subr.bf16.mxu0 0
        %1883 = vmatpush1.bf16.msra.mxu0 %v1821
        %1884 = vmatprep.subr.bf16.mxu0 0
        %1885 = vmatpush1.bf16.msra.mxu0 %v1822
        %1886 = vmatprep.subr.bf16.mxu0 0
        %1887 = vmatpush1.bf16.msra.mxu0 %v1823
        %1888 = vmatprep.mubr.bf16.mxu0 %v1683
        %1889 = vmatmul.mubr.bf16.gmra.mrb[0].mxu0 %v1682
        %v1890 = vpop.f32.mrb[0].mxu0
        %v1891 = vpop.f32.mrb[0].mxu0
        %v1892 = vpop.f32.mrb[0].mxu0
        %v1893 = vpop.f32.mrb[0].mxu0
        %1894 = vmatprep.mubr.bf16.mxu0 %v1686
        %1895 = vmatmul.mubr.bf16.gmra.mrb[0].mxu0 %v1685
        %v1896 = vpop.f32.mrb[0].mxu0
        %v1897 = vadd.f32 0.0, %v1896
        %v1898 = vpop.f32.mrb[0].mxu0
        %v1899 = vpop.f32.mrb[0].mxu0
        %v1900 = vadd.f32 0.0, %v1899
        %v1901 = vpop.f32.mrb[0].mxu0
        %1902 = vmatprep.mubr.bf16.mxu0 %v1689
        %1903 = vmatmul.mubr.bf16.gmra.mrb[0].mxu0 %v1688
        %v1904 = vpop.f32.mrb[0].mxu0
        %v1905 = vadd.f32 0.0, %v1904
        %v1906 = vpop.f32.mrb[0].mxu0
        %v1907 = vpop.f32.mrb[0].mxu0
        %v1908 = vadd.f32 0.0, %v1907
        %v1909 = vpop.f32.mrb[0].mxu0
        %1910 = vmatprep.mubr.bf16.mxu0 %v1692
        %1911 = vmatmul.mubr.bf16.gmra.mrb[0].mxu0 %v1691
        %v1912 = vpop.f32.mrb[0].mxu0
        %v1913 = vadd.f32 0.0, %v1912
        %v1914 = vpop.f32.mrb[0].mxu0
        %v1915 = vpop.f32.mrb[0].mxu0
        %v1916 = vadd.f32 0.0, %v1915
        %v1917 = vpop.f32.mrb[0].mxu0
        %1918 = vmatprep.mubr.bf16.mxu0 %v1695
        %1919 = vmatmul.mubr.bf16.gmra.mrb[0].mxu0 %v1694
        %v1920 = vpop.f32.mrb[0].mxu0
        %v1921 = vadd.f32 0.0, %v1920
        %v1922 = vpop.f32.mrb[0].mxu0
        %v1923 = vpop.f32.mrb[0].mxu0
        %v1924 = vadd.f32 0.0, %v1923
        %v1925 = vpop.f32.mrb[0].mxu0
        %1926 = vmatprep.mubr.bf16.mxu0 %v1698
        %1927 = vmatmul.mubr.bf16.gmra.mrb[0].mxu0 %v1697
        %v1928 = vpop.f32.mrb[0].mxu0
        %v1929 = vadd.f32 0.0, %v1928
        %v1930 = vpop.f32.mrb[0].mxu0
        %v1931 = vpop.f32.mrb[0].mxu0
        %v1932 = vadd.f32 0.0, %v1931
        %v1933 = vpop.f32.mrb[0].mxu0
        %1934 = vmatprep.mubr.bf16.mxu0 %v1701
        %1935 = vmatmul.mubr.bf16.gmra.mrb[0].mxu0 %v1700
        %v1936 = vpop.f32.mrb[0].mxu0
        %v1937 = vadd.f32 0.0, %v1936
        %v1938 = vpop.f32.mrb[0].mxu0
        %v1939 = vpop.f32.mrb[0].mxu0
        %v1940 = vadd.f32 0.0, %v1939
        %v1941 = vpop.f32.mrb[0].mxu0
        %1942 = vmatprep.mubr.bf16.mxu0 %v1704
        %1943 = vmatmul.mubr.bf16.gmra.mrb[0].mxu0 %v1703
        %v1944 = vpop.f32.mrb[0].mxu0
        %v1945 = vadd.f32 0.0, %v1944
        %v1946 = vpop.f32.mrb[0].mxu0
        %v1947 = vpop.f32.mrb[0].mxu0
        %v1948 = vadd.f32 0.0, %v1947
        %v1949 = vpop.f32.mrb[0].mxu0
        %1950 = vmatprep.mubr.bf16.mxu0 %v1707
        %1951 = vmatmul.mubr.bf16.gmra.mrb[0].mxu0 %v1706
        %v1952 = vpop.f32.mrb[0].mxu0
        %v1953 = vadd.f32 0.0, %v1952
        %v1954 = vpop.f32.mrb[0].mxu0
        %v1955 = vpop.f32.mrb[0].mxu0
        %v1956 = vadd.f32 0.0, %v1955
        %v1957 = vpop.f32.mrb[0].mxu0
        %1958 = vmatprep.mubr.bf16.mxu0 %v1710
        %1959 = vmatmul.mubr.bf16.gmra.mrb[0].mxu0 %v1709
        %v1960 = vpop.f32.mrb[0].mxu0
        %v1961 = vpop.f32.mrb[0].mxu0
        %v1962 = vpop.f32.mrb[0].mxu0
        %v1963 = vpop.f32.mrb[0].mxu0
        %1964 = vdwg.mxu0
        %1965 = vmatprep.subr.bf16.mxu0 0
        %1966 = vmatpush1.bf16.msra.mxu0 %v1824
        %1967 = vmatprep.subr.bf16.mxu0 0
        %1968 = vmatpush1.bf16.msra.mxu0 %v1825
        %1969 = vmatprep.subr.bf16.mxu0 0
        %1970 = vmatpush1.bf16.msra.mxu0 %v1826
        %1971 = vmatprep.subr.bf16.mxu0 0
        %1972 = vmatpush1.bf16.msra.mxu0 %v1827
        %1973 = vmatprep.subr.bf16.mxu0 0
        %1974 = vmatpush1.bf16.msra.mxu0 %v1828
        %1975 = vmatprep.subr.bf16.mxu0 0
        %1976 = vmatpush1.bf16.msra.mxu0 %v1829
        %1977 = vmatprep.subr.bf16.mxu0 0
        %1978 = vmatpush1.bf16.msra.mxu0 %v1830
        %1979 = vmatprep.subr.bf16.mxu0 0
        %1980 = vmatpush1.bf16.msra.mxu0 %v1831
        %1981 = vmatprep.subr.bf16.mxu0 0
        %1982 = vmatpush1.bf16.msra.mxu0 0
        %1983 = vmatprep.subr.bf16.mxu0 0
        %1984 = vmatpush1.bf16.msra.mxu0 0
        %1985 = vmatprep.subr.bf16.mxu0 0
        %1986 = vmatpush1.bf16.msra.mxu0 0
        %1987 = vmatprep.subr.bf16.mxu0 0
        %1988 = vmatpush1.bf16.msra.mxu0 0
        %1989 = vmatprep.subr.bf16.mxu0 0
        %1990 = vmatpush1.bf16.msra.mxu0 0
        %1991 = vmatprep.subr.bf16.mxu0 0
        %1992 = vmatpush1.bf16.msra.mxu0 0
        %1993 = vmatprep.subr.bf16.mxu0 0
        %1994 = vmatpush1.bf16.msra.mxu0 0
        %1995 = vmatprep.subr.bf16.mxu0 0
        %1996 = vmatpush1.bf16.msra.mxu0 0
        %1997 = vmatprep.mubr.bf16.mxu0 0
        %1998 = vmatmul.mubr.bf16.gmra.mrb[0].mxu0 %v1684
        %v1999 = vpop.f32.mrb[0].mxu0
        %v2000 = vpop.f32.mrb[0].mxu0
        %v2001 = vpop.f32.mrb[0].mxu0
        %v2002 = vpop.f32.mrb[0].mxu0
        %2003 = vmatprep.mubr.bf16.mxu0 0
        %2004 = vmatmul.mubr.bf16.gmra.mrb[0].mxu0 %v1687
        %v2005 = vpop.f32.mrb[0].mxu0
        %v2006 = vadd.f32 %v1897, %v2005
        %v2007 = vpop.f32.mrb[0].mxu0
        %v2008 = vpop.f32.mrb[0].mxu0
        %v2009 = vadd.f32 %v1900, %v2008
        %v2010 = vpop.f32.mrb[0].mxu0
        %2011 = vmatprep.mubr.bf16.mxu0 0
        %2012 = vmatmul.mubr.bf16.gmra.mrb[0].mxu0 %v1690
        %v2013 = vpop.f32.mrb[0].mxu0
        %v2014 = vadd.f32 %v1905, %v2013
        %v2015 = vpop.f32.mrb[0].mxu0
        %v2016 = vpop.f32.mrb[0].mxu0
        %v2017 = vadd.f32 %v1908, %v2016
        %v2018 = vpop.f32.mrb[0].mxu0
        %2019 = vmatprep.mubr.bf16.mxu0 0
        %2020 = vmatmul.mubr.bf16.gmra.mrb[0].mxu0 %v1693
        %v2021 = vpop.f32.mrb[0].mxu0
        %v2022 = vadd.f32 %v1913, %v2021
        %v2023 = vpop.f32.mrb[0].mxu0
        %v2024 = vpop.f32.mrb[0].mxu0
        %v2025 = vadd.f32 %v1916, %v2024
        %v2026 = vpop.f32.mrb[0].mxu0
        %2027 = vmatprep.mubr.bf16.mxu0 0
        %2028 = vmatmul.mubr.bf16.gmra.mrb[0].mxu0 %v1696
        %v2029 = vpop.f32.mrb[0].mxu0
        %v2030 = vadd.f32 %v1921, %v2029
        %v2031 = vpop.f32.mrb[0].mxu0
        %v2032 = vpop.f32.mrb[0].mxu0
        %v2033 = vadd.f32 %v1924, %v2032
        %v2034 = vpop.f32.mrb[0].mxu0
        %2035 = vmatprep.mubr.bf16.mxu0 0
        %2036 = vmatmul.mubr.bf16.gmra.mrb[0].mxu0 %v1699
        %v2037 = vpop.f32.mrb[0].mxu0
        %v2038 = vadd.f32 %v1929, %v2037
        %v2039 = vpop.f32.mrb[0].mxu0
        %v2040 = vpop.f32.mrb[0].mxu0
        %v2041 = vadd.f32 %v1932, %v2040
        %v2042 = vpop.f32.mrb[0].mxu0
        %2043 = vmatprep.mubr.bf16.mxu0 0
        %2044 = vmatmul.mubr.bf16.gmra.mrb[0].mxu0 %v1702
        %v2045 = vpop.f32.mrb[0].mxu0
        %v2046 = vadd.f32 %v1937, %v2045
        %v2047 = vpop.f32.mrb[0].mxu0
        %v2048 = vpop.f32.mrb[0].mxu0
        %v2049 = vadd.f32 %v1940, %v2048
        %v2050 = vpop.f32.mrb[0].mxu0
        %2051 = vmatprep.mubr.bf16.mxu0 0
        %2052 = vmatmul.mubr.bf16.gmra.mrb[0].mxu0 %v1705
        %v2053 = vpop.f32.mrb[0].mxu0
        %v2054 = vadd.f32 %v1945, %v2053
        %v2055 = vpop.f32.mrb[0].mxu0
        %v2056 = vpop.f32.mrb[0].mxu0
        %v2057 = vadd.f32 %v1948, %v2056
        %v2058 = vpop.f32.mrb[0].mxu0
        %2059 = vmatprep.mubr.bf16.mxu0 0
        %2060 = vmatmul.mubr.bf16.gmra.mrb[0].mxu0 %v1708
        %v2061 = vpop.f32.mrb[0].mxu0
        %v2062 = vadd.f32 %v1953, %v2061
        %v2063 = vpop.f32.mrb[0].mxu0
        %v2064 = vpop.f32.mrb[0].mxu0
        %v2065 = vadd.f32 %v1956, %v2064
        %v2066 = vpop.f32.mrb[0].mxu0
        %2067 = vmatprep.mubr.bf16.mxu0 0
        %2068 = vmatmul.mubr.bf16.gmra.mrb[0].mxu0 %v1711
        %v2069 = vpop.f32.mrb[0].mxu0
        %v2070 = vpop.f32.mrb[0].mxu0
        %v2071 = vpop.f32.mrb[0].mxu0
        %v2072 = vpop.f32.mrb[0].mxu0
        %2073 = vdwg.mxu0
        %v2122 = vunpack.c.l.b16 %v1508
        %v2123 = vunpack.c.l.b16 %v1509
        %v2124 = vunpack.c.l.b16 %v1510
        %v2125 = vunpack.c.l.b16 %v1511
        %v2126 = vunpack.c.l.b16 %v1512
        %v2127 = vunpack.c.l.b16 %v1513
        %v2128 = vunpack.c.l.b16 %v1514
        %v2129 = vunpack.c.l.b16 %v1515
        %v2130 = vunpack.c.l.b16 %v1516
        %v2131 = vunpack.c.l.b16 %v1517
        %v2132 = vunpack.c.l.b16 %v1518
        %v2133 = vunpack.c.l.b16 %v1519
        %v2134 = vunpack.c.l.b16 %v1520
        %v2135 = vunpack.c.l.b16 %v1521
        %v2136 = vunpack.c.l.b16 %v1522
        %v2137 = vunpack.c.l.b16 %v1523
        %v2138 = vunpack.c.l.b16 %v1524
        %v2139 = vunpack.c.l.b16 %v1525
        %v2140 = vunpack.c.l.b16 %v1526
        %v2141 = vunpack.c.l.b16 %v1527
        %v2142 = vunpack.c.l.b16 %v1528
        %v2143 = vunpack.c.l.b16 %v1529
        %v2144 = vunpack.c.l.b16 %v1530
        %v2145 = vunpack.c.l.b16 %v1531
        %v2146 = vunpack.c.l.b16 %v1532
        %v2147 = vunpack.c.l.b16 %v1533
        %v2148 = vunpack.c.l.b16 %v1534
        %v2149 = vunpack.c.l.b16 %v1535
        %v2150 = vunpack.c.l.b16 %v1536
        %v2151 = vunpack.c.l.b16 %v1537
        %v2152 = vunpack.c.l.b16 %v1538
        %v2153 = vunpack.c.l.b16 %v1539
        %v2154 = vunpack.c.l.b16 %v1540
        %v2155 = vunpack.c.l.b16 %v1541
        %v2156 = vunpack.c.l.b16 %v1542
        %v2157 = vunpack.c.l.b16 %v1543
        %v2158 = vunpack.c.l.b16 %v1544
        %v2159 = vunpack.c.l.b16 %v1545
        %v2160 = vunpack.c.l.b16 %v1546
        %v2161 = vunpack.c.l.b16 %v1547
        %v2162 = vunpack.c.l.b16 %v1548
        %v2163 = vunpack.c.l.b16 %v1549
        %v2164 = vunpack.c.l.b16 %v1550
        %v2165 = vunpack.c.l.b16 %v1551
        %v2166 = vunpack.c.l.b16 %v1552
        %v2167 = vunpack.c.l.b16 %v1553
        %v2168 = vunpack.c.l.b16 %v1554
        %v2169 = vunpack.c.l.b16 %v1555
        %v2170 = vpack.c.b16 %v2123, %v2122
        %v2171 = vpack.c.b16 %v2125, %v2124
        %v2172 = vpack.c.b16 %v2127, %v2126
        %v2173 = vpack.c.b16 %v2129, %v2128
        %v2174 = vpack.c.b16 %v2131, %v2130
        %v2175 = vpack.c.b16 %v2133, %v2132
        %v2176 = vpack.c.b16 %v2135, %v2134
        %v2177 = vpack.c.b16 %v2137, %v2136
        %v2178 = vpack.c.b16 %v2139, %v2138
        %v2179 = vpack.c.b16 %v2141, %v2140
        %v2180 = vpack.c.b16 %v2143, %v2142
        %v2181 = vpack.c.b16 %v2145, %v2144
        %v2182 = vpack.c.b16 %v2147, %v2146
        %v2183 = vpack.c.b16 %v2149, %v2148
        %v2184 = vpack.c.b16 %v2151, %v2150
        %v2185 = vpack.c.b16 %v2153, %v2152
        %v2186 = vpack.c.b16 %v2155, %v2154
        %v2187 = vpack.c.b16 %v2157, %v2156
        %v2188 = vpack.c.b16 %v2159, %v2158
        %v2189 = vpack.c.b16 %v2161, %v2160
        %v2190 = vpack.c.b16 %v2163, %v2162
        %v2191 = vpack.c.b16 %v2165, %v2164
        %v2192 = vpack.c.b16 %v2167, %v2166
        %v2193 = vpack.c.b16 %v2169, %v2168
        %2218 = vmatprep.subr.bf16.mxu0 0
        %2219 = vmatpush1.bf16.msra.mxu0 %v2170
        %2220 = vmatprep.subr.bf16.mxu0 0
        %2221 = vmatpush1.bf16.msra.mxu0 %v2171
        %2222 = vmatprep.subr.bf16.mxu0 0
        %2223 = vmatpush1.bf16.msra.mxu0 %v2172
        %2224 = vmatprep.subr.bf16.mxu0 0
        %2225 = vmatpush1.bf16.msra.mxu0 %v2173
        %2226 = vmatprep.subr.bf16.mxu0 0
        %2227 = vmatpush1.bf16.msra.mxu0 %v2174
        %2228 = vmatprep.subr.bf16.mxu0 0
        %2229 = vmatpush1.bf16.msra.mxu0 %v2175
        %2230 = vmatprep.subr.bf16.mxu0 0
        %2231 = vmatpush1.bf16.msra.mxu0 %v2176
        %2232 = vmatprep.subr.bf16.mxu0 0
        %2233 = vmatpush1.bf16.msra.mxu0 %v2177
        %2234 = vmatprep.subr.bf16.mxu0 0
        %2235 = vmatpush1.bf16.msra.mxu0 %v2178
        %2236 = vmatprep.subr.bf16.mxu0 0
        %2237 = vmatpush1.bf16.msra.mxu0 %v2179
        %2238 = vmatprep.subr.bf16.mxu0 0
        %2239 = vmatpush1.bf16.msra.mxu0 %v2180
        %2240 = vmatprep.subr.bf16.mxu0 0
        %2241 = vmatpush1.bf16.msra.mxu0 %v2181
        %2242 = vmatprep.subr.bf16.mxu0 0
        %2243 = vmatpush1.bf16.msra.mxu0 %v2182
        %2244 = vmatprep.subr.bf16.mxu0 0
        %2245 = vmatpush1.bf16.msra.mxu0 %v2183
        %2246 = vmatprep.subr.bf16.mxu0 0
        %2247 = vmatpush1.bf16.msra.mxu0 %v2184
        %2248 = vmatprep.subr.bf16.mxu0 0
        %2249 = vmatpush1.bf16.msra.mxu0 %v2185
        %2250 = vmatprep.mubr.bf16.mxu0 %v1653
        %2251 = vmatmul.mubr.bf16.gmra.mrb[0].mxu0 %v1652
        %v2252 = vpop.f32.mrb[0].mxu0
        %v2253 = vpop.f32.mrb[0].mxu0
        %v2254 = vpop.f32.mrb[0].mxu0
        %v2255 = vpop.f32.mrb[0].mxu0
        %2256 = vmatprep.mubr.bf16.mxu0 %v1656
        %2257 = vmatmul.mubr.bf16.gmra.mrb[0].mxu0 %v1655
        %v2258 = vpop.f32.mrb[0].mxu0
        %v2259 = vadd.f32 %v2006, %v2258
        %v2260 = vpop.f32.mrb[0].mxu0
        %v2261 = vpop.f32.mrb[0].mxu0
        %v2262 = vadd.f32 %v2009, %v2261
        %v2263 = vpop.f32.mrb[0].mxu0
        %2264 = vmatprep.mubr.bf16.mxu0 %v1659
        %2265 = vmatmul.mubr.bf16.gmra.mrb[0].mxu0 %v1658
        %v2266 = vpop.f32.mrb[0].mxu0
        %v2267 = vadd.f32 %v2014, %v2266
        %v2268 = vpop.f32.mrb[0].mxu0
        %v2269 = vpop.f32.mrb[0].mxu0
        %v2270 = vadd.f32 %v2017, %v2269
        %v2271 = vpop.f32.mrb[0].mxu0
        %2272 = vmatprep.mubr.bf16.mxu0 %v1662
        %2273 = vmatmul.mubr.bf16.gmra.mrb[0].mxu0 %v1661
        %v2274 = vpop.f32.mrb[0].mxu0
        %v2275 = vadd.f32 %v2022, %v2274
        %v2276 = vpop.f32.mrb[0].mxu0
        %v2277 = vpop.f32.mrb[0].mxu0
        %v2278 = vadd.f32 %v2025, %v2277
        %v2279 = vpop.f32.mrb[0].mxu0
        %2280 = vmatprep.mubr.bf16.mxu0 %v1665
        %2281 = vmatmul.mubr.bf16.gmra.mrb[0].mxu0 %v1664
        %v2282 = vpop.f32.mrb[0].mxu0
        %v2283 = vadd.f32 %v2030, %v2282
        %v2284 = vpop.f32.mrb[0].mxu0
        %v2285 = vpop.f32.mrb[0].mxu0
        %v2286 = vadd.f32 %v2033, %v2285
        %v2287 = vpop.f32.mrb[0].mxu0
        %2288 = vmatprep.mubr.bf16.mxu0 %v1668
        %2289 = vmatmul.mubr.bf16.gmra.mrb[0].mxu0 %v1667
        %v2290 = vpop.f32.mrb[0].mxu0
        %v2291 = vadd.f32 %v2038, %v2290
        %v2292 = vpop.f32.mrb[0].mxu0
        %v2293 = vpop.f32.mrb[0].mxu0
        %v2294 = vadd.f32 %v2041, %v2293
        %v2295 = vpop.f32.mrb[0].mxu0
        %2296 = vmatprep.mubr.bf16.mxu0 %v1671
        %2297 = vmatmul.mubr.bf16.gmra.mrb[0].mxu0 %v1670
        %v2298 = vpop.f32.mrb[0].mxu0
        %v2299 = vadd.f32 %v2046, %v2298
        %v2300 = vpop.f32.mrb[0].mxu0
        %v2301 = vpop.f32.mrb[0].mxu0
        %v2302 = vadd.f32 %v2049, %v2301
        %v2303 = vpop.f32.mrb[0].mxu0
        %2304 = vmatprep.mubr.bf16.mxu0 %v1674
        %2305 = vmatmul.mubr.bf16.gmra.mrb[0].mxu0 %v1673
        %v2306 = vpop.f32.mrb[0].mxu0
        %v2307 = vadd.f32 %v2054, %v2306
        %v2308 = vpop.f32.mrb[0].mxu0
        %v2309 = vpop.f32.mrb[0].mxu0
        %v2310 = vadd.f32 %v2057, %v2309
        %v2311 = vpop.f32.mrb[0].mxu0
        %2312 = vmatprep.mubr.bf16.mxu0 %v1677
        %2313 = vmatmul.mubr.bf16.gmra.mrb[0].mxu0 %v1676
        %v2314 = vpop.f32.mrb[0].mxu0
        %v2315 = vadd.f32 %v2062, %v2314
        %v2316 = vpop.f32.mrb[0].mxu0
        %v2317 = vpop.f32.mrb[0].mxu0
        %v2318 = vadd.f32 %v2065, %v2317
        %v2319 = vpop.f32.mrb[0].mxu0
        %2320 = vmatprep.mubr.bf16.mxu0 %v1680
        %2321 = vmatmul.mubr.bf16.gmra.mrb[0].mxu0 %v1679
        %v2322 = vpop.f32.mrb[0].mxu0
        %v2323 = vpop.f32.mrb[0].mxu0
        %v2324 = vpop.f32.mrb[0].mxu0
        %v2325 = vpop.f32.mrb[0].mxu0
        %2326 = vdwg.mxu0
        %2327 = vmatprep.subr.bf16.mxu0 0
        %2328 = vmatpush1.bf16.msra.mxu0 %v2186
        %2329 = vmatprep.subr.bf16.mxu0 0
        %2330 = vmatpush1.bf16.msra.mxu0 %v2187
        %2331 = vmatprep.subr.bf16.mxu0 0
        %2332 = vmatpush1.bf16.msra.mxu0 %v2188
        %2333 = vmatprep.subr.bf16.mxu0 0
        %2334 = vmatpush1.bf16.msra.mxu0 %v2189
        %2335 = vmatprep.subr.bf16.mxu0 0
        %2336 = vmatpush1.bf16.msra.mxu0 %v2190
        %2337 = vmatprep.subr.bf16.mxu0 0
        %2338 = vmatpush1.bf16.msra.mxu0 %v2191
        %2339 = vmatprep.subr.bf16.mxu0 0
        %2340 = vmatpush1.bf16.msra.mxu0 %v2192
        %2341 = vmatprep.subr.bf16.mxu0 0
        %2342 = vmatpush1.bf16.msra.mxu0 %v2193
        %2343 = vmatprep.subr.bf16.mxu0 0
        %2344 = vmatpush1.bf16.msra.mxu0 0
        %2345 = vmatprep.subr.bf16.mxu0 0
        %2346 = vmatpush1.bf16.msra.mxu0 0
        %2347 = vmatprep.subr.bf16.mxu0 0
        %2348 = vmatpush1.bf16.msra.mxu0 0
        %2349 = vmatprep.subr.bf16.mxu0 0
        %2350 = vmatpush1.bf16.msra.mxu0 0
        %2351 = vmatprep.subr.bf16.mxu0 0
        %2352 = vmatpush1.bf16.msra.mxu0 0
        %2353 = vmatprep.subr.bf16.mxu0 0
        %2354 = vmatpush1.bf16.msra.mxu0 0
        %2355 = vmatprep.subr.bf16.mxu0 0
        %2356 = vmatpush1.bf16.msra.mxu0 0
        %2357 = vmatprep.subr.bf16.mxu0 0
        %2358 = vmatpush1.bf16.msra.mxu0 0
        %2359 = vmatprep.mubr.bf16.mxu0 0
        %2360 = vmatmul.mubr.bf16.gmra.mrb[0].mxu0 %v1654
        %v2361 = vpop.f32.mrb[0].mxu0
        %v2362 = vpop.f32.mrb[0].mxu0
        %v2363 = vpop.f32.mrb[0].mxu0
        %v2364 = vpop.f32.mrb[0].mxu0
        %2365 = vmatprep.mubr.bf16.mxu0 0
        %2366 = vmatmul.mubr.bf16.gmra.mrb[0].mxu0 %v1657
        %v2367 = vpop.f32.mrb[0].mxu0
        %v2368 = vadd.f32 %v2259, %v2367
        %v2369 = vpop.f32.mrb[0].mxu0
        %v2370 = vpop.f32.mrb[0].mxu0
        %v2371 = vadd.f32 %v2262, %v2370
        %v2372 = vpop.f32.mrb[0].mxu0
        %2373 = vmatprep.mubr.bf16.mxu0 0
        %2374 = vmatmul.mubr.bf16.gmra.mrb[0].mxu0 %v1660
        %v2375 = vpop.f32.mrb[0].mxu0
        %v2376 = vadd.f32 %v2267, %v2375
        %v2377 = vpop.f32.mrb[0].mxu0
        %v2378 = vpop.f32.mrb[0].mxu0
        %v2379 = vadd.f32 %v2270, %v2378
        %v2380 = vpop.f32.mrb[0].mxu0
        %2381 = vmatprep.mubr.bf16.mxu0 0
        %2382 = vmatmul.mubr.bf16.gmra.mrb[0].mxu0 %v1663
        %v2383 = vpop.f32.mrb[0].mxu0
        %v2384 = vadd.f32 %v2275, %v2383
        %v2385 = vpop.f32.mrb[0].mxu0
        %v2386 = vpop.f32.mrb[0].mxu0
        %v2387 = vadd.f32 %v2278, %v2386
        %v2388 = vpop.f32.mrb[0].mxu0
        %2389 = vmatprep.mubr.bf16.mxu0 0
        %2390 = vmatmul.mubr.bf16.gmra.mrb[0].mxu0 %v1666
        %v2391 = vpop.f32.mrb[0].mxu0
        %v2392 = vadd.f32 %v2283, %v2391
        %v2393 = vpop.f32.mrb[0].mxu0
        %v2394 = vpop.f32.mrb[0].mxu0
        %v2395 = vadd.f32 %v2286, %v2394
        %v2396 = vpop.f32.mrb[0].mxu0
        %2397 = vmatprep.mubr.bf16.mxu0 0
        %2398 = vmatmul.mubr.bf16.gmra.mrb[0].mxu0 %v1669
        %v2399 = vpop.f32.mrb[0].mxu0
        %v2400 = vadd.f32 %v2291, %v2399
        %v2401 = vpop.f32.mrb[0].mxu0
        %v2402 = vpop.f32.mrb[0].mxu0
        %v2403 = vadd.f32 %v2294, %v2402
        %v2404 = vpop.f32.mrb[0].mxu0
        %2405 = vmatprep.mubr.bf16.mxu0 0
        %2406 = vmatmul.mubr.bf16.gmra.mrb[0].mxu0 %v1672
        %v2407 = vpop.f32.mrb[0].mxu0
        %v2408 = vadd.f32 %v2299, %v2407
        %v2409 = vpop.f32.mrb[0].mxu0
        %v2410 = vpop.f32.mrb[0].mxu0
        %v2411 = vadd.f32 %v2302, %v2410
        %v2412 = vpop.f32.mrb[0].mxu0
        %2413 = vmatprep.mubr.bf16.mxu0 0
        %2414 = vmatmul.mubr.bf16.gmra.mrb[0].mxu0 %v1675
        %v2415 = vpop.f32.mrb[0].mxu0
        %v2416 = vadd.f32 %v2307, %v2415
        %v2417 = vpop.f32.mrb[0].mxu0
        %v2418 = vpop.f32.mrb[0].mxu0
        %v2419 = vadd.f32 %v2310, %v2418
        %v2420 = vpop.f32.mrb[0].mxu0
        %2421 = vmatprep.mubr.bf16.mxu0 0
        %2422 = vmatmul.mubr.bf16.gmra.mrb[0].mxu0 %v1678
        %v2423 = vpop.f32.mrb[0].mxu0
        %v2424 = vadd.f32 %v2315, %v2423
        %v2425 = vpop.f32.mrb[0].mxu0
        %v2426 = vpop.f32.mrb[0].mxu0
        %v2427 = vadd.f32 %v2318, %v2426
        %v2428 = vpop.f32.mrb[0].mxu0
        %2429 = vmatprep.mubr.bf16.mxu0 0
        %2430 = vmatmul.mubr.bf16.gmra.mrb[0].mxu0 %v1681
        %v2431 = vpop.f32.mrb[0].mxu0
        %v2432 = vpop.f32.mrb[0].mxu0
        %v2433 = vpop.f32.mrb[0].mxu0
        %v2434 = vpop.f32.mrb[0].mxu0
        %2435 = vdwg.mxu0
        %s2436 = scalar_lea.vmem [#allocation3], 48
        %v2437 = vld [vmem:[%s2436] sm:$0xff]
        %v2438 = vld [vmem:[%s2436 + $0x8] sm:$0xff]
        %v2439 = vld [vmem:[%s2436 + $0x10] sm:$0xff]
        %v2440 = vld [vmem:[%s2436 + $0x18] sm:$0xff]
        %v2441 = vld [vmem:[%s2436 + $0x20] sm:$0xff]
        %v2442 = vld [vmem:[%s2436 + $0x28] sm:$0xff]
        %v2443 = vld [vmem:[%s2436 + $0x30] sm:$0xff]
        %v2444 = vld [vmem:[%s2436 + $0x38] sm:$0xff]
        %v2445 = vld [vmem:[%s2436 + $0x40] sm:$0xff]
        %v2446 = vld [vmem:[%s2436 + $0x48] sm:$0xff]
        %v2447 = vld [vmem:[%s2436 + $0x50] sm:$0xff]
        %v2448 = vld [vmem:[%s2436 + $0x58] sm:$0xff]
        %v2449 = vld [vmem:[%s2436 + $0x60] sm:$0xff]
        %v2450 = vld [vmem:[%s2436 + $0x68] sm:$0xff]
        %v2451 = vld [vmem:[%s2436 + $0x70] sm:$0xff]
        %v2452 = vld [vmem:[%s2436 + $0x78] sm:$0xff]
        %v2453 = vld [vmem:[%s2436 + $0x80] sm:$0xff]
        %v2454 = vld [vmem:[%s2436 + $0x88] sm:$0xff]
        %v2455 = vld [vmem:[%s2436 + $0x90] sm:$0xff]
        %v2456 = vld [vmem:[%s2436 + $0x98] sm:$0xff]
        %v2457 = vld [vmem:[%s2436 + $0xa0] sm:$0xff]
        %v2458 = vld [vmem:[%s2436 + $0xa8] sm:$0xff]
        %v2459 = vld [vmem:[%s2436 + $0xb0] sm:$0xff]
        %v2460 = vld [vmem:[%s2436 + $0xb8] sm:$0xff]
        %v2461 = vld [vmem:[%s2436 + $0xc0] sm:$0xff]
        %v2462 = vld [vmem:[%s2436 + $0xc8] sm:$0xff]
        %v2463 = vld [vmem:[%s2436 + $0xd0] sm:$0xff]
        %v2464 = vld [vmem:[%s2436 + $0xd8] sm:$0xff]
        %v2465 = vld [vmem:[%s2436 + $0xe0] sm:$0xff]
        %v2466 = vld [vmem:[%s2436 + $0xe8] sm:$0xff]
        %v2515 = vunpack.c.l.b16 %v1604
        %v2516 = vunpack.c.l.b16 %v1605
        %v2517 = vunpack.c.l.b16 %v1606
        %v2518 = vunpack.c.l.b16 %v1607
        %v2519 = vunpack.c.l.b16 %v1608
        %v2520 = vunpack.c.l.b16 %v1609
        %v2521 = vunpack.c.l.b16 %v1610
        %v2522 = vunpack.c.l.b16 %v1611
        %v2523 = vunpack.c.l.b16 %v1612
        %v2524 = vunpack.c.l.b16 %v1613
        %v2525 = vunpack.c.l.b16 %v1614
        %v2526 = vunpack.c.l.b16 %v1615
        %v2527 = vunpack.c.l.b16 %v1616
        %v2528 = vunpack.c.l.b16 %v1617
        %v2529 = vunpack.c.l.b16 %v1618
        %v2530 = vunpack.c.l.b16 %v1619
        %v2531 = vunpack.c.l.b16 %v1620
        %v2532 = vunpack.c.l.b16 %v1621
        %v2533 = vunpack.c.l.b16 %v1622
        %v2534 = vunpack.c.l.b16 %v1623
        %v2535 = vunpack.c.l.b16 %v1624
        %v2536 = vunpack.c.l.b16 %v1625
        %v2537 = vunpack.c.l.b16 %v1626
        %v2538 = vunpack.c.l.b16 %v1627
        %v2539 = vunpack.c.l.b16 %v1628
        %v2540 = vunpack.c.l.b16 %v1629
        %v2541 = vunpack.c.l.b16 %v1630
        %v2542 = vunpack.c.l.b16 %v1631
        %v2543 = vunpack.c.l.b16 %v1632
        %v2544 = vunpack.c.l.b16 %v1633
        %v2545 = vunpack.c.l.b16 %v1634
        %v2546 = vunpack.c.l.b16 %v1635
        %v2547 = vunpack.c.l.b16 %v1636
        %v2548 = vunpack.c.l.b16 %v1637
        %v2549 = vunpack.c.l.b16 %v1638
        %v2550 = vunpack.c.l.b16 %v1639
        %v2551 = vunpack.c.l.b16 %v1640
        %v2552 = vunpack.c.l.b16 %v1641
        %v2553 = vunpack.c.l.b16 %v1642
        %v2554 = vunpack.c.l.b16 %v1643
        %v2555 = vunpack.c.l.b16 %v1644
        %v2556 = vunpack.c.l.b16 %v1645
        %v2557 = vunpack.c.l.b16 %v1646
        %v2558 = vunpack.c.l.b16 %v1647
        %v2559 = vunpack.c.l.b16 %v1648
        %v2560 = vunpack.c.l.b16 %v1649
        %v2561 = vunpack.c.l.b16 %v1650
        %v2562 = vunpack.c.l.b16 %v1651
        %v2563 = vpack.c.b16 %v2516, %v2515
        %v2564 = vpack.c.b16 %v2518, %v2517
        %v2565 = vpack.c.b16 %v2520, %v2519
        %v2566 = vpack.c.b16 %v2522, %v2521
        %v2567 = vpack.c.b16 %v2524, %v2523
        %v2568 = vpack.c.b16 %v2526, %v2525
        %v2569 = vpack.c.b16 %v2528, %v2527
        %v2570 = vpack.c.b16 %v2530, %v2529
        %v2571 = vpack.c.b16 %v2532, %v2531
        %v2572 = vpack.c.b16 %v2534, %v2533
        %v2573 = vpack.c.b16 %v2536, %v2535
        %v2574 = vpack.c.b16 %v2538, %v2537
        %v2575 = vpack.c.b16 %v2540, %v2539
        %v2576 = vpack.c.b16 %v2542, %v2541
        %v2577 = vpack.c.b16 %v2544, %v2543
        %v2578 = vpack.c.b16 %v2546, %v2545
        %v2579 = vpack.c.b16 %v2548, %v2547
        %v2580 = vpack.c.b16 %v2550, %v2549
        %v2581 = vpack.c.b16 %v2552, %v2551
        %v2582 = vpack.c.b16 %v2554, %v2553
        %v2583 = vpack.c.b16 %v2556, %v2555
        %v2584 = vpack.c.b16 %v2558, %v2557
        %v2585 = vpack.c.b16 %v2560, %v2559
        %v2586 = vpack.c.b16 %v2562, %v2561
        %2611 = vmatprep.subr.bf16.mxu0 0
        %2612 = vmatpush1.bf16.msra.mxu0 %v2563
        %2613 = vmatprep.subr.bf16.mxu0 0
        %2614 = vmatpush1.bf16.msra.mxu0 %v2564
        %2615 = vmatprep.subr.bf16.mxu0 0
        %2616 = vmatpush1.bf16.msra.mxu0 %v2565
        %2617 = vmatprep.subr.bf16.mxu0 0
        %2618 = vmatpush1.bf16.msra.mxu0 %v2566
        %2619 = vmatprep.subr.bf16.mxu0 0
        %2620 = vmatpush1.bf16.msra.mxu0 %v2567
        %2621 = vmatprep.subr.bf16.mxu0 0
        %2622 = vmatpush1.bf16.msra.mxu0 %v2568
        %2623 = vmatprep.subr.bf16.mxu0 0
        %2624 = vmatpush1.bf16.msra.mxu0 %v2569
        %2625 = vmatprep.subr.bf16.mxu0 0
        %2626 = vmatpush1.bf16.msra.mxu0 %v2570
        %2627 = vmatprep.subr.bf16.mxu0 0
        %2628 = vmatpush1.bf16.msra.mxu0 %v2571
        %2629 = vmatprep.subr.bf16.mxu0 0
        %2630 = vmatpush1.bf16.msra.mxu0 %v2572
        %2631 = vmatprep.subr.bf16.mxu0 0
        %2632 = vmatpush1.bf16.msra.mxu0 %v2573
        %2633 = vmatprep.subr.bf16.mxu0 0
        %2634 = vmatpush1.bf16.msra.mxu0 %v2574
        %2635 = vmatprep.subr.bf16.mxu0 0
        %2636 = vmatpush1.bf16.msra.mxu0 %v2575
        %2637 = vmatprep.subr.bf16.mxu0 0
        %2638 = vmatpush1.bf16.msra.mxu0 %v2576
        %2639 = vmatprep.subr.bf16.mxu0 0
        %2640 = vmatpush1.bf16.msra.mxu0 %v2577
        %2641 = vmatprep.subr.bf16.mxu0 0
        %2642 = vmatpush1.bf16.msra.mxu0 %v2578
        %2643 = vmatprep.mubr.bf16.mxu0 %v2438
        %2644 = vmatmul.mubr.bf16.gmra.mrb[0].mxu0 %v2437
        %v2645 = vpop.f32.mrb[0].mxu0
        %v2646 = vpop.f32.mrb[0].mxu0
        %v2647 = vpop.f32.mrb[0].mxu0
        %v2648 = vpop.f32.mrb[0].mxu0
        %2649 = vmatprep.mubr.bf16.mxu0 %v2441
        %2650 = vmatmul.mubr.bf16.gmra.mrb[0].mxu0 %v2440
        %v2651 = vpop.f32.mrb[0].mxu0
        %v2652 = vadd.f32 0.0, %v2651
        %v2653 = vpop.f32.mrb[0].mxu0
        %v2654 = vpop.f32.mrb[0].mxu0
        %v2655 = vadd.f32 0.0, %v2654
        %v2656 = vpop.f32.mrb[0].mxu0
        %2657 = vmatprep.mubr.bf16.mxu0 %v2444
        %2658 = vmatmul.mubr.bf16.gmra.mrb[0].mxu0 %v2443
        %v2659 = vpop.f32.mrb[0].mxu0
        %v2660 = vadd.f32 0.0, %v2659
        %v2661 = vpop.f32.mrb[0].mxu0
        %v2662 = vpop.f32.mrb[0].mxu0
        %v2663 = vadd.f32 0.0, %v2662
        %v2664 = vpop.f32.mrb[0].mxu0
        %2665 = vmatprep.mubr.bf16.mxu0 %v2447
        %2666 = vmatmul.mubr.bf16.gmra.mrb[0].mxu0 %v2446
        %v2667 = vpop.f32.mrb[0].mxu0
        %v2668 = vadd.f32 0.0, %v2667
        %v2669 = vpop.f32.mrb[0].mxu0
        %v2670 = vpop.f32.mrb[0].mxu0
        %v2671 = vadd.f32 0.0, %v2670
        %v2672 = vpop.f32.mrb[0].mxu0
        %2673 = vmatprep.mubr.bf16.mxu0 %v2450
        %2674 = vmatmul.mubr.bf16.gmra.mrb[0].mxu0 %v2449
        %v2675 = vpop.f32.mrb[0].mxu0
        %v2676 = vadd.f32 0.0, %v2675
        %v2677 = vpop.f32.mrb[0].mxu0
        %v2678 = vpop.f32.mrb[0].mxu0
        %v2679 = vadd.f32 0.0, %v2678
        %v2680 = vpop.f32.mrb[0].mxu0
        %2681 = vmatprep.mubr.bf16.mxu0 %v2453
        %2682 = vmatmul.mubr.bf16.gmra.mrb[0].mxu0 %v2452
        %v2683 = vpop.f32.mrb[0].mxu0
        %v2684 = vadd.f32 0.0, %v2683
        %v2685 = vpop.f32.mrb[0].mxu0
        %v2686 = vpop.f32.mrb[0].mxu0
        %v2687 = vadd.f32 0.0, %v2686
        %v2688 = vpop.f32.mrb[0].mxu0
        %2689 = vmatprep.mubr.bf16.mxu0 %v2456
        %2690 = vmatmul.mubr.bf16.gmra.mrb[0].mxu0 %v2455
        %v2691 = vpop.f32.mrb[0].mxu0
        %v2692 = vadd.f32 0.0, %v2691
        %v2693 = vpop.f32.mrb[0].mxu0
        %v2694 = vpop.f32.mrb[0].mxu0
        %v2695 = vadd.f32 0.0, %v2694
        %v2696 = vpop.f32.mrb[0].mxu0
        %2697 = vmatprep.mubr.bf16.mxu0 %v2459
        %2698 = vmatmul.mubr.bf16.gmra.mrb[0].mxu0 %v2458
        %v2699 = vpop.f32.mrb[0].mxu0
        %v2700 = vadd.f32 0.0, %v2699
        %v2701 = vpop.f32.mrb[0].mxu0
        %v2702 = vpop.f32.mrb[0].mxu0
        %v2703 = vadd.f32 0.0, %v2702
        %v2704 = vpop.f32.mrb[0].mxu0
        %2705 = vmatprep.mubr.bf16.mxu0 %v2462
        %2706 = vmatmul.mubr.bf16.gmra.mrb[0].mxu0 %v2461
        %v2707 = vpop.f32.mrb[0].mxu0
        %v2708 = vadd.f32 0.0, %v2707
        %v2709 = vpop.f32.mrb[0].mxu0
        %v2710 = vpop.f32.mrb[0].mxu0
        %v2711 = vadd.f32 0.0, %v2710
        %v2712 = vpop.f32.mrb[0].mxu0
        %2713 = vmatprep.mubr.bf16.mxu0 %v2465
        %2714 = vmatmul.mubr.bf16.gmra.mrb[0].mxu0 %v2464
        %v2715 = vpop.f32.mrb[0].mxu0
        %v2716 = vpop.f32.mrb[0].mxu0
        %v2717 = vpop.f32.mrb[0].mxu0
        %v2718 = vpop.f32.mrb[0].mxu0
        %2719 = vdwg.mxu0
        %2720 = vmatprep.subr.bf16.mxu0 0
        %2721 = vmatpush1.bf16.msra.mxu0 %v2579
        %2722 = vmatprep.subr.bf16.mxu0 0
        %2723 = vmatpush1.bf16.msra.mxu0 %v2580
        %2724 = vmatprep.subr.bf16.mxu0 0
        %2725 = vmatpush1.bf16.msra.mxu0 %v2581
        %2726 = vmatprep.subr.bf16.mxu0 0
        %2727 = vmatpush1.bf16.msra.mxu0 %v2582
        %2728 = vmatprep.subr.bf16.mxu0 0
        %2729 = vmatpush1.bf16.msra.mxu0 %v2583
        %2730 = vmatprep.subr.bf16.mxu0 0
        %2731 = vmatpush1.bf16.msra.mxu0 %v2584
        %2732 = vmatprep.subr.bf16.mxu0 0
        %2733 = vmatpush1.bf16.msra.mxu0 %v2585
        %2734 = vmatprep.subr.bf16.mxu0 0
        %2735 = vmatpush1.bf16.msra.mxu0 %v2586
        %2736 = vmatprep.subr.bf16.mxu0 0
        %2737 = vmatpush1.bf16.msra.mxu0 0
        %2738 = vmatprep.subr.bf16.mxu0 0
        %2739 = vmatpush1.bf16.msra.mxu0 0
        %2740 = vmatprep.subr.bf16.mxu0 0
        %2741 = vmatpush1.bf16.msra.mxu0 0
        %2742 = vmatprep.subr.bf16.mxu0 0
        %2743 = vmatpush1.bf16.msra.mxu0 0
        %2744 = vmatprep.subr.bf16.mxu0 0
        %2745 = vmatpush1.bf16.msra.mxu0 0
        %2746 = vmatprep.subr.bf16.mxu0 0
        %2747 = vmatpush1.bf16.msra.mxu0 0
        %2748 = vmatprep.subr.bf16.mxu0 0
        %2749 = vmatpush1.bf16.msra.mxu0 0
        %2750 = vmatprep.subr.bf16.mxu0 0
        %2751 = vmatpush1.bf16.msra.mxu0 0
        %2752 = vmatprep.mubr.bf16.mxu0 0
        %2753 = vmatmul.mubr.bf16.gmra.mrb[0].mxu0 %v2439
        %v2754 = vpop.f32.mrb[0].mxu0
        %v2755 = vpop.f32.mrb[0].mxu0
        %v2756 = vpop.f32.mrb[0].mxu0
        %v2757 = vpop.f32.mrb[0].mxu0
        %2758 = vmatprep.mubr.bf16.mxu0 0
        %2759 = vmatmul.mubr.bf16.gmra.mrb[0].mxu0 %v2442
        %v2760 = vpop.f32.mrb[0].mxu0
        %v2761 = vadd.f32 %v2652, %v2760
        %v2762 = vpop.f32.mrb[0].mxu0
        %v2763 = vpop.f32.mrb[0].mxu0
        %v2764 = vadd.f32 %v2655, %v2763
        %v2765 = vpop.f32.mrb[0].mxu0
        %2766 = vmatprep.mubr.bf16.mxu0 0
        %2767 = vmatmul.mubr.bf16.gmra.mrb[0].mxu0 %v2445
        %v2768 = vpop.f32.mrb[0].mxu0
        %v2769 = vadd.f32 %v2660, %v2768
        %v2770 = vpop.f32.mrb[0].mxu0
        %v2771 = vpop.f32.mrb[0].mxu0
        %v2772 = vadd.f32 %v2663, %v2771
        %v2773 = vpop.f32.mrb[0].mxu0
        %2774 = vmatprep.mubr.bf16.mxu0 0
        %2775 = vmatmul.mubr.bf16.gmra.mrb[0].mxu0 %v2448
        %v2776 = vpop.f32.mrb[0].mxu0
        %v2777 = vadd.f32 %v2668, %v2776
        %v2778 = vpop.f32.mrb[0].mxu0
        %v2779 = vpop.f32.mrb[0].mxu0
        %v2780 = vadd.f32 %v2671, %v2779
        %v2781 = vpop.f32.mrb[0].mxu0
        %2782 = vmatprep.mubr.bf16.mxu0 0
        %2783 = vmatmul.mubr.bf16.gmra.mrb[0].mxu0 %v2451
        %v2784 = vpop.f32.mrb[0].mxu0
        %v2785 = vadd.f32 %v2676, %v2784
        %v2786 = vpop.f32.mrb[0].mxu0
        %v2787 = vpop.f32.mrb[0].mxu0
        %v2788 = vadd.f32 %v2679, %v2787
        %v2789 = vpop.f32.mrb[0].mxu0
        %2790 = vmatprep.mubr.bf16.mxu0 0
        %2791 = vmatmul.mubr.bf16.gmra.mrb[0].mxu0 %v2454
        %v2792 = vpop.f32.mrb[0].mxu0
        %v2793 = vadd.f32 %v2684, %v2792
        %v2794 = vpop.f32.mrb[0].mxu0
        %v2795 = vpop.f32.mrb[0].mxu0
        %v2796 = vadd.f32 %v2687, %v2795
        %v2797 = vpop.f32.mrb[0].mxu0
        %2798 = vmatprep.mubr.bf16.mxu0 0
        %2799 = vmatmul.mubr.bf16.gmra.mrb[0].mxu0 %v2457
        %v2800 = vpop.f32.mrb[0].mxu0
        %v2801 = vadd.f32 %v2692, %v2800
        %v2802 = vpop.f32.mrb[0].mxu0
        %v2803 = vpop.f32.mrb[0].mxu0
        %v2804 = vadd.f32 %v2695, %v2803
        %v2805 = vpop.f32.mrb[0].mxu0
        %2806 = vmatprep.mubr.bf16.mxu0 0
        %2807 = vmatmul.mubr.bf16.gmra.mrb[0].mxu0 %v2460
        %v2808 = vpop.f32.mrb[0].mxu0
        %v2809 = vadd.f32 %v2700, %v2808
        %v2810 = vpop.f32.mrb[0].mxu0
        %v2811 = vpop.f32.mrb[0].mxu0
        %v2812 = vadd.f32 %v2703, %v2811
        %v2813 = vpop.f32.mrb[0].mxu0
        %2814 = vmatprep.mubr.bf16.mxu0 0
        %2815 = vmatmul.mubr.bf16.gmra.mrb[0].mxu0 %v2463
        %v2816 = vpop.f32.mrb[0].mxu0
        %v2817 = vadd.f32 %v2708, %v2816
        %v2818 = vpop.f32.mrb[0].mxu0
        %v2819 = vpop.f32.mrb[0].mxu0
        %v2820 = vadd.f32 %v2711, %v2819
        %v2821 = vpop.f32.mrb[0].mxu0
        %2822 = vmatprep.mubr.bf16.mxu0 0
        %2823 = vmatmul.mubr.bf16.gmra.mrb[0].mxu0 %v2466
        %v2824 = vpop.f32.mrb[0].mxu0
        %v2825 = vpop.f32.mrb[0].mxu0
        %v2826 = vpop.f32.mrb[0].mxu0
        %v2827 = vpop.f32.mrb[0].mxu0
        %2828 = vdwg.mxu0
        %v2829 = vadd.f32 %v2368, %v2761
        %v2830 = vadd.f32 %v2371, %v2764
        %v2831 = vadd.f32 %v2376, %v2769
        %v2832 = vadd.f32 %v2379, %v2772
        %v2833 = vadd.f32 %v2384, %v2777
        %v2834 = vadd.f32 %v2387, %v2780
        %v2835 = vadd.f32 %v2392, %v2785
        %v2836 = vadd.f32 %v2395, %v2788
        %v2837 = vadd.f32 %v2400, %v2793
        %v2838 = vadd.f32 %v2403, %v2796
        %v2839 = vadd.f32 %v2408, %v2801
        %v2840 = vadd.f32 %v2411, %v2804
        %v2841 = vadd.f32 %v2416, %v2809
        %v2842 = vadd.f32 %v2419, %v2812
        %v2843 = vadd.f32 %v2424, %v2817
        %v2844 = vadd.f32 %v2427, %v2820
        %v2845 = vld [vmem:[%s9] sm:$0x1]
        %v2847 = vlaneseq
        %v2848 = vshrl.u32 %v2847, 7
        %v2849 = vsub.s32 0, %v2848
        %v2850 = vrot.slane %v2845, %v2849
        %v2852 = vadd.f32 %v2829, %v2850
        %v2853 = vadd.f32 %v2830, %v2850
        %v2854 = vadd.f32 %v2831, %v2850
        %v2855 = vadd.f32 %v2832, %v2850
        %v2856 = vadd.f32 %v2833, %v2850
        %v2857 = vadd.f32 %v2834, %v2850
        %v2858 = vadd.f32 %v2835, %v2850
        %v2859 = vadd.f32 %v2836, %v2850
        %v2860 = vadd.f32 %v2837, %v2850
        %v2861 = vadd.f32 %v2838, %v2850
        %v2862 = vadd.f32 %v2839, %v2850
        %v2863 = vadd.f32 %v2840, %v2850
        %v2864 = vadd.f32 %v2841, %v2850
        %v2865 = vadd.f32 %v2842, %v2850
        %v2866 = vadd.f32 %v2843, %v2850
        %v2867 = vadd.f32 %v2844, %v2850
        %v2868 = vsub.f32 0.0, %v2852
        %v2869 = vsub.f32 0.0, %v2853
        %v2870 = vsub.f32 0.0, %v2854
        %v2871 = vsub.f32 0.0, %v2855
        %v2872 = vsub.f32 0.0, %v2856
        %v2873 = vsub.f32 0.0, %v2857
        %v2874 = vsub.f32 0.0, %v2858
        %v2875 = vsub.f32 0.0, %v2859
        %v2876 = vsub.f32 0.0, %v2860
        %v2877 = vsub.f32 0.0, %v2861
        %v2878 = vsub.f32 0.0, %v2862
        %v2879 = vsub.f32 0.0, %v2863
        %v2880 = vsub.f32 0.0, %v2864
        %v2881 = vsub.f32 0.0, %v2865
        %v2882 = vsub.f32 0.0, %v2866
        %v2883 = vsub.f32 0.0, %v2867
        %v2884 = vmul.f32 %v2868, 1.442695
        %v2885 = vpow.pop %v2884
        %v2886 = vmul.f32 %v2869, 1.442695
        %v2887 = vpow.pop %v2886
        %v2888 = vmul.f32 %v2870, 1.442695
        %v2889 = vpow.pop %v2888
        %v2890 = vmul.f32 %v2871, 1.442695
        %v2891 = vpow.pop %v2890
        %v2892 = vmul.f32 %v2872, 1.442695
        %v2893 = vpow.pop %v2892
        %v2894 = vmul.f32 %v2873, 1.442695
        %v2895 = vpow.pop %v2894
        %v2896 = vmul.f32 %v2874, 1.442695
        %v2897 = vpow.pop %v2896
        %v2898 = vmul.f32 %v2875, 1.442695
        %v2899 = vpow.pop %v2898
        %v2900 = vmul.f32 %v2876, 1.442695
        %v2901 = vpow.pop %v2900
        %v2902 = vmul.f32 %v2877, 1.442695
        %v2903 = vpow.pop %v2902
        %v2904 = vmul.f32 %v2878, 1.442695
        %v2905 = vpow.pop %v2904
        %v2906 = vmul.f32 %v2879, 1.442695
        %v2907 = vpow.pop %v2906
        %v2908 = vmul.f32 %v2880, 1.442695
        %v2909 = vpow.pop %v2908
        %v2910 = vmul.f32 %v2881, 1.442695
        %v2911 = vpow.pop %v2910
        %v2912 = vmul.f32 %v2882, 1.442695
        %v2913 = vpow.pop %v2912
        %v2914 = vmul.f32 %v2883, 1.442695
        %v2915 = vpow.pop %v2914
        %v2916 = vadd.f32 %v2885, 1.0
        %v2917 = vadd.f32 %v2887, 1.0
        %v2918 = vadd.f32 %v2889, 1.0
        %v2919 = vadd.f32 %v2891, 1.0
        %v2920 = vadd.f32 %v2893, 1.0
        %v2921 = vadd.f32 %v2895, 1.0
        %v2922 = vadd.f32 %v2897, 1.0
        %v2923 = vadd.f32 %v2899, 1.0
        %v2924 = vadd.f32 %v2901, 1.0
        %v2925 = vadd.f32 %v2903, 1.0
        %v2926 = vadd.f32 %v2905, 1.0
        %v2927 = vadd.f32 %v2907, 1.0
        %v2928 = vadd.f32 %v2909, 1.0
        %v2929 = vadd.f32 %v2911, 1.0
        %v2930 = vadd.f32 %v2913, 1.0
        %v2931 = vadd.f32 %v2915, 1.0
        %v2932 = vrcp.pop %v2916
        %v2933 = vrcp.pop %v2917
        %v2934 = vrcp.pop %v2918
        %v2935 = vrcp.pop %v2919
        %v2936 = vrcp.pop %v2920
        %v2937 = vrcp.pop %v2921
        %v2938 = vrcp.pop %v2922
        %v2939 = vrcp.pop %v2923
        %v2940 = vrcp.pop %v2924
        %v2941 = vrcp.pop %v2925
        %v2942 = vrcp.pop %v2926
        %v2943 = vrcp.pop %v2927
        %v2944 = vrcp.pop %v2928
        %v2945 = vrcp.pop %v2929
        %v2946 = vrcp.pop %v2930
        %v2947 = vrcp.pop %v2931
        %v2948 = vmul.f32 %v2852, %v2932
        %v2949 = vmul.f32 %v2853, %v2933
        %v2950 = vmul.f32 %v2854, %v2934
        %v2951 = vmul.f32 %v2855, %v2935
        %v2952 = vmul.f32 %v2856, %v2936
        %v2953 = vmul.f32 %v2857, %v2937
        %v2954 = vmul.f32 %v2858, %v2938
        %v2955 = vmul.f32 %v2859, %v2939
        %v2956 = vmul.f32 %v2860, %v2940
        %v2957 = vmul.f32 %v2861, %v2941
        %v2958 = vmul.f32 %v2862, %v2942
        %v2959 = vmul.f32 %v2863, %v2943
        %v2960 = vmul.f32 %v2864, %v2944
        %v2961 = vmul.f32 %v2865, %v2945
        %v2962 = vmul.f32 %v2866, %v2946
        %v2963 = vmul.f32 %v2867, %v2947
        %v2964 = vadd.f32 %v940, %v2948
        %v2965 = vadd.f32 %v941, %v2949
        %v2966 = vadd.f32 %v942, %v2950
        %v2967 = vadd.f32 %v943, %v2951
        %v2968 = vadd.f32 %v944, %v2952
        %v2969 = vadd.f32 %v945, %v2953
        %v2970 = vadd.f32 %v946, %v2954
        %v2971 = vadd.f32 %v947, %v2955
        %v2972 = vadd.f32 %v948, %v2956
        %v2973 = vadd.f32 %v949, %v2957
        %v2974 = vadd.f32 %v950, %v2958
        %v2975 = vadd.f32 %v951, %v2959
        %v2976 = vadd.f32 %v952, %v2960
        %v2977 = vadd.f32 %v953, %v2961
        %v2978 = vadd.f32 %v954, %v2962
        %v2979 = vadd.f32 %v955, %v2963
        %v2980 = vpack.c.bf16 %v2965, %v2964
        %v2981 = vpack.c.bf16 %v2967, %v2966
        %v2982 = vpack.c.bf16 %v2969, %v2968
        %v2983 = vpack.c.bf16 %v2971, %v2970
        %v2984 = vpack.c.bf16 %v2973, %v2972
        %v2985 = vpack.c.bf16 %v2975, %v2974
        %v2986 = vpack.c.bf16 %v2977, %v2976
        %v2987 = vpack.c.bf16 %v2979, %v2978
        %v2988 = vld [vmem:[#allocation12] sm:$0xf]
        %v2989 = vld [vmem:[#allocation12 + $0x4] sm:$0xf]
        %v2990 = vld [vmem:[#allocation12 + $0x8] sm:$0xf]
        %v2991 = vld [vmem:[#allocation12 + $0xc] sm:$0xf]
        %v2992 = vld [vmem:[#allocation12 + $0x10] sm:$0xf]
        %v2993 = vld [vmem:[#allocation12 + $0x14] sm:$0xf]
        %v2994 = vld [vmem:[#allocation12 + $0x18] sm:$0xf]
        %v2995 = vld [vmem:[#allocation12 + $0x1c] sm:$0xf]
        %v2996 = vld [vmem:[#allocation12 + $0x20] sm:$0xf]
        %v2997 = vld [vmem:[#allocation12 + $0x24] sm:$0xf]
        %v2998 = vld [vmem:[#allocation12 + $0x28] sm:$0xf]
        %v2999 = vld [vmem:[#allocation12 + $0x2c] sm:$0xf]
        %v3000 = vld [vmem:[#allocation12 + $0x30] sm:$0xf]
        %v3001 = vld [vmem:[#allocation12 + $0x34] sm:$0xf]
        %v3002 = vld [vmem:[#allocation12 + $0x38] sm:$0xf]
        %v3003 = vld [vmem:[#allocation12 + $0x3c] sm:$0xf]
        %v3004 = vld [vmem:[%s10] sm:$0x1]
        %v3006 = vlaneseq
        %v3007 = vshrl.u32 %v3006, 7
        %v3008 = vsub.s32 0, %v3007
        %v3009 = vrot.slane %v3004, %v3008
        %v3027 = vunpack.c.l.b16 %v2988
        %v3028 = vunpack.c.l.b16 %v2989
        %v3029 = vunpack.c.l.b16 %v2990
        %v3030 = vunpack.c.l.b16 %v2991
        %v3031 = vunpack.c.l.b16 %v2992
        %v3032 = vunpack.c.l.b16 %v2993
        %v3033 = vunpack.c.l.b16 %v2994
        %v3034 = vunpack.c.l.b16 %v2995
        %v3035 = vunpack.c.l.b16 %v2996
        %v3036 = vunpack.c.l.b16 %v2997
        %v3037 = vunpack.c.l.b16 %v2998
        %v3038 = vunpack.c.l.b16 %v2999
        %v3039 = vunpack.c.l.b16 %v3000
        %v3040 = vunpack.c.l.b16 %v3001
        %v3041 = vunpack.c.l.b16 %v3002
        %v3042 = vunpack.c.l.b16 %v3003
        %v3043 = vpack.c.b16 %v3028, %v3027
        %v3044 = vpack.c.b16 %v3030, %v3029
        %v3045 = vpack.c.b16 %v3032, %v3031
        %v3046 = vpack.c.b16 %v3034, %v3033
        %v3047 = vpack.c.b16 %v3036, %v3035
        %v3048 = vpack.c.b16 %v3038, %v3037
        %v3049 = vpack.c.b16 %v3040, %v3039
        %v3050 = vpack.c.b16 %v3042, %v3041
        %3059 = vmatprep.subr.bf16.mxu0 0
        %3060 = vmatpush1.bf16.msra.mxu0 %v3043
        %3061 = vmatprep.subr.bf16.mxu0 0
        %3062 = vmatpush1.bf16.msra.mxu0 %v3044
        %3063 = vmatprep.subr.bf16.mxu0 0
        %3064 = vmatpush1.bf16.msra.mxu0 %v3045
        %3065 = vmatprep.subr.bf16.mxu0 0
        %3066 = vmatpush1.bf16.msra.mxu0 %v3046
        %3067 = vmatprep.subr.bf16.mxu0 0
        %3068 = vmatpush1.bf16.msra.mxu0 %v3047
        %3069 = vmatprep.subr.bf16.mxu0 0
        %3070 = vmatpush1.bf16.msra.mxu0 %v3048
        %3071 = vmatprep.subr.bf16.mxu0 0
        %3072 = vmatpush1.bf16.msra.mxu0 %v3049
        %3073 = vmatprep.subr.bf16.mxu0 0
        %3074 = vmatpush1.bf16.msra.mxu0 %v3050
        %3075 = vmatprep.subr.bf16.mxu0 0
        %3076 = vmatpush1.bf16.msra.mxu0 0
        %3077 = vmatprep.subr.bf16.mxu0 0
        %3078 = vmatpush1.bf16.msra.mxu0 0
        %3079 = vmatprep.subr.bf16.mxu0 0
        %3080 = vmatpush1.bf16.msra.mxu0 0
        %3081 = vmatprep.subr.bf16.mxu0 0
        %3082 = vmatpush1.bf16.msra.mxu0 0
        %3083 = vmatprep.subr.bf16.mxu0 0
        %3084 = vmatpush1.bf16.msra.mxu0 0
        %3085 = vmatprep.subr.bf16.mxu0 0
        %3086 = vmatpush1.bf16.msra.mxu0 0
        %3087 = vmatprep.subr.bf16.mxu0 0
        %3088 = vmatpush1.bf16.msra.mxu0 0
        %3089 = vmatprep.subr.bf16.mxu0 0
        %3090 = vmatpush1.bf16.msra.mxu0 0
        %3091 = vmatprep.mubr.bf16.mxu0 0
        %3092 = vmatmul.mubr.bf16.gmra.mrb[0].mxu0 %v2980
        %v3093 = vpop.f32.mrb[0].mxu0
        %v3094 = vadd.f32 %v3009, %v3093
        %v3095 = vpop.f32.mrb[0].mxu0
        %v3096 = vpop.f32.mrb[0].mxu0
        %v3097 = vadd.f32 %v3009, %v3096
        %v3098 = vpop.f32.mrb[0].mxu0
        %3099 = vmatprep.mubr.bf16.mxu0 0
        %3100 = vmatmul.mubr.bf16.gmra.mrb[0].mxu0 %v2981
        %v3101 = vpop.f32.mrb[0].mxu0
        %v3102 = vadd.f32 %v3009, %v3101
        %v3103 = vpop.f32.mrb[0].mxu0
        %v3104 = vpop.f32.mrb[0].mxu0
        %v3105 = vadd.f32 %v3009, %v3104
        %v3106 = vpop.f32.mrb[0].mxu0
        %3107 = vmatprep.mubr.bf16.mxu0 0
        %3108 = vmatmul.mubr.bf16.gmra.mrb[0].mxu0 %v2982
        %v3109 = vpop.f32.mrb[0].mxu0
        %v3110 = vadd.f32 %v3009, %v3109
        %v3111 = vpop.f32.mrb[0].mxu0
        %v3112 = vpop.f32.mrb[0].mxu0
        %v3113 = vadd.f32 %v3009, %v3112
        %v3114 = vpop.f32.mrb[0].mxu0
        %3115 = vmatprep.mubr.bf16.mxu0 0
        %3116 = vmatmul.mubr.bf16.gmra.mrb[0].mxu0 %v2983
        %v3117 = vpop.f32.mrb[0].mxu0
        %v3118 = vadd.f32 %v3009, %v3117
        %v3119 = vpop.f32.mrb[0].mxu0
        %v3120 = vpop.f32.mrb[0].mxu0
        %v3121 = vadd.f32 %v3009, %v3120
        %v3122 = vpop.f32.mrb[0].mxu0
        %3123 = vmatprep.mubr.bf16.mxu0 0
        %3124 = vmatmul.mubr.bf16.gmra.mrb[0].mxu0 %v2984
        %v3125 = vpop.f32.mrb[0].mxu0
        %v3126 = vadd.f32 %v3009, %v3125
        %v3127 = vpop.f32.mrb[0].mxu0
        %v3128 = vpop.f32.mrb[0].mxu0
        %v3129 = vadd.f32 %v3009, %v3128
        %v3130 = vpop.f32.mrb[0].mxu0
        %3131 = vmatprep.mubr.bf16.mxu0 0
        %3132 = vmatmul.mubr.bf16.gmra.mrb[0].mxu0 %v2985
        %v3133 = vpop.f32.mrb[0].mxu0
        %v3134 = vadd.f32 %v3009, %v3133
        %v3135 = vpop.f32.mrb[0].mxu0
        %v3136 = vpop.f32.mrb[0].mxu0
        %v3137 = vadd.f32 %v3009, %v3136
        %v3138 = vpop.f32.mrb[0].mxu0
        %3139 = vmatprep.mubr.bf16.mxu0 0
        %3140 = vmatmul.mubr.bf16.gmra.mrb[0].mxu0 %v2986
        %v3141 = vpop.f32.mrb[0].mxu0
        %v3142 = vadd.f32 %v3009, %v3141
        %v3143 = vpop.f32.mrb[0].mxu0
        %v3144 = vpop.f32.mrb[0].mxu0
        %v3145 = vadd.f32 %v3009, %v3144
        %v3146 = vpop.f32.mrb[0].mxu0
        %3147 = vmatprep.mubr.bf16.mxu0 0
        %3148 = vmatmul.mubr.bf16.gmra.mrb[0].mxu0 %v2987
        %v3149 = vpop.f32.mrb[0].mxu0
        %v3150 = vadd.f32 %v3009, %v3149
        %v3151 = vpop.f32.mrb[0].mxu0
        %v3152 = vpop.f32.mrb[0].mxu0
        %v3153 = vadd.f32 %v3009, %v3152
        %v3154 = vpop.f32.mrb[0].mxu0
        %3155 = vdwg.mxu0
        %v3156 = vsub.f32 0.0, %v3094
        %v3157 = vsub.f32 0.0, %v3097
        %v3158 = vsub.f32 0.0, %v3102
        %v3159 = vsub.f32 0.0, %v3105
        %v3160 = vsub.f32 0.0, %v3110
        %v3161 = vsub.f32 0.0, %v3113
        %v3162 = vsub.f32 0.0, %v3118
        %v3163 = vsub.f32 0.0, %v3121
        %v3164 = vsub.f32 0.0, %v3126
        %v3165 = vsub.f32 0.0, %v3129
        %v3166 = vsub.f32 0.0, %v3134
        %v3167 = vsub.f32 0.0, %v3137
        %v3168 = vsub.f32 0.0, %v3142
        %v3169 = vsub.f32 0.0, %v3145
        %v3170 = vsub.f32 0.0, %v3150
        %v3171 = vsub.f32 0.0, %v3153
        %v3172 = vmul.f32 %v3156, 1.442695
        %v3173 = vpow.pop %v3172
        %v3174 = vmul.f32 %v3157, 1.442695
        %v3175 = vpow.pop %v3174
        %v3176 = vmul.f32 %v3158, 1.442695
        %v3177 = vpow.pop %v3176
        %v3178 = vmul.f32 %v3159, 1.442695
        %v3179 = vpow.pop %v3178
        %v3180 = vmul.f32 %v3160, 1.442695
        %v3181 = vpow.pop %v3180
        %v3182 = vmul.f32 %v3161, 1.442695
        %v3183 = vpow.pop %v3182
        %v3184 = vmul.f32 %v3162, 1.442695
        %v3185 = vpow.pop %v3184
        %v3186 = vmul.f32 %v3163, 1.442695
        %v3187 = vpow.pop %v3186
        %v3188 = vmul.f32 %v3164, 1.442695
        %v3189 = vpow.pop %v3188
        %v3190 = vmul.f32 %v3165, 1.442695
        %v3191 = vpow.pop %v3190
        %v3192 = vmul.f32 %v3166, 1.442695
        %v3193 = vpow.pop %v3192
        %v3194 = vmul.f32 %v3167, 1.442695
        %v3195 = vpow.pop %v3194
        %v3196 = vmul.f32 %v3168, 1.442695
        %v3197 = vpow.pop %v3196
        %v3198 = vmul.f32 %v3169, 1.442695
        %v3199 = vpow.pop %v3198
        %v3200 = vmul.f32 %v3170, 1.442695
        %v3201 = vpow.pop %v3200
        %v3202 = vmul.f32 %v3171, 1.442695
        %v3203 = vpow.pop %v3202
        %v3204 = vadd.f32 %v3173, 1.0
        %v3205 = vadd.f32 %v3175, 1.0
        %v3206 = vadd.f32 %v3177, 1.0
        %v3207 = vadd.f32 %v3179, 1.0
        %v3208 = vadd.f32 %v3181, 1.0
        %v3209 = vadd.f32 %v3183, 1.0
        %v3210 = vadd.f32 %v3185, 1.0
        %v3211 = vadd.f32 %v3187, 1.0
        %v3212 = vadd.f32 %v3189, 1.0
        %v3213 = vadd.f32 %v3191, 1.0
        %v3214 = vadd.f32 %v3193, 1.0
        %v3215 = vadd.f32 %v3195, 1.0
        %v3216 = vadd.f32 %v3197, 1.0
        %v3217 = vadd.f32 %v3199, 1.0
        %v3218 = vadd.f32 %v3201, 1.0
        %v3219 = vadd.f32 %v3203, 1.0
        %v3220 = vrcp.pop %v3204
        %v3221 = vrcp.pop %v3205
        %v3222 = vrcp.pop %v3206
        %v3223 = vrcp.pop %v3207
        %v3224 = vrcp.pop %v3208
        %v3225 = vrcp.pop %v3209
        %v3226 = vrcp.pop %v3210
        %v3227 = vrcp.pop %v3211
        %v3228 = vrcp.pop %v3212
        %v3229 = vrcp.pop %v3213
        %v3230 = vrcp.pop %v3214
        %v3231 = vrcp.pop %v3215
        %v3232 = vrcp.pop %v3216
        %v3233 = vrcp.pop %v3217
        %v3234 = vrcp.pop %v3218
        %v3235 = vrcp.pop %v3219
        %v3236 = vmul.f32 %v3094, %v3220
        %v3237 = vmul.f32 %v3097, %v3221
        %v3238 = vmul.f32 %v3102, %v3222
        %v3239 = vmul.f32 %v3105, %v3223
        %v3240 = vmul.f32 %v3110, %v3224
        %v3241 = vmul.f32 %v3113, %v3225
        %v3242 = vmul.f32 %v3118, %v3226
        %v3243 = vmul.f32 %v3121, %v3227
        %v3244 = vmul.f32 %v3126, %v3228
        %v3245 = vmul.f32 %v3129, %v3229
        %v3246 = vmul.f32 %v3134, %v3230
        %v3247 = vmul.f32 %v3137, %v3231
        %v3248 = vmul.f32 %v3142, %v3232
        %v3249 = vmul.f32 %v3145, %v3233
        %v3250 = vmul.f32 %v3150, %v3234
        %v3251 = vmul.f32 %v3153, %v3235
        %s3252 = scalar_lea.vmem [#allocation2], 8
        %v3253 = vld [vmem:[%s3252] sm:$0xff]
        %v3254 = vld [vmem:[%s3252 + $0x8] sm:$0xff]
        %v3255 = vld [vmem:[%s3252 + $0x10] sm:$0xff]
        %v3256 = vld [vmem:[%s3252 + $0x18] sm:$0xff]
        %v3257 = vld [vmem:[%s3252 + $0x20] sm:$0xff]
        %v3258 = vld [vmem:[%s3252 + $0x28] sm:$0xff]
        %v3259 = vld [vmem:[%s3252 + $0x30] sm:$0xff]
        %v3260 = vld [vmem:[%s3252 + $0x38] sm:$0xff]
        %v3261 = vld [vmem:[#allocation14] sm:$0xf]
        %v3262 = vld [vmem:[#allocation14 + $0x4] sm:$0xf]
        %v3263 = vld [vmem:[#allocation14 + $0x8] sm:$0xf]
        %v3264 = vld [vmem:[#allocation14 + $0xc] sm:$0xf]
        %v3265 = vld [vmem:[#allocation14 + $0x10] sm:$0xf]
        %v3266 = vld [vmem:[#allocation14 + $0x14] sm:$0xf]
        %v3267 = vld [vmem:[#allocation14 + $0x18] sm:$0xf]
        %v3268 = vld [vmem:[#allocation14 + $0x1c] sm:$0xf]
        %v3269 = vld [vmem:[#allocation14 + $0x20] sm:$0xf]
        %v3270 = vld [vmem:[#allocation14 + $0x24] sm:$0xf]
        %v3271 = vld [vmem:[#allocation14 + $0x28] sm:$0xf]
        %v3272 = vld [vmem:[#allocation14 + $0x2c] sm:$0xf]
        %v3273 = vld [vmem:[#allocation14 + $0x30] sm:$0xf]
        %v3274 = vld [vmem:[#allocation14 + $0x34] sm:$0xf]
        %v3275 = vld [vmem:[#allocation14 + $0x38] sm:$0xf]
        %v3276 = vld [vmem:[#allocation14 + $0x3c] sm:$0xf]
        %v3277 = vld [vmem:[%s11] sm:$0x1]
        %v3279 = vlaneseq
        %v3280 = vshrl.u32 %v3279, 7
        %v3281 = vsub.s32 0, %v3280
        %v3282 = vrot.slane %v3277, %v3281
        %v3300 = vunpack.c.l.b16 %v3261
        %v3301 = vunpack.c.l.b16 %v3262
        %v3302 = vunpack.c.l.b16 %v3263
        %v3303 = vunpack.c.l.b16 %v3264
        %v3304 = vunpack.c.l.b16 %v3265
        %v3305 = vunpack.c.l.b16 %v3266
        %v3306 = vunpack.c.l.b16 %v3267
        %v3307 = vunpack.c.l.b16 %v3268
        %v3308 = vunpack.c.l.b16 %v3269
        %v3309 = vunpack.c.l.b16 %v3270
        %v3310 = vunpack.c.l.b16 %v3271
        %v3311 = vunpack.c.l.b16 %v3272
        %v3312 = vunpack.c.l.b16 %v3273
        %v3313 = vunpack.c.l.b16 %v3274
        %v3314 = vunpack.c.l.b16 %v3275
        %v3315 = vunpack.c.l.b16 %v3276
        %v3316 = vpack.c.b16 %v3301, %v3300
        %v3317 = vpack.c.b16 %v3303, %v3302
        %v3318 = vpack.c.b16 %v3305, %v3304
        %v3319 = vpack.c.b16 %v3307, %v3306
        %v3320 = vpack.c.b16 %v3309, %v3308
        %v3321 = vpack.c.b16 %v3311, %v3310
        %v3322 = vpack.c.b16 %v3313, %v3312
        %v3323 = vpack.c.b16 %v3315, %v3314
        %3332 = vmatprep.subr.bf16.mxu0 0
        %3333 = vmatpush1.bf16.msra.mxu0 %v3316
        %3334 = vmatprep.subr.bf16.mxu0 0
        %3335 = vmatpush1.bf16.msra.mxu0 %v3317
        %3336 = vmatprep.subr.bf16.mxu0 0
        %3337 = vmatpush1.bf16.msra.mxu0 %v3318
        %3338 = vmatprep.subr.bf16.mxu0 0
        %3339 = vmatpush1.bf16.msra.mxu0 %v3319
        %3340 = vmatprep.subr.bf16.mxu0 0
        %3341 = vmatpush1.bf16.msra.mxu0 %v3320
        %3342 = vmatprep.subr.bf16.mxu0 0
        %3343 = vmatpush1.bf16.msra.mxu0 %v3321
        %3344 = vmatprep.subr.bf16.mxu0 0
        %3345 = vmatpush1.bf16.msra.mxu0 %v3322
        %3346 = vmatprep.subr.bf16.mxu0 0
        %3347 = vmatpush1.bf16.msra.mxu0 %v3323
        %3348 = vmatprep.subr.bf16.mxu0 0
        %3349 = vmatpush1.bf16.msra.mxu0 0
        %3350 = vmatprep.subr.bf16.mxu0 0
        %3351 = vmatpush1.bf16.msra.mxu0 0
        %3352 = vmatprep.subr.bf16.mxu0 0
        %3353 = vmatpush1.bf16.msra.mxu0 0
        %3354 = vmatprep.subr.bf16.mxu0 0
        %3355 = vmatpush1.bf16.msra.mxu0 0
        %3356 = vmatprep.subr.bf16.mxu0 0
        %3357 = vmatpush1.bf16.msra.mxu0 0
        %3358 = vmatprep.subr.bf16.mxu0 0
        %3359 = vmatpush1.bf16.msra.mxu0 0
        %3360 = vmatprep.subr.bf16.mxu0 0
        %3361 = vmatpush1.bf16.msra.mxu0 0
        %3362 = vmatprep.subr.bf16.mxu0 0
        %3363 = vmatpush1.bf16.msra.mxu0 0
        %3364 = vmatprep.mubr.bf16.mxu0 0
        %3365 = vmatmul.mubr.bf16.gmra.mrb[0].mxu0 %v3253
        %v3366 = vpop.f32.mrb[0].mxu0
        %v3367 = vadd.f32 %v3282, %v3366
        %v3368 = vpop.f32.mrb[0].mxu0
        %v3369 = vpop.f32.mrb[0].mxu0
        %v3370 = vadd.f32 %v3282, %v3369
        %v3371 = vpop.f32.mrb[0].mxu0
        %3372 = vmatprep.mubr.bf16.mxu0 0
        %3373 = vmatmul.mubr.bf16.gmra.mrb[0].mxu0 %v3254
        %v3374 = vpop.f32.mrb[0].mxu0
        %v3375 = vadd.f32 %v3282, %v3374
        %v3376 = vpop.f32.mrb[0].mxu0
        %v3377 = vpop.f32.mrb[0].mxu0
        %v3378 = vadd.f32 %v3282, %v3377
        %v3379 = vpop.f32.mrb[0].mxu0
        %3380 = vmatprep.mubr.bf16.mxu0 0
        %3381 = vmatmul.mubr.bf16.gmra.mrb[0].mxu0 %v3255
        %v3382 = vpop.f32.mrb[0].mxu0
        %v3383 = vadd.f32 %v3282, %v3382
        %v3384 = vpop.f32.mrb[0].mxu0
        %v3385 = vpop.f32.mrb[0].mxu0
        %v3386 = vadd.f32 %v3282, %v3385
        %v3387 = vpop.f32.mrb[0].mxu0
        %3388 = vmatprep.mubr.bf16.mxu0 0
        %3389 = vmatmul.mubr.bf16.gmra.mrb[0].mxu0 %v3256
        %v3390 = vpop.f32.mrb[0].mxu0
        %v3391 = vadd.f32 %v3282, %v3390
        %v3392 = vpop.f32.mrb[0].mxu0
        %v3393 = vpop.f32.mrb[0].mxu0
        %v3394 = vadd.f32 %v3282, %v3393
        %v3395 = vpop.f32.mrb[0].mxu0
        %3396 = vmatprep.mubr.bf16.mxu0 0
        %3397 = vmatmul.mubr.bf16.gmra.mrb[0].mxu0 %v3257
        %v3398 = vpop.f32.mrb[0].mxu0
        %v3399 = vadd.f32 %v3282, %v3398
        %v3400 = vpop.f32.mrb[0].mxu0
        %v3401 = vpop.f32.mrb[0].mxu0
        %v3402 = vadd.f32 %v3282, %v3401
        %v3403 = vpop.f32.mrb[0].mxu0
        %3404 = vmatprep.mubr.bf16.mxu0 0
        %3405 = vmatmul.mubr.bf16.gmra.mrb[0].mxu0 %v3258
        %v3406 = vpop.f32.mrb[0].mxu0
        %v3407 = vadd.f32 %v3282, %v3406
        %v3408 = vpop.f32.mrb[0].mxu0
        %v3409 = vpop.f32.mrb[0].mxu0
        %v3410 = vadd.f32 %v3282, %v3409
        %v3411 = vpop.f32.mrb[0].mxu0
        %3412 = vmatprep.mubr.bf16.mxu0 0
        %3413 = vmatmul.mubr.bf16.gmra.mrb[0].mxu0 %v3259
        %v3414 = vpop.f32.mrb[0].mxu0
        %v3415 = vadd.f32 %v3282, %v3414
        %v3416 = vpop.f32.mrb[0].mxu0
        %v3417 = vpop.f32.mrb[0].mxu0
        %v3418 = vadd.f32 %v3282, %v3417
        %v3419 = vpop.f32.mrb[0].mxu0
        %3420 = vmatprep.mubr.bf16.mxu0 0
        %3421 = vmatmul.mubr.bf16.gmra.mrb[0].mxu0 %v3260
        %v3422 = vpop.f32.mrb[0].mxu0
        %v3423 = vadd.f32 %v3282, %v3422
        %v3424 = vpop.f32.mrb[0].mxu0
        %v3425 = vpop.f32.mrb[0].mxu0
        %v3426 = vadd.f32 %v3282, %v3425
        %v3427 = vpop.f32.mrb[0].mxu0
        %3428 = vdwg.mxu0
        %v3429 = vsub.f32 0.0, %v3367
        %v3430 = vsub.f32 0.0, %v3370
        %v3431 = vsub.f32 0.0, %v3375
        %v3432 = vsub.f32 0.0, %v3378
        %v3433 = vsub.f32 0.0, %v3383
        %v3434 = vsub.f32 0.0, %v3386
        %v3435 = vsub.f32 0.0, %v3391
        %v3436 = vsub.f32 0.0, %v3394
        %v3437 = vsub.f32 0.0, %v3399
        %v3438 = vsub.f32 0.0, %v3402
        %v3439 = vsub.f32 0.0, %v3407
        %v3440 = vsub.f32 0.0, %v3410
        %v3441 = vsub.f32 0.0, %v3415
        %v3442 = vsub.f32 0.0, %v3418
        %v3443 = vsub.f32 0.0, %v3423
        %v3444 = vsub.f32 0.0, %v3426
        %v3445 = vmul.f32 %v3429, 1.442695
        %v3446 = vpow.pop %v3445
        %v3447 = vmul.f32 %v3430, 1.442695
        %v3448 = vpow.pop %v3447
        %v3449 = vmul.f32 %v3431, 1.442695
        %v3450 = vpow.pop %v3449
        %v3451 = vmul.f32 %v3432, 1.442695
        %v3452 = vpow.pop %v3451
        %v3453 = vmul.f32 %v3433, 1.442695
        %v3454 = vpow.pop %v3453
        %v3455 = vmul.f32 %v3434, 1.442695
        %v3456 = vpow.pop %v3455
        %v3457 = vmul.f32 %v3435, 1.442695
        %v3458 = vpow.pop %v3457
        %v3459 = vmul.f32 %v3436, 1.442695
        %v3460 = vpow.pop %v3459
        %v3461 = vmul.f32 %v3437, 1.442695
        %v3462 = vpow.pop %v3461
        %v3463 = vmul.f32 %v3438, 1.442695
        %v3464 = vpow.pop %v3463
        %v3465 = vmul.f32 %v3439, 1.442695
        %v3466 = vpow.pop %v3465
        %v3467 = vmul.f32 %v3440, 1.442695
        %v3468 = vpow.pop %v3467
        %v3469 = vmul.f32 %v3441, 1.442695
        %v3470 = vpow.pop %v3469
        %v3471 = vmul.f32 %v3442, 1.442695
        %v3472 = vpow.pop %v3471
        %v3473 = vmul.f32 %v3443, 1.442695
        %v3474 = vpow.pop %v3473
        %v3475 = vmul.f32 %v3444, 1.442695
        %v3476 = vpow.pop %v3475
        %v3477 = vadd.f32 %v3446, 1.0
        %v3478 = vadd.f32 %v3448, 1.0
        %v3479 = vadd.f32 %v3450, 1.0
        %v3480 = vadd.f32 %v3452, 1.0
        %v3481 = vadd.f32 %v3454, 1.0
        %v3482 = vadd.f32 %v3456, 1.0
        %v3483 = vadd.f32 %v3458, 1.0
        %v3484 = vadd.f32 %v3460, 1.0
        %v3485 = vadd.f32 %v3462, 1.0
        %v3486 = vadd.f32 %v3464, 1.0
        %v3487 = vadd.f32 %v3466, 1.0
        %v3488 = vadd.f32 %v3468, 1.0
        %v3489 = vadd.f32 %v3470, 1.0
        %v3490 = vadd.f32 %v3472, 1.0
        %v3491 = vadd.f32 %v3474, 1.0
        %v3492 = vadd.f32 %v3476, 1.0
        %v3493 = vrcp.pop %v3477
        %v3494 = vrcp.pop %v3478
        %v3495 = vrcp.pop %v3479
        %v3496 = vrcp.pop %v3480
        %v3497 = vrcp.pop %v3481
        %v3498 = vrcp.pop %v3482
        %v3499 = vrcp.pop %v3483
        %v3500 = vrcp.pop %v3484
        %v3501 = vrcp.pop %v3485
        %v3502 = vrcp.pop %v3486
        %v3503 = vrcp.pop %v3487
        %v3504 = vrcp.pop %v3488
        %v3505 = vrcp.pop %v3489
        %v3506 = vrcp.pop %v3490
        %v3507 = vrcp.pop %v3491
        %v3508 = vrcp.pop %v3492
        %v3509 = vmul.f32 %v3367, %v3493
        %v3510 = vmul.f32 %v3370, %v3494
        %v3511 = vmul.f32 %v3375, %v3495
        %v3512 = vmul.f32 %v3378, %v3496
        %v3513 = vmul.f32 %v3383, %v3497
        %v3514 = vmul.f32 %v3386, %v3498
        %v3515 = vmul.f32 %v3391, %v3499
        %v3516 = vmul.f32 %v3394, %v3500
        %v3517 = vmul.f32 %v3399, %v3501
        %v3518 = vmul.f32 %v3402, %v3502
        %v3519 = vmul.f32 %v3407, %v3503
        %v3520 = vmul.f32 %v3410, %v3504
        %v3521 = vmul.f32 %v3415, %v3505
        %v3522 = vmul.f32 %v3418, %v3506
        %v3523 = vmul.f32 %v3423, %v3507
        %v3524 = vmul.f32 %v3426, %v3508
        %v3525 = vpack.c.bf16 %v3237, %v3236
        %v3526 = vpack.c.bf16 %v3239, %v3238
        %v3527 = vpack.c.bf16 %v3241, %v3240
        %v3528 = vpack.c.bf16 %v3243, %v3242
        %v3529 = vpack.c.bf16 %v3245, %v3244
        %v3530 = vpack.c.bf16 %v3247, %v3246
        %v3531 = vpack.c.bf16 %v3249, %v3248
        %v3532 = vpack.c.bf16 %v3251, %v3250
        %3533 = vst [vmem:[#allocation4] sm:$0xff] %v3525
        %3534 = vst [vmem:[#allocation4 + $0x10] sm:$0xff] %v3526
        %3535 = vst [vmem:[#allocation4 + $0x20] sm:$0xff] %v3527
        %3536 = vst [vmem:[#allocation4 + $0x30] sm:$0xff] %v3528
        %3537 = vst [vmem:[#allocation4 + $0x40] sm:$0xff] %v3529
        %3538 = vst [vmem:[#allocation4 + $0x50] sm:$0xff] %v3530
        %3539 = vst [vmem:[#allocation4 + $0x60] sm:$0xff] %v3531
        %3540 = vst [vmem:[#allocation4 + $0x70] sm:$0xff] %v3532
        %v3541 = vpack.c.bf16 %v3510, %v3509
        %v3542 = vpack.c.bf16 %v3512, %v3511
        %v3543 = vpack.c.bf16 %v3514, %v3513
        %v3544 = vpack.c.bf16 %v3516, %v3515
        %v3545 = vpack.c.bf16 %v3518, %v3517
        %v3546 = vpack.c.bf16 %v3520, %v3519
        %v3547 = vpack.c.bf16 %v3522, %v3521
        %v3548 = vpack.c.bf16 %v3524, %v3523
        %3549 = vst [vmem:[#allocation4 + $0x8] sm:$0xff] %v3541
        %3550 = vst [vmem:[#allocation4 + $0x18] sm:$0xff] %v3542
        %3551 = vst [vmem:[#allocation4 + $0x28] sm:$0xff] %v3543
        %3552 = vst [vmem:[#allocation4 + $0x38] sm:$0xff] %v3544
        %3553 = vst [vmem:[#allocation4 + $0x48] sm:$0xff] %v3545
        %3554 = vst [vmem:[#allocation4 + $0x58] sm:$0xff] %v3546
        %3555 = vst [vmem:[#allocation4 + $0x68] sm:$0xff] %v3547
        %3556 = vst [vmem:[#allocation4 + $0x78] sm:$0xff] %v3548
        %v3557 = vld [vmem:[#allocation4] sm:$0xff]
        %v3558 = vld [vmem:[#allocation4 + $0x8] sm:$0xff]
        %v3559 = vld [vmem:[#allocation4 + $0x10] sm:$0xff]
        %v3560 = vld [vmem:[#allocation4 + $0x18] sm:$0xff]
        %v3561 = vld [vmem:[#allocation4 + $0x20] sm:$0xff]
        %v3562 = vld [vmem:[#allocation4 + $0x28] sm:$0xff]
        %v3563 = vld [vmem:[#allocation4 + $0x30] sm:$0xff]
        %v3564 = vld [vmem:[#allocation4 + $0x38] sm:$0xff]
        %v3565 = vld [vmem:[#allocation4 + $0x40] sm:$0xff]
        %v3566 = vld [vmem:[#allocation4 + $0x48] sm:$0xff]
        %v3567 = vld [vmem:[#allocation4 + $0x50] sm:$0xff]
        %v3568 = vld [vmem:[#allocation4 + $0x58] sm:$0xff]
        %v3569 = vld [vmem:[#allocation4 + $0x60] sm:$0xff]
        %v3570 = vld [vmem:[#allocation4 + $0x68] sm:$0xff]
        %v3571 = vld [vmem:[#allocation4 + $0x70] sm:$0xff]
        %v3572 = vld [vmem:[#allocation4 + $0x78] sm:$0xff]
        %v3573 = vld [vmem:[#allocation15] sm:$0xf]
        %v3574 = vld [vmem:[#allocation15 + $0x4] sm:$0xf]
        %v3575 = vld [vmem:[#allocation15 + $0x8] sm:$0xf]
        %v3576 = vld [vmem:[#allocation15 + $0xc] sm:$0xf]
        %v3577 = vld [vmem:[#allocation15 + $0x10] sm:$0xf]
        %v3578 = vld [vmem:[#allocation15 + $0x14] sm:$0xf]
        %v3579 = vld [vmem:[#allocation15 + $0x18] sm:$0xf]
        %v3580 = vld [vmem:[#allocation15 + $0x1c] sm:$0xf]
        %v3581 = vld [vmem:[#allocation15 + $0x20] sm:$0xf]
        %v3582 = vld [vmem:[#allocation15 + $0x24] sm:$0xf]
        %v3583 = vld [vmem:[#allocation15 + $0x28] sm:$0xf]
        %v3584 = vld [vmem:[#allocation15 + $0x2c] sm:$0xf]
        %v3585 = vld [vmem:[#allocation15 + $0x30] sm:$0xf]
        %v3586 = vld [vmem:[#allocation15 + $0x34] sm:$0xf]
        %v3587 = vld [vmem:[#allocation15 + $0x38] sm:$0xf]
        %v3588 = vld [vmem:[#allocation15 + $0x3c] sm:$0xf]
        %v3589 = vld [vmem:[#allocation15 + $0x40] sm:$0xf]
        %v3590 = vld [vmem:[#allocation15 + $0x44] sm:$0xf]
        %v3591 = vld [vmem:[#allocation15 + $0x48] sm:$0xf]
        %v3592 = vld [vmem:[#allocation15 + $0x4c] sm:$0xf]
        %v3593 = vld [vmem:[#allocation15 + $0x50] sm:$0xf]
        %v3594 = vld [vmem:[#allocation15 + $0x54] sm:$0xf]
        %v3595 = vld [vmem:[#allocation15 + $0x58] sm:$0xf]
        %v3596 = vld [vmem:[#allocation15 + $0x5c] sm:$0xf]
        %v3597 = vld [vmem:[#allocation15 + $0x60] sm:$0xf]
        %v3598 = vld [vmem:[#allocation15 + $0x64] sm:$0xf]
        %v3599 = vld [vmem:[#allocation15 + $0x68] sm:$0xf]
        %v3600 = vld [vmem:[#allocation15 + $0x6c] sm:$0xf]
        %v3601 = vld [vmem:[#allocation15 + $0x70] sm:$0xf]
        %v3602 = vld [vmem:[#allocation15 + $0x74] sm:$0xf]
        %v3603 = vld [vmem:[#allocation15 + $0x78] sm:$0xf]
        %v3604 = vld [vmem:[#allocation15 + $0x7c] sm:$0xf]
        %v3605 = vld [vmem:[%s12] sm:$0x1]
        %v3607 = vlaneseq
        %v3608 = vshrl.u32 %v3607, 7
        %v3609 = vsub.s32 0, %v3608
        %v3610 = vrot.slane %v3605, %v3609
        %v3644 = vunpack.c.l.b16 %v3573
        %v3645 = vunpack.c.l.b16 %v3574
        %v3646 = vunpack.c.l.b16 %v3575
        %v3647 = vunpack.c.l.b16 %v3576
        %v3648 = vunpack.c.l.b16 %v3577
        %v3649 = vunpack.c.l.b16 %v3578
        %v3650 = vunpack.c.l.b16 %v3579
        %v3651 = vunpack.c.l.b16 %v3580
        %v3652 = vunpack.c.l.b16 %v3581
        %v3653 = vunpack.c.l.b16 %v3582
        %v3654 = vunpack.c.l.b16 %v3583
        %v3655 = vunpack.c.l.b16 %v3584
        %v3656 = vunpack.c.l.b16 %v3585
        %v3657 = vunpack.c.l.b16 %v3586
        %v3658 = vunpack.c.l.b16 %v3587
        %v3659 = vunpack.c.l.b16 %v3588
        %v3660 = vunpack.c.l.b16 %v3589
        %v3661 = vunpack.c.l.b16 %v3590
        %v3662 = vunpack.c.l.b16 %v3591
        %v3663 = vunpack.c.l.b16 %v3592
        %v3664 = vunpack.c.l.b16 %v3593
        %v3665 = vunpack.c.l.b16 %v3594
        %v3666 = vunpack.c.l.b16 %v3595
        %v3667 = vunpack.c.l.b16 %v3596
        %v3668 = vunpack.c.l.b16 %v3597
        %v3669 = vunpack.c.l.b16 %v3598
        %v3670 = vunpack.c.l.b16 %v3599
        %v3671 = vunpack.c.l.b16 %v3600
        %v3672 = vunpack.c.l.b16 %v3601
        %v3673 = vunpack.c.l.b16 %v3602
        %v3674 = vunpack.c.l.b16 %v3603
        %v3675 = vunpack.c.l.b16 %v3604
        %v3676 = vpack.c.b16 %v3645, %v3644
        %v3677 = vpack.c.b16 %v3647, %v3646
        %v3678 = vpack.c.b16 %v3649, %v3648
        %v3679 = vpack.c.b16 %v3651, %v3650
        %v3680 = vpack.c.b16 %v3653, %v3652
        %v3681 = vpack.c.b16 %v3655, %v3654
        %v3682 = vpack.c.b16 %v3657, %v3656
        %v3683 = vpack.c.b16 %v3659, %v3658
        %v3684 = vpack.c.b16 %v3661, %v3660
        %v3685 = vpack.c.b16 %v3663, %v3662
        %v3686 = vpack.c.b16 %v3665, %v3664
        %v3687 = vpack.c.b16 %v3667, %v3666
        %v3688 = vpack.c.b16 %v3669, %v3668
        %v3689 = vpack.c.b16 %v3671, %v3670
        %v3690 = vpack.c.b16 %v3673, %v3672
        %v3691 = vpack.c.b16 %v3675, %v3674
        %3708 = vmatprep.subr.bf16.mxu0 0
        %3709 = vmatpush1.bf16.msra.mxu0 %v3676
        %3710 = vmatprep.subr.bf16.mxu0 0
        %3711 = vmatpush1.bf16.msra.mxu0 %v3677
        %3712 = vmatprep.subr.bf16.mxu0 0
        %3713 = vmatpush1.bf16.msra.mxu0 %v3678
        %3714 = vmatprep.subr.bf16.mxu0 0
        %3715 = vmatpush1.bf16.msra.mxu0 %v3679
        %3716 = vmatprep.subr.bf16.mxu0 0
        %3717 = vmatpush1.bf16.msra.mxu0 %v3680
        %3718 = vmatprep.subr.bf16.mxu0 0
        %3719 = vmatpush1.bf16.msra.mxu0 %v3681
        %3720 = vmatprep.subr.bf16.mxu0 0
        %3721 = vmatpush1.bf16.msra.mxu0 %v3682
        %3722 = vmatprep.subr.bf16.mxu0 0
        %3723 = vmatpush1.bf16.msra.mxu0 %v3683
        %3724 = vmatprep.subr.bf16.mxu0 0
        %3725 = vmatpush1.bf16.msra.mxu0 %v3684
        %3726 = vmatprep.subr.bf16.mxu0 0
        %3727 = vmatpush1.bf16.msra.mxu0 %v3685
        %3728 = vmatprep.subr.bf16.mxu0 0
        %3729 = vmatpush1.bf16.msra.mxu0 %v3686
        %3730 = vmatprep.subr.bf16.mxu0 0
        %3731 = vmatpush1.bf16.msra.mxu0 %v3687
        %3732 = vmatprep.subr.bf16.mxu0 0
        %3733 = vmatpush1.bf16.msra.mxu0 %v3688
        %3734 = vmatprep.subr.bf16.mxu0 0
        %3735 = vmatpush1.bf16.msra.mxu0 %v3689
        %3736 = vmatprep.subr.bf16.mxu0 0
        %3737 = vmatpush1.bf16.msra.mxu0 %v3690
        %3738 = vmatprep.subr.bf16.mxu0 0
        %3739 = vmatpush1.bf16.msra.mxu0 %v3691
        %3740 = vmatprep.mubr.bf16.mxu0 %v3558
        %3741 = vmatmul.mubr.bf16.gmra.mrb[0].mxu0 %v3557
        %v3742 = vpop.f32.mrb[0].mxu0
        %v3743 = vadd.f32 %v3610, %v3742
        %v3744 = vpop.f32.mrb[0].mxu0
        %v3745 = vpop.f32.mrb[0].mxu0
        %v3746 = vadd.f32 %v3610, %v3745
        %v3747 = vpop.f32.mrb[0].mxu0
        %3748 = vmatprep.mubr.bf16.mxu0 %v3560
        %3749 = vmatmul.mubr.bf16.gmra.mrb[0].mxu0 %v3559
        %v3750 = vpop.f32.mrb[0].mxu0
        %v3751 = vadd.f32 %v3610, %v3750
        %v3752 = vpop.f32.mrb[0].mxu0
        %v3753 = vpop.f32.mrb[0].mxu0
        %v3754 = vadd.f32 %v3610, %v3753
        %v3755 = vpop.f32.mrb[0].mxu0
        %3756 = vmatprep.mubr.bf16.mxu0 %v3562
        %3757 = vmatmul.mubr.bf16.gmra.mrb[0].mxu0 %v3561
        %v3758 = vpop.f32.mrb[0].mxu0
        %v3759 = vadd.f32 %v3610, %v3758
        %v3760 = vpop.f32.mrb[0].mxu0
        %v3761 = vpop.f32.mrb[0].mxu0
        %v3762 = vadd.f32 %v3610, %v3761
        %v3763 = vpop.f32.mrb[0].mxu0
        %3764 = vmatprep.mubr.bf16.mxu0 %v3564
        %3765 = vmatmul.mubr.bf16.gmra.mrb[0].mxu0 %v3563
        %v3766 = vpop.f32.mrb[0].mxu0
        %v3767 = vadd.f32 %v3610, %v3766
        %v3768 = vpop.f32.mrb[0].mxu0
        %v3769 = vpop.f32.mrb[0].mxu0
        %v3770 = vadd.f32 %v3610, %v3769
        %v3771 = vpop.f32.mrb[0].mxu0
        %3772 = vmatprep.mubr.bf16.mxu0 %v3566
        %3773 = vmatmul.mubr.bf16.gmra.mrb[0].mxu0 %v3565
        %v3774 = vpop.f32.mrb[0].mxu0
        %v3775 = vadd.f32 %v3610, %v3774
        %v3776 = vpop.f32.mrb[0].mxu0
        %v3777 = vpop.f32.mrb[0].mxu0
        %v3778 = vadd.f32 %v3610, %v3777
        %v3779 = vpop.f32.mrb[0].mxu0
        %3780 = vmatprep.mubr.bf16.mxu0 %v3568
        %3781 = vmatmul.mubr.bf16.gmra.mrb[0].mxu0 %v3567
        %v3782 = vpop.f32.mrb[0].mxu0
        %v3783 = vadd.f32 %v3610, %v3782
        %v3784 = vpop.f32.mrb[0].mxu0
        %v3785 = vpop.f32.mrb[0].mxu0
        %v3786 = vadd.f32 %v3610, %v3785
        %v3787 = vpop.f32.mrb[0].mxu0
        %3788 = vmatprep.mubr.bf16.mxu0 %v3570
        %3789 = vmatmul.mubr.bf16.gmra.mrb[0].mxu0 %v3569
        %v3790 = vpop.f32.mrb[0].mxu0
        %v3791 = vadd.f32 %v3610, %v3790
        %v3792 = vpop.f32.mrb[0].mxu0
        %v3793 = vpop.f32.mrb[0].mxu0
        %v3794 = vadd.f32 %v3610, %v3793
        %v3795 = vpop.f32.mrb[0].mxu0
        %3796 = vmatprep.mubr.bf16.mxu0 %v3572
        %3797 = vmatmul.mubr.bf16.gmra.mrb[0].mxu0 %v3571
        %v3798 = vpop.f32.mrb[0].mxu0
        %v3799 = vadd.f32 %v3610, %v3798
        %v3800 = vpop.f32.mrb[0].mxu0
        %v3801 = vpop.f32.mrb[0].mxu0
        %v3802 = vadd.f32 %v3610, %v3801
        %v3803 = vpop.f32.mrb[0].mxu0
        %3804 = vdwg.mxu0
        %v3805 = vsub.f32 0.0, %v3743
        %v3806 = vsub.f32 0.0, %v3746
        %v3807 = vsub.f32 0.0, %v3751
        %v3808 = vsub.f32 0.0, %v3754
        %v3809 = vsub.f32 0.0, %v3759
        %v3810 = vsub.f32 0.0, %v3762
        %v3811 = vsub.f32 0.0, %v3767
        %v3812 = vsub.f32 0.0, %v3770
        %v3813 = vsub.f32 0.0, %v3775
        %v3814 = vsub.f32 0.0, %v3778
        %v3815 = vsub.f32 0.0, %v3783
        %v3816 = vsub.f32 0.0, %v3786
        %v3817 = vsub.f32 0.0, %v3791
        %v3818 = vsub.f32 0.0, %v3794
        %v3819 = vsub.f32 0.0, %v3799
        %v3820 = vsub.f32 0.0, %v3802
        %v3821 = vmul.f32 %v3805, 1.442695
        %v3822 = vpow.pop %v3821
        %v3823 = vmul.f32 %v3806, 1.442695
        %v3824 = vpow.pop %v3823
        %v3825 = vmul.f32 %v3807, 1.442695
        %v3826 = vpow.pop %v3825
        %v3827 = vmul.f32 %v3808, 1.442695
        %v3828 = vpow.pop %v3827
        %v3829 = vmul.f32 %v3809, 1.442695
        %v3830 = vpow.pop %v3829
        %v3831 = vmul.f32 %v3810, 1.442695
        %v3832 = vpow.pop %v3831
        %v3833 = vmul.f32 %v3811, 1.442695
        %v3834 = vpow.pop %v3833
        %v3835 = vmul.f32 %v3812, 1.442695
        %v3836 = vpow.pop %v3835
        %v3837 = vmul.f32 %v3813, 1.442695
        %v3838 = vpow.pop %v3837
        %v3839 = vmul.f32 %v3814, 1.442695
        %v3840 = vpow.pop %v3839
        %v3841 = vmul.f32 %v3815, 1.442695
        %v3842 = vpow.pop %v3841
        %v3843 = vmul.f32 %v3816, 1.442695
        %v3844 = vpow.pop %v3843
        %v3845 = vmul.f32 %v3817, 1.442695
        %v3846 = vpow.pop %v3845
        %v3847 = vmul.f32 %v3818, 1.442695
        %v3848 = vpow.pop %v3847
        %v3849 = vmul.f32 %v3819, 1.442695
        %v3850 = vpow.pop %v3849
        %v3851 = vmul.f32 %v3820, 1.442695
        %v3852 = vpow.pop %v3851
        %v3853 = vadd.f32 %v3822, 1.0
        %v3854 = vadd.f32 %v3824, 1.0
        %v3855 = vadd.f32 %v3826, 1.0
        %v3856 = vadd.f32 %v3828, 1.0
        %v3857 = vadd.f32 %v3830, 1.0
        %v3858 = vadd.f32 %v3832, 1.0
        %v3859 = vadd.f32 %v3834, 1.0
        %v3860 = vadd.f32 %v3836, 1.0
        %v3861 = vadd.f32 %v3838, 1.0
        %v3862 = vadd.f32 %v3840, 1.0
        %v3863 = vadd.f32 %v3842, 1.0
        %v3864 = vadd.f32 %v3844, 1.0
        %v3865 = vadd.f32 %v3846, 1.0
        %v3866 = vadd.f32 %v3848, 1.0
        %v3867 = vadd.f32 %v3850, 1.0
        %v3868 = vadd.f32 %v3852, 1.0
        %v3869 = vrcp.pop %v3853
        %v3870 = vrcp.pop %v3854
        %v3871 = vrcp.pop %v3855
        %v3872 = vrcp.pop %v3856
        %v3873 = vrcp.pop %v3857
        %v3874 = vrcp.pop %v3858
        %v3875 = vrcp.pop %v3859
        %v3876 = vrcp.pop %v3860
        %v3877 = vrcp.pop %v3861
        %v3878 = vrcp.pop %v3862
        %v3879 = vrcp.pop %v3863
        %v3880 = vrcp.pop %v3864
        %v3881 = vrcp.pop %v3865
        %v3882 = vrcp.pop %v3866
        %v3883 = vrcp.pop %v3867
        %v3884 = vrcp.pop %v3868
        %v3885 = vmul.f32 %v3743, %v3869
        %v3886 = vmul.f32 %v3746, %v3870
        %v3887 = vmul.f32 %v3751, %v3871
        %v3888 = vmul.f32 %v3754, %v3872
        %v3889 = vmul.f32 %v3759, %v3873
        %v3890 = vmul.f32 %v3762, %v3874
        %v3891 = vmul.f32 %v3767, %v3875
        %v3892 = vmul.f32 %v3770, %v3876
        %v3893 = vmul.f32 %v3775, %v3877
        %v3894 = vmul.f32 %v3778, %v3878
        %v3895 = vmul.f32 %v3783, %v3879
        %v3896 = vmul.f32 %v3786, %v3880
        %v3897 = vmul.f32 %v3791, %v3881
        %v3898 = vmul.f32 %v3794, %v3882
        %v3899 = vmul.f32 %v3799, %v3883
        %v3900 = vmul.f32 %v3802, %v3884
        %v3901 = vpack.c.bf16 %v3886, %v3885
        %v3902 = vpack.c.bf16 %v3888, %v3887
        %v3903 = vpack.c.bf16 %v3890, %v3889
        %v3904 = vpack.c.bf16 %v3892, %v3891
        %v3905 = vpack.c.bf16 %v3894, %v3893
        %v3906 = vpack.c.bf16 %v3896, %v3895
        %v3907 = vpack.c.bf16 %v3898, %v3897
        %v3908 = vpack.c.bf16 %v3900, %v3899
        %v3917 = vunpack.c.l.b16 %v3901
        %v3918 = vunpack.c.h.b16 %v3901
        %v3919 = vunpack.c.l.b16 %v3902
        %v3920 = vunpack.c.h.b16 %v3902
        %v3921 = vunpack.c.l.b16 %v3903
        %v3922 = vunpack.c.h.b16 %v3903
        %v3923 = vunpack.c.l.b16 %v3904
        %v3924 = vunpack.c.h.b16 %v3904
        %v3925 = vunpack.c.l.b16 %v3905
        %v3926 = vunpack.c.h.b16 %v3905
        %v3927 = vunpack.c.l.b16 %v3906
        %v3928 = vunpack.c.h.b16 %v3906
        %v3929 = vunpack.c.l.b16 %v3907
        %v3930 = vunpack.c.h.b16 %v3907
        %v3931 = vunpack.c.l.b16 %v3908
        %v3932 = vunpack.c.h.b16 %v3908
        %v3933 = vpack.c.b16 %v3917, %v3917
        %v3934 = vpack.c.b16 %v3918, %v3918
        %v3935 = vpack.c.b16 %v3919, %v3919
        %v3936 = vpack.c.b16 %v3920, %v3920
        %v3937 = vpack.c.b16 %v3921, %v3921
        %v3938 = vpack.c.b16 %v3922, %v3922
        %v3939 = vpack.c.b16 %v3923, %v3923
        %v3940 = vpack.c.b16 %v3924, %v3924
        %v3941 = vpack.c.b16 %v3925, %v3925
        %v3942 = vpack.c.b16 %v3926, %v3926
        %v3943 = vpack.c.b16 %v3927, %v3927
        %v3944 = vpack.c.b16 %v3928, %v3928
        %v3945 = vpack.c.b16 %v3929, %v3929
        %v3946 = vpack.c.b16 %v3930, %v3930
        %v3947 = vpack.c.b16 %v3931, %v3931
        %v3948 = vpack.c.b16 %v3932, %v3932
        %3965 = vst [vmem:[%s494] sm:$0xf] %v3933
        %3966 = vst [vmem:[%s494 + $0x4] sm:$0xf] %v3934
        %3967 = vst [vmem:[%s494 + $0x8] sm:$0xf] %v3935
        %3968 = vst [vmem:[%s494 + $0xc] sm:$0xf] %v3936
        %3969 = vst [vmem:[%s494 + $0x10] sm:$0xf] %v3937
        %3970 = vst [vmem:[%s494 + $0x14] sm:$0xf] %v3938
        %3971 = vst [vmem:[%s494 + $0x18] sm:$0xf] %v3939
        %3972 = vst [vmem:[%s494 + $0x1c] sm:$0xf] %v3940
        %3973 = vst [vmem:[%s494 + $0x20] sm:$0xf] %v3941
        %3974 = vst [vmem:[%s494 + $0x24] sm:$0xf] %v3942
        %3975 = vst [vmem:[%s494 + $0x28] sm:$0xf] %v3943
        %3976 = vst [vmem:[%s494 + $0x2c] sm:$0xf] %v3944
        %3977 = vst [vmem:[%s494 + $0x30] sm:$0xf] %v3945
        %3978 = vst [vmem:[%s494 + $0x34] sm:$0xf] %v3946
        %3979 = vst [vmem:[%s494 + $0x38] sm:$0xf] %v3947
        %3980 = vst [vmem:[%s494 + $0x3c] sm:$0xf] %v3948
        %s3981 = sand.u32 %s305, 1
        %s3982 = scalar_lea.sflag [#allocation8], %s3981
        %s3983 = sand.u32 %s305, 1
        %s3984 = smul.addr %s3983, 64
        %s3985 = scalar_lea.vmem [#allocation17], %s3984
        // Predicated region
        $region97: #{tpu_custom_call.1} parent=67 // pred_check
          %p3986 = pneg %p315
        $region98: #{tpu_custom_call.1} parent=67 // pred_check_branch
          %3988 = sbr.rel (%p3986) target = $region100
        $region99: #{tpu_custom_call.1} parent=67 // pred_region
          %s3989 = smul.u32 8, %s36
          %s3991 = ssub.s32 1024, 1024
          %3992 = vsyncadd %s3982, %s3991
          %s3993 = smul.addr %s3989, 2
          %s3994 = smul.addr %s35, 32
          %s3995 = sadd.s32 %s3993, %s3994
          %s3996 = smul.addr %s3995, 64
          %s3997 = scalar_lea.hbm %s13, %s3996
          %s3998 = sshll.u32 %s3985, 4
          %s3999 = int_to_ptr.vmem [resolvable:$true] %s3998
          %4004 = dma.vmem_to_hbm [thread:$0]  %s3999, 1024, %s3997, %s3982, 64, 64, 4
        $region100: #{tpu_custom_call.1} parent=67 // pred_fallthru
          _
      $region68: #{tpu_custom_call.1} parent=5 // pred_fallthru
        _
      %p4005 = scmp.le.s32.totalorder 2, %s26
      // Predicated region
      $region101: #{tpu_custom_call.1} parent=5 // pred_check
        %p4006 = pneg %p4005
      $region102: #{tpu_custom_call.1} parent=5 // pred_check_branch
        %4008 = sbr.rel (%p4006) target = $region104
      $region103: #{tpu_custom_call.1} parent=5 // pred_region
        %s4009 = ssub.s32 %s26, 2
        // Predicated region
        $region105: #{tpu_custom_call.1} parent=103 // pred_check
          %p4010 = pneg %p321
        $region106: #{tpu_custom_call.1} parent=103 // pred_check_branch
          %4012 = sbr.rel (%p4010) target = $region108
        $region107: #{tpu_custom_call.1} parent=103 // pred_region
          %s4013 = sand.u32 %s306, 1
          %s4014 = scalar_lea.sflag [#allocation8], %s4013
          %s4015 = sand.u32 %s306, 1
          %s4016 = smul.addr %s4015, 64
          %s4017 = scalar_lea.vmem [#allocation17], %s4016
          %4018 = dma.done %s4014, 1024
        $region108: #{tpu_custom_call.1} parent=103 // pred_fallthru
          _
      $region104: #{tpu_custom_call.1} parent=5 // pred_fallthru
        _
    $region6: #{tpu_custom_call.1} parent=1 // loop_footer
      %s30 = sadd.s32 1, %s26
    $region7: #{tpu_custom_call.1} parent=1 // loop_footer_branch
      %25 = sbr.rel target = $region3
    $region8: #{tpu_custom_call.1} parent=1 // loop_exit
      _
    %4019 = vsyncpa [#allocation7], 1
    %s4020 = scalar_lea.sflag [#allocation7], 1
    %4021 = vsyncpa %s4020, 1
    %4022 = vsyncpa [#allocation10], 1
    %4023 = vsyncpa [#allocation13], 1
    %4024 = vsyncpa [#allocation16], 1
    %4025 = vsyncpa [#allocation8], 1
    %s4026 = scalar_lea.sflag [#allocation8], 1
    %4027 = vsyncpa %s4026, 1
  %4028 = vsyncmov [#allocation5]
  %s4029 = vpop.sfrf %4028
  %p4030 = scmp.eq.s32.totalorder %s4029, 0
  %p4031 = pneg %p4030
  %4033 = shalt.err (%p4031)

</llo_original>
